<compile_context>
chip_gen: v5e
topology: v5e:2x2
jax: 0.10.0
libtpu: 0.0.40
codegen_flags: <defaults>
</compile_context>

<pallas_src>
import functools
from typing import NamedTuple

import jax
import jax.numpy as jnp
import numpy as np
from jax import lax
from jax.experimental import pallas as pl
from jax.experimental.pallas import tpu as pltpu


def _round_up(x, m):
    return ((x + m - 1) // m) * m


_VMEM = pl.BlockSpec(memory_space=pltpu.MemorySpace.VMEM)


class RDecoderMeta(NamedTuple):
    H: int
    O: int
    C: int
    H_pad: int
    C_pad: int
    O_pad: int


# ----------------------------------------------------------------------------
# Fused kernel: num_layers GRU layers + final Linear, everything VMEM-resident.
# ----------------------------------------------------------------------------
def make_rdecoder_kernel(num_layers, T, B_pad, H_pad):
    # Full unroll only for short sequences; partial unroll keeps LLO visibility
    # without exploding vreg live ranges (64 vregs) for long T.
    unroll = True if T <= 16 else 8

    def kernel(*refs):
        it = iter(refs)
        # ---- inputs ----
        x_ref = next(it)                    # (B_pad, C_pad)   decoder input (constant in time)
        h0_ref = next(it)                   # (num_layers, B_pad, H_pad) initial hidden
        layer_refs = []
        for _ in range(num_layers):
            w_ih_t = next(it)               # (F_in_pad, 3*H_pad)  pre-transposed
            w_hh_t = next(it)               # (H_pad,    3*H_pad)  pre-transposed
            bias_gi = next(it)              # (1, 3*H_pad)  b_ih (+ b_hh for r,z gates)
            bias_hn = next(it)              # (1, H_pad)    b_hh for n gate only
            layer_refs.append((w_ih_t, w_hh_t, bias_gi, bias_hn))
        lin_w_t = next(it)                  # (H_pad, O_pad)  pre-transposed
        lin_b = next(it)                    # (1, O_pad)
        # ---- outputs ----
        out_ref = next(it)                  # (T*B_pad, O_pad)   time-major, flattened
        hT_ref = next(it)                   # (num_layers, B_pad, H_pad)
        # ---- scratch ----
        y_ref = next(it)                    # (T*B_pad, H_pad)   current layer output seq
        gi_ref = next(it)                   # (T*B_pad, 3*H_pad) hoisted input projection

        H = H_pad

        def run_layer(l, first_layer):
            w_ih_t, w_hh_t, bias_gi, bias_hn = layer_refs[l]
            w_hh = w_hh_t[...]
            # n-gate recurrent bias, broadcast ONCE (hoisted out of the unrolled loop).
            bhn = jnp.broadcast_to(bias_hn[...], (B_pad, H))

            if first_layer:
                # RDecoder replicates its input across time, so the whole input
                # projection for layer 0 collapses to one (B_pad, 3H) matmul.
                gi_const = (
                    jnp.dot(x_ref[...], w_ih_t[...],
                            preferred_element_type=jnp.float32) + bias_gi[...]
                )
            else:
                # Hoist the input projection out of the recurrence: one big
                # (T*B_pad, H) x (H, 3H) GEMM over the previous layer's sequence.
                gi_ref[...] = (
                    jnp.dot(y_ref[...], w_ih_t[...],
                            preferred_element_type=jnp.float32) + bias_gi[...]
                )

            def step(t, h_prev):
                row = pl.multiple_of(t * B_pad, B_pad)
                if first_layer:
                    gi = gi_const
                else:
                    gi = gi_ref[pl.ds(row, B_pad), :]
                # No bias add here: r/z recurrent biases folded into GI in the wrapper.
                gh = jnp.dot(h_prev, w_hh, preferred_element_type=jnp.float32)
                # PyTorch gate order [r, z, n]; every slice is lane-aligned (H_pad=128k).
                r = jax.nn.sigmoid(gi[:, 0 * H:1 * H] + gh[:, 0 * H:1 * H])
                z = jax.nn.sigmoid(gi[:, 1 * H:2 * H] + gh[:, 1 * H:2 * H])
                n = jnp.tanh(gi[:, 2 * H:3 * H] + r * (gh[:, 2 * H:3 * H] + bhn))
                # n + z*(h_prev - n)  ==  (1-z)*n + z*h_prev, one fewer VPU op.
                h_new = n + z * (h_prev - n)
                y_ref[pl.ds(row, B_pad), :] = h_new
                return h_new

            h_last = lax.fori_loop(0, T, step, h0_ref[l], unroll=unroll)
            hT_ref[l] = h_last

        # TODO(synk): wavefront the (layer, time) recurrences for num_layers >= 2 to
        # shorten the serial MXU+EUP chain; kept sequential here for clarity.
        run_layer(0, True)
        for l in range(1, num_layers):
            run_layer(l, False)

        # Final Linear over ALL time steps as one lane-dense GEMM.
        out_ref[...] = (
            jnp.dot(y_ref[...], lin_w_t[...],
                    preferred_element_type=jnp.float32) + lin_b[...]
        )

    return kernel


# ----------------------------------------------------------------------------
# One-time parameter preparation (host-side): pad, transpose, fold biases.
# ----------------------------------------------------------------------------
def prepare_rdecoder_params(gru_params, lin_w, lin_b, num_classes):
    """Build padded, pre-transposed, bias-folded params ONCE (load time)."""
    num_layers = len(gru_params)
    H = int(gru_params[0][1].shape[1])
    O = int(lin_w.shape[0])
    C = int(num_classes)

    H_pad = max(_round_up(H, 128), 128)
    C_pad = max(_round_up(C, 128), 128)
    O_pad = max(_round_up(O, 128), 128)

    layers = []
    for l, (w_ih, w_hh, b_ih, b_hh) in enumerate(gru_params):
        w_ih = np.asarray(w_ih, np.float32)
        w_hh = np.asarray(w_hh, np.float32)
        b_ih = np.asarray(b_ih, np.float32)
        b_hh = np.asarray(b_hh, np.float32)
        F_in = w_ih.shape[1]
        F_pad = C_pad if l == 0 else H_pad

        # Pre-transpose and pad each gate block so gate slices are lane-aligned;
        # zero padding keeps padded hidden lanes exactly zero through the recurrence.
        w_ih_t = np.zeros((F_pad, 3 * H_pad), np.float32)
        w_hh_t = np.zeros((H_pad, 3 * H_pad), np.float32)
        bias_gi = np.zeros((1, 3 * H_pad), np.float32)
        bias_hn = np.zeros((1, H_pad), np.float32)
        for g in range(3):
            w_ih_t[:F_in, g * H_pad:g * H_pad + H] = w_ih[g * H:(g + 1) * H, :].T
            w_hh_t[:H, g * H_pad:g * H_pad + H] = w_hh[g * H:(g + 1) * H, :].T
            bias_gi[0, g * H_pad:g * H_pad + H] = b_ih[g * H:(g + 1) * H]
        # Fold recurrent biases for the r and z gates into the hoisted GI bias.
        # The n-gate recurrent bias must stay inside r * (W_hn h + b_hn).
        bias_gi[0, 0 * H_pad:0 * H_pad + H] += b_hh[0 * H:1 * H]
        bias_gi[0, 1 * H_pad:1 * H_pad + H] += b_hh[1 * H:2 * H]
        bias_hn[0, :H] = b_hh[2 * H:3 * H]

        layers.append((jnp.asarray(w_ih_t), jnp.asarray(w_hh_t),
                       jnp.asarray(bias_gi), jnp.asarray(bias_hn)))

    lin_w_t = np.zeros((H_pad, O_pad), np.float32)
    lin_w_t[:H, :O] = np.asarray(lin_w, np.float32).T
    lin_b_p = np.zeros((1, O_pad), np.float32)
    lin_b_p[0, :O] = np.asarray(lin_b, np.float32)

    prepared = (tuple(layers), jnp.asarray(lin_w_t), jnp.asarray(lin_b_p))
    meta = RDecoderMeta(H=H, O=O, C=C, H_pad=H_pad, C_pad=C_pad, O_pad=O_pad)
    return prepared, meta


# ----------------------------------------------------------------------------
# Forward (jit this with dim/meta static): pad activations, single pallas_call.
# ----------------------------------------------------------------------------
def rdecoder_forward(inp, dim, hidden, prepared, meta):
    """Mirror of RDecoder.forward.

    inp:    (B, num_classes)
    dim:    int T (time steps; input replicated across them)
    hidden: (num_layers, B, H) initial GRU hidden
    prepared/meta: output of prepare_rdecoder_params
    Returns (out (B, T, output_size), hidden (num_layers, B, H)).
    """
    layers, lin_w_t, lin_b_p = prepared
    num_layers = len(layers)
    B, _C = inp.shape
    T = int(dim)
    H, O = meta.H, meta.O
    H_pad, C_pad, O_pad = meta.H_pad, meta.C_pad, meta.O_pad
    f32 = jnp.float32

    # Sublane-dense batch padding (f32 sublane = 8).
    B_pad = max(_round_up(B, 8), 8)

    x_p = jnp.zeros((B_pad, C_pad), f32).at[:B, :meta.C].set(inp.astype(f32))
    h0_p = jnp.zeros((num_layers, B_pad, H_pad), f32).at[:, :B, :H].set(hidden.astype(f32))

    args = [x_p, h0_p]
    for lp in layers:
        args.extend(lp)
    args += [lin_w_t, lin_b_p]

    kernel = make_rdecoder_kernel(num_layers, T, B_pad, H_pad)

    out_flat, hT = pl.pallas_call(
        kernel,
        out_shape=(
            jax.ShapeDtypeStruct((T * B_pad, O_pad), f32),
            jax.ShapeDtypeStruct((num_layers, B_pad, H_pad), f32),
        ),
        in_specs=[_VMEM] * len(args),
        out_specs=(_VMEM, _VMEM),
        scratch_shapes=[
            pltpu.VMEM((T * B_pad, H_pad), f32),       # layer output sequence (on-chip)
            pltpu.VMEM((T * B_pad, 3 * H_pad), f32),   # hoisted input projection GI
        ],
        # 32 MiB is ample for these sizes and safe on v7x (64 MiB physical);
        # raise toward ~100 MiB on v5e/v6e only if tiles grow.
        compiler_params=pltpu.CompilerParams(
            vmem_limit_bytes=32 * 1024 * 1024,
        ),
    )(*args)

    out = out_flat.reshape(T, B_pad, O_pad)[:, :B, :O].transpose(1, 0, 2)  # (B, T, O)
    hidden_out = hT[:, :B, :H]                                             # (L, B, H)
    return out, hidden_out


# ----------------------------------------------------------------------------
# Pure-JAX reference (for correctness check)
# ----------------------------------------------------------------------------
def rdecoder_ref(inp, dim, hidden, gru_params, lin_w, lin_b):
    B, C = inp.shape
    T = int(dim)
    layer_in = jnp.broadcast_to(inp[:, None, :], (B, T, C)).astype(jnp.float32)
    hs = []
    for l, (w_ih, w_hh, b_ih, b_hh) in enumerate(gru_params):
        H = w_hh.shape[1]
        h = hidden[l].astype(jnp.float32)
        ys = []
        for t in range(T):
            x_t = layer_in[:, t, :]
            gi = x_t @ w_ih.T + b_ih
            gh = h @ w_hh.T + b_hh
            r = jax.nn.sigmoid(gi[:, :H] + gh[:, :H])
            z = jax.nn.sigmoid(gi[:, H:2 * H] + gh[:, H:2 * H])
            n = jnp.tanh(gi[:, 2 * H:] + r * gh[:, 2 * H:])
            h = (1.0 - z) * n + z * h
            ys.append(h)
        layer_in = jnp.stack(ys, axis=1)
        hs.append(h)
    out = layer_in @ lin_w.T + lin_b
    return out, jnp.stack(hs, axis=0)


# ----------------------------------------------------------------------------
# Main
# ----------------------------------------------------------------------------
if __name__ == "__main__":
    B = 2
    T = 8              # `dim` argument of RDecoder.forward
    num_classes = 4    # GRU input size
    hidden_size = 32
    num_layers = 2
    output_size = 4

    key = jax.random.PRNGKey(0)
    k_in, k_h, k_p = jax.random.split(key, 3)

    inp = jax.random.normal(k_in, (B, num_classes), dtype=jnp.float32)
    hidden0 = jax.random.normal(k_h, (num_layers, B, hidden_size), dtype=jnp.float32)

    # PyTorch default init: U(-k, k), k = 1/sqrt(hidden_size).
    bound = 1.0 / np.sqrt(hidden_size)
    gru_params = []
    for l in range(num_layers):
        in_sz = num_classes if l == 0 else hidden_size
        k_p, k1, k2, k3, k4 = jax.random.split(k_p, 5)
        w_ih = jax.random.uniform(k1, (3 * hidden_size, in_sz), jnp.float32, -bound, bound)
        w_hh = jax.random.uniform(k2, (3 * hidden_size, hidden_size), jnp.float32, -bound, bound)
        b_ih = jax.random.uniform(k3, (3 * hidden_size,), jnp.float32, -bound, bound)
        b_hh = jax.random.uniform(k4, (3 * hidden_size,), jnp.float32, -bound, bound)
        gru_params.append((w_ih, w_hh, b_ih, b_hh))

    k_p, k5, k6 = jax.random.split(k_p, 3)
    lin_w = jax.random.uniform(k5, (output_size, hidden_size), jnp.float32, -bound, bound)
    lin_b = jax.random.uniform(k6, (output_size,), jnp.float32, -bound, bound)

    # One-time parameter prep (padding / transposition hoisted out of per-call path).
    prepared, meta = prepare_rdecoder_params(gru_params, lin_w, lin_b, num_classes)

    # dim (argnum 1) and meta (argnum 4, hashable NamedTuple of ints) are static.
    fwd = jax.jit(rdecoder_forward, static_argnums=(1, 4))

    out, hT = fwd(inp, T, hidden0, prepared, meta)
    out = jax.block_until_ready(out)
    hT = jax.block_until_ready(hT)

    out_ref, hT_ref = rdecoder_ref(inp, T, hidden0, gru_params, lin_w, lin_b)
    np.testing.assert_allclose(np.asarray(out), np.asarray(out_ref), rtol=1e-5, atol=1e-5)
    np.testing.assert_allclose(np.asarray(hT), np.asarray(hT_ref), rtol=1e-5, atol=1e-5)

    assert out.shape == (B, T, output_size)
    assert hT.shape == (num_layers, B, hidden_size)

    print("KERNEL_OK")
</pallas_src>

<mosaic_0001>
module attributes {stable_mosaic.version = 11 : i64} {
  func.func @kernel(%arg0: memref<8x128xf32, #tpu.memory_space<vmem>>, %arg1: memref<2x8x128xf32, #tpu.memory_space<vmem>>, %arg2: memref<128x384xf32, #tpu.memory_space<vmem>>, %arg3: memref<128x384xf32, #tpu.memory_space<vmem>>, %arg4: memref<1x384xf32, #tpu.memory_space<vmem>>, %arg5: memref<1x128xf32, #tpu.memory_space<vmem>>, %arg6: memref<128x384xf32, #tpu.memory_space<vmem>>, %arg7: memref<128x384xf32, #tpu.memory_space<vmem>>, %arg8: memref<1x384xf32, #tpu.memory_space<vmem>>, %arg9: memref<1x128xf32, #tpu.memory_space<vmem>>, %arg10: memref<128x128xf32, #tpu.memory_space<vmem>>, %arg11: memref<1x128xf32, #tpu.memory_space<vmem>>, %arg12: memref<64x128xf32, #tpu.memory_space<vmem>>, %arg13: memref<2x8x128xf32, #tpu.memory_space<vmem>>, %arg14: memref<64x128xf32, #tpu.memory_space<vmem>>, %arg15: memref<64x384xf32, #tpu.memory_space<vmem>>) attributes {dimension_semantics = [], scalar_prefetch = 0 : i64, scratch_operands = 2 : i64, tpu.core_type = #tpu.core_type<tc>} {
    %c0 = arith.constant 0 : index
    %c0_0 = arith.constant 0 : index
    %0 = vector.load %arg3[%c0, %c0_0] : memref<128x384xf32, #tpu.memory_space<vmem>>, vector<128x384xf32>
    %c0_1 = arith.constant 0 : index
    %c0_2 = arith.constant 0 : index
    %1 = vector.load %arg5[%c0_1, %c0_2] : memref<1x128xf32, #tpu.memory_space<vmem>>, vector<1x128xf32>
    %2 = vector.shape_cast %1 : vector<1x128xf32> to vector<1x128xf32>
    %3 = vector.broadcast %2 : vector<1x128xf32> to vector<8x128xf32>
    %c0_3 = arith.constant 0 : index
    %c0_4 = arith.constant 0 : index
    %4 = vector.load %arg0[%c0_3, %c0_4] : memref<8x128xf32, #tpu.memory_space<vmem>>, vector<8x128xf32>
    %c0_5 = arith.constant 0 : index
    %c0_6 = arith.constant 0 : index
    %5 = vector.load %arg2[%c0_5, %c0_6] : memref<128x384xf32, #tpu.memory_space<vmem>>, vector<128x384xf32>
    %cst = arith.constant dense<0.000000e+00> : vector<8x384xf32>
    %6 = tpu.matmul %4, %5, %cst {dimension_numbers = #tpu.dot_dimension_numbers<[1], [0], [0], [1], [0, 0, 1, 1], [], []>} : vector<8x128xf32>, vector<128x384xf32>, vector<8x384xf32> -> vector<8x384xf32>
    %c0_7 = arith.constant 0 : index
    %c0_8 = arith.constant 0 : index
    %7 = vector.load %arg4[%c0_7, %c0_8] : memref<1x384xf32, #tpu.memory_space<vmem>>, vector<1x384xf32>
    %8 = vector.broadcast %7 : vector<1x384xf32> to vector<8x384xf32>
    %9 = arith.addf %6, %8 : vector<8x384xf32>
    %c0_9 = arith.constant 0 : index
    %c0_10 = arith.constant 0 : index
    %c0_11 = arith.constant 0 : index
    %10 = vector.load %arg1[%c0_9, %c0_10, %c0_11] : memref<2x8x128xf32, #tpu.memory_space<vmem>>, vector<1x8x128xf32>
    %11 = vector.shape_cast %10 : vector<1x8x128xf32> to vector<8x128xf32>
    %c0_i32 = arith.constant 0 : i32
    %c8_i32 = arith.constant 8 : i32
    %12 = arith.muli %c0_i32, %c8_i32 : i32
    %13 = tpu.assume_multiple %12, 8 : i32
    %cst_12 = arith.constant dense<0.000000e+00> : vector<8x384xf32>
    %14 = tpu.matmul %11, %0, %cst_12 {dimension_numbers = #tpu.dot_dimension_numbers<[1], [0], [0], [1], [0, 0, 1, 1], [], []>} : vector<8x128xf32>, vector<128x384xf32>, vector<8x384xf32> -> vector<8x384xf32>
    %15 = vector.extract_strided_slice %9 {offsets = [0, 0], sizes = [8, 128], strides = [1, 1]} : vector<8x384xf32> to vector<8x128xf32>
    %16 = vector.extract_strided_slice %14 {offsets = [0, 0], sizes = [8, 128], strides = [1, 1]} : vector<8x384xf32> to vector<8x128xf32>
    %17 = arith.addf %15, %16 : vector<8x128xf32>
    %18 = arith.negf %17 : vector<8x128xf32>
    %19 = math.exp %18 : vector<8x128xf32>
    %cst_13 = arith.constant 1.000000e+00 : f32
    %20 = vector.broadcast %cst_13 : f32 to vector<8x128xf32>
    %21 = arith.addf %20, %19 : vector<8x128xf32>
    %22 = arith.divf %20, %21 : vector<8x128xf32>
    %23 = vector.extract_strided_slice %9 {offsets = [0, 128], sizes = [8, 128], strides = [1, 1]} : vector<8x384xf32> to vector<8x128xf32>
    %24 = vector.extract_strided_slice %14 {offsets = [0, 128], sizes = [8, 128], strides = [1, 1]} : vector<8x384xf32> to vector<8x128xf32>
    %25 = arith.addf %23, %24 : vector<8x128xf32>
    %26 = arith.negf %25 : vector<8x128xf32>
    %27 = math.exp %26 : vector<8x128xf32>
    %cst_14 = arith.constant 1.000000e+00 : f32
    %28 = vector.broadcast %cst_14 : f32 to vector<8x128xf32>
    %29 = arith.addf %28, %27 : vector<8x128xf32>
    %30 = arith.divf %28, %29 : vector<8x128xf32>
    %31 = vector.extract_strided_slice %9 {offsets = [0, 256], sizes = [8, 128], strides = [1, 1]} : vector<8x384xf32> to vector<8x128xf32>
    %32 = vector.extract_strided_slice %14 {offsets = [0, 256], sizes = [8, 128], strides = [1, 1]} : vector<8x384xf32> to vector<8x128xf32>
    %33 = arith.addf %32, %3 : vector<8x128xf32>
    %34 = arith.mulf %22, %33 : vector<8x128xf32>
    %35 = arith.addf %31, %34 : vector<8x128xf32>
    %36 = math.tanh %35 : vector<8x128xf32>
    %37 = arith.subf %11, %36 : vector<8x128xf32>
    %38 = arith.mulf %30, %37 : vector<8x128xf32>
    %39 = arith.addf %36, %38 : vector<8x128xf32>
    %40 = arith.index_cast %13 : i32 to index
    %c0_15 = arith.constant 0 : index
    %41 = vector.load %arg14[%40, %c0_15] : memref<64x128xf32, #tpu.memory_space<vmem>>, vector<8x128xf32>
    tpu.vector_store %arg14[%40, %c0_15], %39 {strides = array<i32>} : memref<64x128xf32, #tpu.memory_space<vmem>>, vector<8x128xf32>,
    %c1_i32 = arith.constant 1 : i32
    %c8_i32_16 = arith.constant 8 : i32
    %42 = arith.muli %c1_i32, %c8_i32_16 : i32
    %43 = tpu.assume_multiple %42, 8 : i32
    %cst_17 = arith.constant dense<0.000000e+00> : vector<8x384xf32>
    %44 = tpu.matmul %39, %0, %cst_17 {dimension_numbers = #tpu.dot_dimension_numbers<[1], [0], [0], [1], [0, 0, 1, 1], [], []>} : vector<8x128xf32>, vector<128x384xf32>, vector<8x384xf32> -> vector<8x384xf32>
    %45 = vector.extract_strided_slice %9 {offsets = [0, 0], sizes = [8, 128], strides = [1, 1]} : vector<8x384xf32> to vector<8x128xf32>
    %46 = vector.extract_strided_slice %44 {offsets = [0, 0], sizes = [8, 128], strides = [1, 1]} : vector<8x384xf32> to vector<8x128xf32>
    %47 = arith.addf %45, %46 : vector<8x128xf32>
    %48 = arith.negf %47 : vector<8x128xf32>
    %49 = math.exp %48 : vector<8x128xf32>
    %cst_18 = arith.constant 1.000000e+00 : f32
    %50 = vector.broadcast %cst_18 : f32 to vector<8x128xf32>
    %51 = arith.addf %50, %49 : vector<8x128xf32>
    %52 = arith.divf %50, %51 : vector<8x128xf32>
    %53 = vector.extract_strided_slice %9 {offsets = [0, 128], sizes = [8, 128], strides = [1, 1]} : vector<8x384xf32> to vector<8x128xf32>
    %54 = vector.extract_strided_slice %44 {offsets = [0, 128], sizes = [8, 128], strides = [1, 1]} : vector<8x384xf32> to vector<8x128xf32>
    %55 = arith.addf %53, %54 : vector<8x128xf32>
    %56 = arith.negf %55 : vector<8x128xf32>
    %57 = math.exp %56 : vector<8x128xf32>
    %cst_19 = arith.constant 1.000000e+00 : f32
    %58 = vector.broadcast %cst_19 : f32 to vector<8x128xf32>
    %59 = arith.addf %58, %57 : vector<8x128xf32>
    %60 = arith.divf %58, %59 : vector<8x128xf32>
    %61 = vector.extract_strided_slice %9 {offsets = [0, 256], sizes = [8, 128], strides = [1, 1]} : vector<8x384xf32> to vector<8x128xf32>
    %62 = vector.extract_strided_slice %44 {offsets = [0, 256], sizes = [8, 128], strides = [1, 1]} : vector<8x384xf32> to vector<8x128xf32>
    %63 = arith.addf %62, %3 : vector<8x128xf32>
    %64 = arith.mulf %52, %63 : vector<8x128xf32>
    %65 = arith.addf %61, %64 : vector<8x128xf32>
    %66 = math.tanh %65 : vector<8x128xf32>
    %67 = arith.subf %39, %66 : vector<8x128xf32>
    %68 = arith.mulf %60, %67 : vector<8x128xf32>
    %69 = arith.addf %66, %68 : vector<8x128xf32>
    %70 = arith.index_cast %43 : i32 to index
    %c0_20 = arith.constant 0 : index
    %71 = vector.load %arg14[%70, %c0_20] : memref<64x128xf32, #tpu.memory_space<vmem>>, vector<8x128xf32>
    tpu.vector_store %arg14[%70, %c0_20], %69 {strides = array<i32>} : memref<64x128xf32, #tpu.memory_space<vmem>>, vector<8x128xf32>,
    %c2_i32 = arith.constant 2 : i32
    %c8_i32_21 = arith.constant 8 : i32
    %72 = arith.muli %c2_i32, %c8_i32_21 : i32
    %73 = tpu.assume_multiple %72, 8 : i32
    %cst_22 = arith.constant dense<0.000000e+00> : vector<8x384xf32>
    %74 = tpu.matmul %69, %0, %cst_22 {dimension_numbers = #tpu.dot_dimension_numbers<[1], [0], [0], [1], [0, 0, 1, 1], [], []>} : vector<8x128xf32>, vector<128x384xf32>, vector<8x384xf32> -> vector<8x384xf32>
    %75 = vector.extract_strided_slice %9 {offsets = [0, 0], sizes = [8, 128], strides = [1, 1]} : vector<8x384xf32> to vector<8x128xf32>
    %76 = vector.extract_strided_slice %74 {offsets = [0, 0], sizes = [8, 128], strides = [1, 1]} : vector<8x384xf32> to vector<8x128xf32>
    %77 = arith.addf %75, %76 : vector<8x128xf32>
    %78 = arith.negf %77 : vector<8x128xf32>
    %79 = math.exp %78 : vector<8x128xf32>
    %cst_23 = arith.constant 1.000000e+00 : f32
    %80 = vector.broadcast %cst_23 : f32 to vector<8x128xf32>
    %81 = arith.addf %80, %79 : vector<8x128xf32>
    %82 = arith.divf %80, %81 : vector<8x128xf32>
    %83 = vector.extract_strided_slice %9 {offsets = [0, 128], sizes = [8, 128], strides = [1, 1]} : vector<8x384xf32> to vector<8x128xf32>
    %84 = vector.extract_strided_slice %74 {offsets = [0, 128], sizes = [8, 128], strides = [1, 1]} : vector<8x384xf32> to vector<8x128xf32>
    %85 = arith.addf %83, %84 : vector<8x128xf32>
    %86 = arith.negf %85 : vector<8x128xf32>
    %87 = math.exp %86 : vector<8x128xf32>
    %cst_24 = arith.constant 1.000000e+00 : f32
    %88 = vector.broadcast %cst_24 : f32 to vector<8x128xf32>
    %89 = arith.addf %88, %87 : vector<8x128xf32>
    %90 = arith.divf %88, %89 : vector<8x128xf32>
    %91 = vector.extract_strided_slice %9 {offsets = [0, 256], sizes = [8, 128], strides = [1, 1]} : vector<8x384xf32> to vector<8x128xf32>
    %92 = vector.extract_strided_slice %74 {offsets = [0, 256], sizes = [8, 128], strides = [1, 1]} : vector<8x384xf32> to vector<8x128xf32>
    %93 = arith.addf %92, %3 : vector<8x128xf32>
    %94 = arith.mulf %82, %93 : vector<8x128xf32>
    %95 = arith.addf %91, %94 : vector<8x128xf32>
    %96 = math.tanh %95 : vector<8x128xf32>
    %97 = arith.subf %69, %96 : vector<8x128xf32>
    %98 = arith.mulf %90, %97 : vector<8x128xf32>
    %99 = arith.addf %96, %98 : vector<8x128xf32>
    %100 = arith.index_cast %73 : i32 to index
    %c0_25 = arith.constant 0 : index
    %101 = vector.load %arg14[%100, %c0_25] : memref<64x128xf32, #tpu.memory_space<vmem>>, vector<8x128xf32>
    tpu.vector_store %arg14[%100, %c0_25], %99 {strides = array<i32>} : memref<64x128xf32, #tpu.memory_space<vmem>>, vector<8x128xf32>,
    %c3_i32 = arith.constant 3 : i32
    %c8_i32_26 = arith.constant 8 : i32
    %102 = arith.muli %c3_i32, %c8_i32_26 : i32
    %103 = tpu.assume_multiple %102, 8 : i32
    %cst_27 = arith.constant dense<0.000000e+00> : vector<8x384xf32>
    %104 = tpu.matmul %99, %0, %cst_27 {dimension_numbers = #tpu.dot_dimension_numbers<[1], [0], [0], [1], [0, 0, 1, 1], [], []>} : vector<8x128xf32>, vector<128x384xf32>, vector<8x384xf32> -> vector<8x384xf32>
    %105 = vector.extract_strided_slice %9 {offsets = [0, 0], sizes = [8, 128], strides = [1, 1]} : vector<8x384xf32> to vector<8x128xf32>
    %106 = vector.extract_strided_slice %104 {offsets = [0, 0], sizes = [8, 128], strides = [1, 1]} : vector<8x384xf32> to vector<8x128xf32>
    %107 = arith.addf %105, %106 : vector<8x128xf32>
    %108 = arith.negf %107 : vector<8x128xf32>
    %109 = math.exp %108 : vector<8x128xf32>
    %cst_28 = arith.constant 1.000000e+00 : f32
    %110 = vector.broadcast %cst_28 : f32 to vector<8x128xf32>
    %111 = arith.addf %110, %109 : vector<8x128xf32>
    %112 = arith.divf %110, %111 : vector<8x128xf32>
    %113 = vector.extract_strided_slice %9 {offsets = [0, 128], sizes = [8, 128], strides = [1, 1]} : vector<8x384xf32> to vector<8x128xf32>
    %114 = vector.extract_strided_slice %104 {offsets = [0, 128], sizes = [8, 128], strides = [1, 1]} : vector<8x384xf32> to vector<8x128xf32>
    %115 = arith.addf %113, %114 : vector<8x128xf32>
    %116 = arith.negf %115 : vector<8x128xf32>
    %117 = math.exp %116 : vector<8x128xf32>
    %cst_29 = arith.constant 1.000000e+00 : f32
    %118 = vector.broadcast %cst_29 : f32 to vector<8x128xf32>
    %119 = arith.addf %118, %117 : vector<8x128xf32>
    %120 = arith.divf %118, %119 : vector<8x128xf32>
    %121 = vector.extract_strided_slice %9 {offsets = [0, 256], sizes = [8, 128], strides = [1, 1]} : vector<8x384xf32> to vector<8x128xf32>
    %122 = vector.extract_strided_slice %104 {offsets = [0, 256], sizes = [8, 128], strides = [1, 1]} : vector<8x384xf32> to vector<8x128xf32>
    %123 = arith.addf %122, %3 : vector<8x128xf32>
    %124 = arith.mulf %112, %123 : vector<8x128xf32>
    %125 = arith.addf %121, %124 : vector<8x128xf32>
    %126 = math.tanh %125 : vector<8x128xf32>
    %127 = arith.subf %99, %126 : vector<8x128xf32>
    %128 = arith.mulf %120, %127 : vector<8x128xf32>
    %129 = arith.addf %126, %128 : vector<8x128xf32>
    %130 = arith.index_cast %103 : i32 to index
    %c0_30 = arith.constant 0 : index
    %131 = vector.load %arg14[%130, %c0_30] : memref<64x128xf32, #tpu.memory_space<vmem>>, vector<8x128xf32>
    tpu.vector_store %arg14[%130, %c0_30], %129 {strides = array<i32>} : memref<64x128xf32, #tpu.memory_space<vmem>>, vector<8x128xf32>,
    %c4_i32 = arith.constant 4 : i32
    %c8_i32_31 = arith.constant 8 : i32
    %132 = arith.muli %c4_i32, %c8_i32_31 : i32
    %133 = tpu.assume_multiple %132, 8 : i32
    %cst_32 = arith.constant dense<0.000000e+00> : vector<8x384xf32>
    %134 = tpu.matmul %129, %0, %cst_32 {dimension_numbers = #tpu.dot_dimension_numbers<[1], [0], [0], [1], [0, 0, 1, 1], [], []>} : vector<8x128xf32>, vector<128x384xf32>, vector<8x384xf32> -> vector<8x384xf32>
    %135 = vector.extract_strided_slice %9 {offsets = [0, 0], sizes = [8, 128], strides = [1, 1]} : vector<8x384xf32> to vector<8x128xf32>
    %136 = vector.extract_strided_slice %134 {offsets = [0, 0], sizes = [8, 128], strides = [1, 1]} : vector<8x384xf32> to vector<8x128xf32>
    %137 = arith.addf %135, %136 : vector<8x128xf32>
    %138 = arith.negf %137 : vector<8x128xf32>
    %139 = math.exp %138 : vector<8x128xf32>
    %cst_33 = arith.constant 1.000000e+00 : f32
    %140 = vector.broadcast %cst_33 : f32 to vector<8x128xf32>
    %141 = arith.addf %140, %139 : vector<8x128xf32>
    %142 = arith.divf %140, %141 : vector<8x128xf32>
    %143 = vector.extract_strided_slice %9 {offsets = [0, 128], sizes = [8, 128], strides = [1, 1]} : vector<8x384xf32> to vector<8x128xf32>
    %144 = vector.extract_strided_slice %134 {offsets = [0, 128], sizes = [8, 128], strides = [1, 1]} : vector<8x384xf32> to vector<8x128xf32>
    %145 = arith.addf %143, %144 : vector<8x128xf32>
    %146 = arith.negf %145 : vector<8x128xf32>
    %147 = math.exp %146 : vector<8x128xf32>
    %cst_34 = arith.constant 1.000000e+00 : f32
    %148 = vector.broadcast %cst_34 : f32 to vector<8x128xf32>
    %149 = arith.addf %148, %147 : vector<8x128xf32>
    %150 = arith.divf %148, %149 : vector<8x128xf32>
    %151 = vector.extract_strided_slice %9 {offsets = [0, 256], sizes = [8, 128], strides = [1, 1]} : vector<8x384xf32> to vector<8x128xf32>
    %152 = vector.extract_strided_slice %134 {offsets = [0, 256], sizes = [8, 128], strides = [1, 1]} : vector<8x384xf32> to vector<8x128xf32>
    %153 = arith.addf %152, %3 : vector<8x128xf32>
    %154 = arith.mulf %142, %153 : vector<8x128xf32>
    %155 = arith.addf %151, %154 : vector<8x128xf32>
    %156 = math.tanh %155 : vector<8x128xf32>
    %157 = arith.subf %129, %156 : vector<8x128xf32>
    %158 = arith.mulf %150, %157 : vector<8x128xf32>
    %159 = arith.addf %156, %158 : vector<8x128xf32>
    %160 = arith.index_cast %133 : i32 to index
    %c0_35 = arith.constant 0 : index
    %161 = vector.load %arg14[%160, %c0_35] : memref<64x128xf32, #tpu.memory_space<vmem>>, vector<8x128xf32>
    tpu.vector_store %arg14[%160, %c0_35], %159 {strides = array<i32>} : memref<64x128xf32, #tpu.memory_space<vmem>>, vector<8x128xf32>,
    %c5_i32 = arith.constant 5 : i32
    %c8_i32_36 = arith.constant 8 : i32
    %162 = arith.muli %c5_i32, %c8_i32_36 : i32
    %163 = tpu.assume_multiple %162, 8 : i32
    %cst_37 = arith.constant dense<0.000000e+00> : vector<8x384xf32>
    %164 = tpu.matmul %159, %0, %cst_37 {dimension_numbers = #tpu.dot_dimension_numbers<[1], [0], [0], [1], [0, 0, 1, 1], [], []>} : vector<8x128xf32>, vector<128x384xf32>, vector<8x384xf32> -> vector<8x384xf32>
    %165 = vector.extract_strided_slice %9 {offsets = [0, 0], sizes = [8, 128], strides = [1, 1]} : vector<8x384xf32> to vector<8x128xf32>
    %166 = vector.extract_strided_slice %164 {offsets = [0, 0], sizes = [8, 128], strides = [1, 1]} : vector<8x384xf32> to vector<8x128xf32>
    %167 = arith.addf %165, %166 : vector<8x128xf32>
    %168 = arith.negf %167 : vector<8x128xf32>
    %169 = math.exp %168 : vector<8x128xf32>
    %cst_38 = arith.constant 1.000000e+00 : f32
    %170 = vector.broadcast %cst_38 : f32 to vector<8x128xf32>
    %171 = arith.addf %170, %169 : vector<8x128xf32>
    %172 = arith.divf %170, %171 : vector<8x128xf32>
    %173 = vector.extract_strided_slice %9 {offsets = [0, 128], sizes = [8, 128], strides = [1, 1]} : vector<8x384xf32> to vector<8x128xf32>
    %174 = vector.extract_strided_slice %164 {offsets = [0, 128], sizes = [8, 128], strides = [1, 1]} : vector<8x384xf32> to vector<8x128xf32>
    %175 = arith.addf %173, %174 : vector<8x128xf32>
    %176 = arith.negf %175 : vector<8x128xf32>
    %177 = math.exp %176 : vector<8x128xf32>
    %cst_39 = arith.constant 1.000000e+00 : f32
    %178 = vector.broadcast %cst_39 : f32 to vector<8x128xf32>
    %179 = arith.addf %178, %177 : vector<8x128xf32>
    %180 = arith.divf %178, %179 : vector<8x128xf32>
    %181 = vector.extract_strided_slice %9 {offsets = [0, 256], sizes = [8, 128], strides = [1, 1]} : vector<8x384xf32> to vector<8x128xf32>
    %182 = vector.extract_strided_slice %164 {offsets = [0, 256], sizes = [8, 128], strides = [1, 1]} : vector<8x384xf32> to vector<8x128xf32>
    %183 = arith.addf %182, %3 : vector<8x128xf32>
    %184 = arith.mulf %172, %183 : vector<8x128xf32>
    %185 = arith.addf %181, %184 : vector<8x128xf32>
    %186 = math.tanh %185 : vector<8x128xf32>
    %187 = arith.subf %159, %186 : vector<8x128xf32>
    %188 = arith.mulf %180, %187 : vector<8x128xf32>
    %189 = arith.addf %186, %188 : vector<8x128xf32>
    %190 = arith.index_cast %163 : i32 to index
    %c0_40 = arith.constant 0 : index
    %191 = vector.load %arg14[%190, %c0_40] : memref<64x128xf32, #tpu.memory_space<vmem>>, vector<8x128xf32>
    tpu.vector_store %arg14[%190, %c0_40], %189 {strides = array<i32>} : memref<64x128xf32, #tpu.memory_space<vmem>>, vector<8x128xf32>,
    %c6_i32 = arith.constant 6 : i32
    %c8_i32_41 = arith.constant 8 : i32
    %192 = arith.muli %c6_i32, %c8_i32_41 : i32
    %193 = tpu.assume_multiple %192, 8 : i32
    %cst_42 = arith.constant dense<0.000000e+00> : vector<8x384xf32>
    %194 = tpu.matmul %189, %0, %cst_42 {dimension_numbers = #tpu.dot_dimension_numbers<[1], [0], [0], [1], [0, 0, 1, 1], [], []>} : vector<8x128xf32>, vector<128x384xf32>, vector<8x384xf32> -> vector<8x384xf32>
    %195 = vector.extract_strided_slice %9 {offsets = [0, 0], sizes = [8, 128], strides = [1, 1]} : vector<8x384xf32> to vector<8x128xf32>
    %196 = vector.extract_strided_slice %194 {offsets = [0, 0], sizes = [8, 128], strides = [1, 1]} : vector<8x384xf32> to vector<8x128xf32>
    %197 = arith.addf %195, %196 : vector<8x128xf32>
    %198 = arith.negf %197 : vector<8x128xf32>
    %199 = math.exp %198 : vector<8x128xf32>
    %cst_43 = arith.constant 1.000000e+00 : f32
    %200 = vector.broadcast %cst_43 : f32 to vector<8x128xf32>
    %201 = arith.addf %200, %199 : vector<8x128xf32>
    %202 = arith.divf %200, %201 : vector<8x128xf32>
    %203 = vector.extract_strided_slice %9 {offsets = [0, 128], sizes = [8, 128], strides = [1, 1]} : vector<8x384xf32> to vector<8x128xf32>
    %204 = vector.extract_strided_slice %194 {offsets = [0, 128], sizes = [8, 128], strides = [1, 1]} : vector<8x384xf32> to vector<8x128xf32>
    %205 = arith.addf %203, %204 : vector<8x128xf32>
    %206 = arith.negf %205 : vector<8x128xf32>
    %207 = math.exp %206 : vector<8x128xf32>
    %cst_44 = arith.constant 1.000000e+00 : f32
    %208 = vector.broadcast %cst_44 : f32 to vector<8x128xf32>
    %209 = arith.addf %208, %207 : vector<8x128xf32>
    %210 = arith.divf %208, %209 : vector<8x128xf32>
    %211 = vector.extract_strided_slice %9 {offsets = [0, 256], sizes = [8, 128], strides = [1, 1]} : vector<8x384xf32> to vector<8x128xf32>
    %212 = vector.extract_strided_slice %194 {offsets = [0, 256], sizes = [8, 128], strides = [1, 1]} : vector<8x384xf32> to vector<8x128xf32>
    %213 = arith.addf %212, %3 : vector<8x128xf32>
    %214 = arith.mulf %202, %213 : vector<8x128xf32>
    %215 = arith.addf %211, %214 : vector<8x128xf32>
    %216 = math.tanh %215 : vector<8x128xf32>
    %217 = arith.subf %189, %216 : vector<8x128xf32>
    %218 = arith.mulf %210, %217 : vector<8x128xf32>
    %219 = arith.addf %216, %218 : vector<8x128xf32>
    %220 = arith.index_cast %193 : i32 to index
    %c0_45 = arith.constant 0 : index
    %221 = vector.load %arg14[%220, %c0_45] : memref<64x128xf32, #tpu.memory_space<vmem>>, vector<8x128xf32>
    tpu.vector_store %arg14[%220, %c0_45], %219 {strides = array<i32>} : memref<64x128xf32, #tpu.memory_space<vmem>>, vector<8x128xf32>,
    %c7_i32 = arith.constant 7 : i32
    %c8_i32_46 = arith.constant 8 : i32
    %222 = arith.muli %c7_i32, %c8_i32_46 : i32
    %223 = tpu.assume_multiple %222, 8 : i32
    %cst_47 = arith.constant dense<0.000000e+00> : vector<8x384xf32>
    %224 = tpu.matmul %219, %0, %cst_47 {dimension_numbers = #tpu.dot_dimension_numbers<[1], [0], [0], [1], [0, 0, 1, 1], [], []>} : vector<8x128xf32>, vector<128x384xf32>, vector<8x384xf32> -> vector<8x384xf32>
    %225 = vector.extract_strided_slice %9 {offsets = [0, 0], sizes = [8, 128], strides = [1, 1]} : vector<8x384xf32> to vector<8x128xf32>
    %226 = vector.extract_strided_slice %224 {offsets = [0, 0], sizes = [8, 128], strides = [1, 1]} : vector<8x384xf32> to vector<8x128xf32>
    %227 = arith.addf %225, %226 : vector<8x128xf32>
    %228 = arith.negf %227 : vector<8x128xf32>
    %229 = math.exp %228 : vector<8x128xf32>
    %cst_48 = arith.constant 1.000000e+00 : f32
    %230 = vector.broadcast %cst_48 : f32 to vector<8x128xf32>
    %231 = arith.addf %230, %229 : vector<8x128xf32>
    %232 = arith.divf %230, %231 : vector<8x128xf32>
    %233 = vector.extract_strided_slice %9 {offsets = [0, 128], sizes = [8, 128], strides = [1, 1]} : vector<8x384xf32> to vector<8x128xf32>
    %234 = vector.extract_strided_slice %224 {offsets = [0, 128], sizes = [8, 128], strides = [1, 1]} : vector<8x384xf32> to vector<8x128xf32>
    %235 = arith.addf %233, %234 : vector<8x128xf32>
    %236 = arith.negf %235 : vector<8x128xf32>
    %237 = math.exp %236 : vector<8x128xf32>
    %cst_49 = arith.constant 1.000000e+00 : f32
    %238 = vector.broadcast %cst_49 : f32 to vector<8x128xf32>
    %239 = arith.addf %238, %237 : vector<8x128xf32>
    %240 = arith.divf %238, %239 : vector<8x128xf32>
    %241 = vector.extract_strided_slice %9 {offsets = [0, 256], sizes = [8, 128], strides = [1, 1]} : vector<8x384xf32> to vector<8x128xf32>
    %242 = vector.extract_strided_slice %224 {offsets = [0, 256], sizes = [8, 128], strides = [1, 1]} : vector<8x384xf32> to vector<8x128xf32>
    %243 = arith.addf %242, %3 : vector<8x128xf32>
    %244 = arith.mulf %232, %243 : vector<8x128xf32>
    %245 = arith.addf %241, %244 : vector<8x128xf32>
    %246 = math.tanh %245 : vector<8x128xf32>
    %247 = arith.subf %219, %246 : vector<8x128xf32>
    %248 = arith.mulf %240, %247 : vector<8x128xf32>
    %249 = arith.addf %246, %248 : vector<8x128xf32>
    %250 = arith.index_cast %223 : i32 to index
    %c0_50 = arith.constant 0 : index
    %251 = vector.load %arg14[%250, %c0_50] : memref<64x128xf32, #tpu.memory_space<vmem>>, vector<8x128xf32>
    tpu.vector_store %arg14[%250, %c0_50], %249 {strides = array<i32>} : memref<64x128xf32, #tpu.memory_space<vmem>>, vector<8x128xf32>,
    %c8_i32_51 = arith.constant 8 : i32
    %c0_52 = arith.constant 0 : index
    %c0_53 = arith.constant 0 : index
    %c0_54 = arith.constant 0 : index
    %252 = vector.load %arg13[%c0_52, %c0_53, %c0_54] : memref<2x8x128xf32, #tpu.memory_space<vmem>>, vector<1x8x128xf32>
    %253 = vector.shape_cast %252 : vector<1x8x128xf32> to vector<8x128xf32>
    %254 = vector.shape_cast %249 : vector<8x128xf32> to vector<1x8x128xf32>
    tpu.vector_store %arg13[%c0_52, %c0_53, %c0_54], %254 {strides = array<i32>} : memref<2x8x128xf32, #tpu.memory_space<vmem>>, vector<1x8x128xf32>,
    %c0_55 = arith.constant 0 : index
    %c0_56 = arith.constant 0 : index
    %255 = vector.load %arg7[%c0_55, %c0_56] : memref<128x384xf32, #tpu.memory_space<vmem>>, vector<128x384xf32>
    %c0_57 = arith.constant 0 : index
    %c0_58 = arith.constant 0 : index
    %256 = vector.load %arg9[%c0_57, %c0_58] : memref<1x128xf32, #tpu.memory_space<vmem>>, vector<1x128xf32>
    %257 = vector.shape_cast %256 : vector<1x128xf32> to vector<1x128xf32>
    %258 = vector.broadcast %257 : vector<1x128xf32> to vector<8x128xf32>
    %c0_59 = arith.constant 0 : index
    %c0_60 = arith.constant 0 : index
    %259 = vector.load %arg14[%c0_59, %c0_60] : memref<64x128xf32, #tpu.memory_space<vmem>>, vector<64x128xf32>
    %c0_61 = arith.constant 0 : index
    %c0_62 = arith.constant 0 : index
    %260 = vector.load %arg6[%c0_61, %c0_62] : memref<128x384xf32, #tpu.memory_space<vmem>>, vector<128x384xf32>
    %cst_63 = arith.constant dense<0.000000e+00> : vector<64x384xf32>
    %261 = tpu.matmul %259, %260, %cst_63 {dimension_numbers = #tpu.dot_dimension_numbers<[1], [0], [0], [1], [0, 0, 1, 1], [], []>} : vector<64x128xf32>, vector<128x384xf32>, vector<64x384xf32> -> vector<64x384xf32>
    %c0_64 = arith.constant 0 : index
    %c0_65 = arith.constant 0 : index
    %262 = vector.load %arg8[%c0_64, %c0_65] : memref<1x384xf32, #tpu.memory_space<vmem>>, vector<1x384xf32>
    %263 = vector.broadcast %262 : vector<1x384xf32> to vector<64x384xf32>
    %264 = arith.addf %261, %263 : vector<64x384xf32>
    %c0_66 = arith.constant 0 : index
    %c0_67 = arith.constant 0 : index
    %265 = vector.load %arg15[%c0_66, %c0_67] : memref<64x384xf32, #tpu.memory_space<vmem>>, vector<64x384xf32>
    tpu.vector_store %arg15[%c0_66, %c0_67], %264 {strides = array<i32>} : memref<64x384xf32, #tpu.memory_space<vmem>>, vector<64x384xf32>,
    %c1 = arith.constant 1 : index
    %c0_68 = arith.constant 0 : index
    %c0_69 = arith.constant 0 : index
    %266 = vector.load %arg1[%c1, %c0_68, %c0_69] : memref<2x8x128xf32, #tpu.memory_space<vmem>>, vector<1x8x128xf32>
    %267 = vector.shape_cast %266 : vector<1x8x128xf32> to vector<8x128xf32>
    %c0_i32_70 = arith.constant 0 : i32
    %c8_i32_71 = arith.constant 8 : i32
    %268 = arith.muli %c0_i32_70, %c8_i32_71 : i32
    %269 = tpu.assume_multiple %268, 8 : i32
    %270 = arith.index_cast %269 : i32 to index
    %c0_72 = arith.constant 0 : index
    %271 = vector.load %arg15[%270, %c0_72] : memref<64x384xf32, #tpu.memory_space<vmem>>, vector<8x384xf32>
    %cst_73 = arith.constant dense<0.000000e+00> : vector<8x384xf32>
    %272 = tpu.matmul %267, %255, %cst_73 {dimension_numbers = #tpu.dot_dimension_numbers<[1], [0], [0], [1], [0, 0, 1, 1], [], []>} : vector<8x128xf32>, vector<128x384xf32>, vector<8x384xf32> -> vector<8x384xf32>
    %273 = vector.extract_strided_slice %271 {offsets = [0, 0], sizes = [8, 128], strides = [1, 1]} : vector<8x384xf32> to vector<8x128xf32>
    %274 = vector.extract_strided_slice %272 {offsets = [0, 0], sizes = [8, 128], strides = [1, 1]} : vector<8x384xf32> to vector<8x128xf32>
    %275 = arith.addf %273, %274 : vector<8x128xf32>
    %276 = arith.negf %275 : vector<8x128xf32>
    %277 = math.exp %276 : vector<8x128xf32>
    %cst_74 = arith.constant 1.000000e+00 : f32
    %278 = vector.broadcast %cst_74 : f32 to vector<8x128xf32>
    %279 = arith.addf %278, %277 : vector<8x128xf32>
    %280 = arith.divf %278, %279 : vector<8x128xf32>
    %281 = vector.extract_strided_slice %271 {offsets = [0, 128], sizes = [8, 128], strides = [1, 1]} : vector<8x384xf32> to vector<8x128xf32>
    %282 = vector.extract_strided_slice %272 {offsets = [0, 128], sizes = [8, 128], strides = [1, 1]} : vector<8x384xf32> to vector<8x128xf32>
    %283 = arith.addf %281, %282 : vector<8x128xf32>
    %284 = arith.negf %283 : vector<8x128xf32>
    %285 = math.exp %284 : vector<8x128xf32>
    %cst_75 = arith.constant 1.000000e+00 : f32
    %286 = vector.broadcast %cst_75 : f32 to vector<8x128xf32>
    %287 = arith.addf %286, %285 : vector<8x128xf32>
    %288 = arith.divf %286, %287 : vector<8x128xf32>
    %289 = vector.extract_strided_slice %271 {offsets = [0, 256], sizes = [8, 128], strides = [1, 1]} : vector<8x384xf32> to vector<8x128xf32>
    %290 = vector.extract_strided_slice %272 {offsets = [0, 256], sizes = [8, 128], strides = [1, 1]} : vector<8x384xf32> to vector<8x128xf32>
    %291 = arith.addf %290, %258 : vector<8x128xf32>
    %292 = arith.mulf %280, %291 : vector<8x128xf32>
    %293 = arith.addf %289, %292 : vector<8x128xf32>
    %294 = math.tanh %293 : vector<8x128xf32>
    %295 = arith.subf %267, %294 : vector<8x128xf32>
    %296 = arith.mulf %288, %295 : vector<8x128xf32>
    %297 = arith.addf %294, %296 : vector<8x128xf32>
    %298 = arith.index_cast %269 : i32 to index
    %c0_76 = arith.constant 0 : index
    %299 = vector.load %arg14[%298, %c0_76] : memref<64x128xf32, #tpu.memory_space<vmem>>, vector<8x128xf32>
    tpu.vector_store %arg14[%298, %c0_76], %297 {strides = array<i32>} : memref<64x128xf32, #tpu.memory_space<vmem>>, vector<8x128xf32>,
    %c1_i32_77 = arith.constant 1 : i32
    %c8_i32_78 = arith.constant 8 : i32
    %300 = arith.muli %c1_i32_77, %c8_i32_78 : i32
    %301 = tpu.assume_multiple %300, 8 : i32
    %302 = arith.index_cast %301 : i32 to index
    %c0_79 = arith.constant 0 : index
    %303 = vector.load %arg15[%302, %c0_79] : memref<64x384xf32, #tpu.memory_space<vmem>>, vector<8x384xf32>
    %cst_80 = arith.constant dense<0.000000e+00> : vector<8x384xf32>
    %304 = tpu.matmul %297, %255, %cst_80 {dimension_numbers = #tpu.dot_dimension_numbers<[1], [0], [0], [1], [0, 0, 1, 1], [], []>} : vector<8x128xf32>, vector<128x384xf32>, vector<8x384xf32> -> vector<8x384xf32>
    %305 = vector.extract_strided_slice %303 {offsets = [0, 0], sizes = [8, 128], strides = [1, 1]} : vector<8x384xf32> to vector<8x128xf32>
    %306 = vector.extract_strided_slice %304 {offsets = [0, 0], sizes = [8, 128], strides = [1, 1]} : vector<8x384xf32> to vector<8x128xf32>
    %307 = arith.addf %305, %306 : vector<8x128xf32>
    %308 = arith.negf %307 : vector<8x128xf32>
    %309 = math.exp %308 : vector<8x128xf32>
    %cst_81 = arith.constant 1.000000e+00 : f32
    %310 = vector.broadcast %cst_81 : f32 to vector<8x128xf32>
    %311 = arith.addf %310, %309 : vector<8x128xf32>
    %312 = arith.divf %310, %311 : vector<8x128xf32>
    %313 = vector.extract_strided_slice %303 {offsets = [0, 128], sizes = [8, 128], strides = [1, 1]} : vector<8x384xf32> to vector<8x128xf32>
    %314 = vector.extract_strided_slice %304 {offsets = [0, 128], sizes = [8, 128], strides = [1, 1]} : vector<8x384xf32> to vector<8x128xf32>
    %315 = arith.addf %313, %314 : vector<8x128xf32>
    %316 = arith.negf %315 : vector<8x128xf32>
    %317 = math.exp %316 : vector<8x128xf32>
    %cst_82 = arith.constant 1.000000e+00 : f32
    %318 = vector.broadcast %cst_82 : f32 to vector<8x128xf32>
    %319 = arith.addf %318, %317 : vector<8x128xf32>
    %320 = arith.divf %318, %319 : vector<8x128xf32>
    %321 = vector.extract_strided_slice %303 {offsets = [0, 256], sizes = [8, 128], strides = [1, 1]} : vector<8x384xf32> to vector<8x128xf32>
    %322 = vector.extract_strided_slice %304 {offsets = [0, 256], sizes = [8, 128], strides = [1, 1]} : vector<8x384xf32> to vector<8x128xf32>
    %323 = arith.addf %322, %258 : vector<8x128xf32>
    %324 = arith.mulf %312, %323 : vector<8x128xf32>
    %325 = arith.addf %321, %324 : vector<8x128xf32>
    %326 = math.tanh %325 : vector<8x128xf32>
    %327 = arith.subf %297, %326 : vector<8x128xf32>
    %328 = arith.mulf %320, %327 : vector<8x128xf32>
    %329 = arith.addf %326, %328 : vector<8x128xf32>
    %330 = arith.index_cast %301 : i32 to index
    %c0_83 = arith.constant 0 : index
    %331 = vector.load %arg14[%330, %c0_83] : memref<64x128xf32, #tpu.memory_space<vmem>>, vector<8x128xf32>
    tpu.vector_store %arg14[%330, %c0_83], %329 {strides = array<i32>} : memref<64x128xf32, #tpu.memory_space<vmem>>, vector<8x128xf32>,
    %c2_i32_84 = arith.constant 2 : i32
    %c8_i32_85 = arith.constant 8 : i32
    %332 = arith.muli %c2_i32_84, %c8_i32_85 : i32
    %333 = tpu.assume_multiple %332, 8 : i32
    %334 = arith.index_cast %333 : i32 to index
    %c0_86 = arith.constant 0 : index
    %335 = vector.load %arg15[%334, %c0_86] : memref<64x384xf32, #tpu.memory_space<vmem>>, vector<8x384xf32>
    %cst_87 = arith.constant dense<0.000000e+00> : vector<8x384xf32>
    %336 = tpu.matmul %329, %255, %cst_87 {dimension_numbers = #tpu.dot_dimension_numbers<[1], [0], [0], [1], [0, 0, 1, 1], [], []>} : vector<8x128xf32>, vector<128x384xf32>, vector<8x384xf32> -> vector<8x384xf32>
    %337 = vector.extract_strided_slice %335 {offsets = [0, 0], sizes = [8, 128], strides = [1, 1]} : vector<8x384xf32> to vector<8x128xf32>
    %338 = vector.extract_strided_slice %336 {offsets = [0, 0], sizes = [8, 128], strides = [1, 1]} : vector<8x384xf32> to vector<8x128xf32>
    %339 = arith.addf %337, %338 : vector<8x128xf32>
    %340 = arith.negf %339 : vector<8x128xf32>
    %341 = math.exp %340 : vector<8x128xf32>
    %cst_88 = arith.constant 1.000000e+00 : f32
    %342 = vector.broadcast %cst_88 : f32 to vector<8x128xf32>
    %343 = arith.addf %342, %341 : vector<8x128xf32>
    %344 = arith.divf %342, %343 : vector<8x128xf32>
    %345 = vector.extract_strided_slice %335 {offsets = [0, 128], sizes = [8, 128], strides = [1, 1]} : vector<8x384xf32> to vector<8x128xf32>
    %346 = vector.extract_strided_slice %336 {offsets = [0, 128], sizes = [8, 128], strides = [1, 1]} : vector<8x384xf32> to vector<8x128xf32>
    %347 = arith.addf %345, %346 : vector<8x128xf32>
    %348 = arith.negf %347 : vector<8x128xf32>
    %349 = math.exp %348 : vector<8x128xf32>
    %cst_89 = arith.constant 1.000000e+00 : f32
    %350 = vector.broadcast %cst_89 : f32 to vector<8x128xf32>
    %351 = arith.addf %350, %349 : vector<8x128xf32>
    %352 = arith.divf %350, %351 : vector<8x128xf32>
    %353 = vector.extract_strided_slice %335 {offsets = [0, 256], sizes = [8, 128], strides = [1, 1]} : vector<8x384xf32> to vector<8x128xf32>
    %354 = vector.extract_strided_slice %336 {offsets = [0, 256], sizes = [8, 128], strides = [1, 1]} : vector<8x384xf32> to vector<8x128xf32>
    %355 = arith.addf %354, %258 : vector<8x128xf32>
    %356 = arith.mulf %344, %355 : vector<8x128xf32>
    %357 = arith.addf %353, %356 : vector<8x128xf32>
    %358 = math.tanh %357 : vector<8x128xf32>
    %359 = arith.subf %329, %358 : vector<8x128xf32>
    %360 = arith.mulf %352, %359 : vector<8x128xf32>
    %361 = arith.addf %358, %360 : vector<8x128xf32>
    %362 = arith.index_cast %333 : i32 to index
    %c0_90 = arith.constant 0 : index
    %363 = vector.load %arg14[%362, %c0_90] : memref<64x128xf32, #tpu.memory_space<vmem>>, vector<8x128xf32>
    tpu.vector_store %arg14[%362, %c0_90], %361 {strides = array<i32>} : memref<64x128xf32, #tpu.memory_space<vmem>>, vector<8x128xf32>,
    %c3_i32_91 = arith.constant 3 : i32
    %c8_i32_92 = arith.constant 8 : i32
    %364 = arith.muli %c3_i32_91, %c8_i32_92 : i32
    %365 = tpu.assume_multiple %364, 8 : i32
    %366 = arith.index_cast %365 : i32 to index
    %c0_93 = arith.constant 0 : index
    %367 = vector.load %arg15[%366, %c0_93] : memref<64x384xf32, #tpu.memory_space<vmem>>, vector<8x384xf32>
    %cst_94 = arith.constant dense<0.000000e+00> : vector<8x384xf32>
    %368 = tpu.matmul %361, %255, %cst_94 {dimension_numbers = #tpu.dot_dimension_numbers<[1], [0], [0], [1], [0, 0, 1, 1], [], []>} : vector<8x128xf32>, vector<128x384xf32>, vector<8x384xf32> -> vector<8x384xf32>
    %369 = vector.extract_strided_slice %367 {offsets = [0, 0], sizes = [8, 128], strides = [1, 1]} : vector<8x384xf32> to vector<8x128xf32>
    %370 = vector.extract_strided_slice %368 {offsets = [0, 0], sizes = [8, 128], strides = [1, 1]} : vector<8x384xf32> to vector<8x128xf32>
    %371 = arith.addf %369, %370 : vector<8x128xf32>
    %372 = arith.negf %371 : vector<8x128xf32>
    %373 = math.exp %372 : vector<8x128xf32>
    %cst_95 = arith.constant 1.000000e+00 : f32
    %374 = vector.broadcast %cst_95 : f32 to vector<8x128xf32>
    %375 = arith.addf %374, %373 : vector<8x128xf32>
    %376 = arith.divf %374, %375 : vector<8x128xf32>
    %377 = vector.extract_strided_slice %367 {offsets = [0, 128], sizes = [8, 128], strides = [1, 1]} : vector<8x384xf32> to vector<8x128xf32>
    %378 = vector.extract_strided_slice %368 {offsets = [0, 128], sizes = [8, 128], strides = [1, 1]} : vector<8x384xf32> to vector<8x128xf32>
    %379 = arith.addf %377, %378 : vector<8x128xf32>
    %380 = arith.negf %379 : vector<8x128xf32>
    %381 = math.exp %380 : vector<8x128xf32>
    %cst_96 = arith.constant 1.000000e+00 : f32
    %382 = vector.broadcast %cst_96 : f32 to vector<8x128xf32>
    %383 = arith.addf %382, %381 : vector<8x128xf32>
    %384 = arith.divf %382, %383 : vector<8x128xf32>
    %385 = vector.extract_strided_slice %367 {offsets = [0, 256], sizes = [8, 128], strides = [1, 1]} : vector<8x384xf32> to vector<8x128xf32>
    %386 = vector.extract_strided_slice %368 {offsets = [0, 256], sizes = [8, 128], strides = [1, 1]} : vector<8x384xf32> to vector<8x128xf32>
    %387 = arith.addf %386, %258 : vector<8x128xf32>
    %388 = arith.mulf %376, %387 : vector<8x128xf32>
    %389 = arith.addf %385, %388 : vector<8x128xf32>
    %390 = math.tanh %389 : vector<8x128xf32>
    %391 = arith.subf %361, %390 : vector<8x128xf32>
    %392 = arith.mulf %384, %391 : vector<8x128xf32>
    %393 = arith.addf %390, %392 : vector<8x128xf32>
    %394 = arith.index_cast %365 : i32 to index
    %c0_97 = arith.constant 0 : index
    %395 = vector.load %arg14[%394, %c0_97] : memref<64x128xf32, #tpu.memory_space<vmem>>, vector<8x128xf32>
    tpu.vector_store %arg14[%394, %c0_97], %393 {strides = array<i32>} : memref<64x128xf32, #tpu.memory_space<vmem>>, vector<8x128xf32>,
    %c4_i32_98 = arith.constant 4 : i32
    %c8_i32_99 = arith.constant 8 : i32
    %396 = arith.muli %c4_i32_98, %c8_i32_99 : i32
    %397 = tpu.assume_multiple %396, 8 : i32
    %398 = arith.index_cast %397 : i32 to index
    %c0_100 = arith.constant 0 : index
    %399 = vector.load %arg15[%398, %c0_100] : memref<64x384xf32, #tpu.memory_space<vmem>>, vector<8x384xf32>
    %cst_101 = arith.constant dense<0.000000e+00> : vector<8x384xf32>
    %400 = tpu.matmul %393, %255, %cst_101 {dimension_numbers = #tpu.dot_dimension_numbers<[1], [0], [0], [1], [0, 0, 1, 1], [], []>} : vector<8x128xf32>, vector<128x384xf32>, vector<8x384xf32> -> vector<8x384xf32>
    %401 = vector.extract_strided_slice %399 {offsets = [0, 0], sizes = [8, 128], strides = [1, 1]} : vector<8x384xf32> to vector<8x128xf32>
    %402 = vector.extract_strided_slice %400 {offsets = [0, 0], sizes = [8, 128], strides = [1, 1]} : vector<8x384xf32> to vector<8x128xf32>
    %403 = arith.addf %401, %402 : vector<8x128xf32>
    %404 = arith.negf %403 : vector<8x128xf32>
    %405 = math.exp %404 : vector<8x128xf32>
    %cst_102 = arith.constant 1.000000e+00 : f32
    %406 = vector.broadcast %cst_102 : f32 to vector<8x128xf32>
    %407 = arith.addf %406, %405 : vector<8x128xf32>
    %408 = arith.divf %406, %407 : vector<8x128xf32>
    %409 = vector.extract_strided_slice %399 {offsets = [0, 128], sizes = [8, 128], strides = [1, 1]} : vector<8x384xf32> to vector<8x128xf32>
    %410 = vector.extract_strided_slice %400 {offsets = [0, 128], sizes = [8, 128], strides = [1, 1]} : vector<8x384xf32> to vector<8x128xf32>
    %411 = arith.addf %409, %410 : vector<8x128xf32>
    %412 = arith.negf %411 : vector<8x128xf32>
    %413 = math.exp %412 : vector<8x128xf32>
    %cst_103 = arith.constant 1.000000e+00 : f32
    %414 = vector.broadcast %cst_103 : f32 to vector<8x128xf32>
    %415 = arith.addf %414, %413 : vector<8x128xf32>
    %416 = arith.divf %414, %415 : vector<8x128xf32>
    %417 = vector.extract_strided_slice %399 {offsets = [0, 256], sizes = [8, 128], strides = [1, 1]} : vector<8x384xf32> to vector<8x128xf32>
    %418 = vector.extract_strided_slice %400 {offsets = [0, 256], sizes = [8, 128], strides = [1, 1]} : vector<8x384xf32> to vector<8x128xf32>
    %419 = arith.addf %418, %258 : vector<8x128xf32>
    %420 = arith.mulf %408, %419 : vector<8x128xf32>
    %421 = arith.addf %417, %420 : vector<8x128xf32>
    %422 = math.tanh %421 : vector<8x128xf32>
    %423 = arith.subf %393, %422 : vector<8x128xf32>
    %424 = arith.mulf %416, %423 : vector<8x128xf32>
    %425 = arith.addf %422, %424 : vector<8x128xf32>
    %426 = arith.index_cast %397 : i32 to index
    %c0_104 = arith.constant 0 : index
    %427 = vector.load %arg14[%426, %c0_104] : memref<64x128xf32, #tpu.memory_space<vmem>>, vector<8x128xf32>
    tpu.vector_store %arg14[%426, %c0_104], %425 {strides = array<i32>} : memref<64x128xf32, #tpu.memory_space<vmem>>, vector<8x128xf32>,
    %c5_i32_105 = arith.constant 5 : i32
    %c8_i32_106 = arith.constant 8 : i32
    %428 = arith.muli %c5_i32_105, %c8_i32_106 : i32
    %429 = tpu.assume_multiple %428, 8 : i32
    %430 = arith.index_cast %429 : i32 to index
    %c0_107 = arith.constant 0 : index
    %431 = vector.load %arg15[%430, %c0_107] : memref<64x384xf32, #tpu.memory_space<vmem>>, vector<8x384xf32>
    %cst_108 = arith.constant dense<0.000000e+00> : vector<8x384xf32>
    %432 = tpu.matmul %425, %255, %cst_108 {dimension_numbers = #tpu.dot_dimension_numbers<[1], [0], [0], [1], [0, 0, 1, 1], [], []>} : vector<8x128xf32>, vector<128x384xf32>, vector<8x384xf32> -> vector<8x384xf32>
    %433 = vector.extract_strided_slice %431 {offsets = [0, 0], sizes = [8, 128], strides = [1, 1]} : vector<8x384xf32> to vector<8x128xf32>
    %434 = vector.extract_strided_slice %432 {offsets = [0, 0], sizes = [8, 128], strides = [1, 1]} : vector<8x384xf32> to vector<8x128xf32>
    %435 = arith.addf %433, %434 : vector<8x128xf32>
    %436 = arith.negf %435 : vector<8x128xf32>
    %437 = math.exp %436 : vector<8x128xf32>
    %cst_109 = arith.constant 1.000000e+00 : f32
    %438 = vector.broadcast %cst_109 : f32 to vector<8x128xf32>
    %439 = arith.addf %438, %437 : vector<8x128xf32>
    %440 = arith.divf %438, %439 : vector<8x128xf32>
    %441 = vector.extract_strided_slice %431 {offsets = [0, 128], sizes = [8, 128], strides = [1, 1]} : vector<8x384xf32> to vector<8x128xf32>
    %442 = vector.extract_strided_slice %432 {offsets = [0, 128], sizes = [8, 128], strides = [1, 1]} : vector<8x384xf32> to vector<8x128xf32>
    %443 = arith.addf %441, %442 : vector<8x128xf32>
    %444 = arith.negf %443 : vector<8x128xf32>
    %445 = math.exp %444 : vector<8x128xf32>
    %cst_110 = arith.constant 1.000000e+00 : f32
    %446 = vector.broadcast %cst_110 : f32 to vector<8x128xf32>
    %447 = arith.addf %446, %445 : vector<8x128xf32>
    %448 = arith.divf %446, %447 : vector<8x128xf32>
    %449 = vector.extract_strided_slice %431 {offsets = [0, 256], sizes = [8, 128], strides = [1, 1]} : vector<8x384xf32> to vector<8x128xf32>
    %450 = vector.extract_strided_slice %432 {offsets = [0, 256], sizes = [8, 128], strides = [1, 1]} : vector<8x384xf32> to vector<8x128xf32>
    %451 = arith.addf %450, %258 : vector<8x128xf32>
    %452 = arith.mulf %440, %451 : vector<8x128xf32>
    %453 = arith.addf %449, %452 : vector<8x128xf32>
    %454 = math.tanh %453 : vector<8x128xf32>
    %455 = arith.subf %425, %454 : vector<8x128xf32>
    %456 = arith.mulf %448, %455 : vector<8x128xf32>
    %457 = arith.addf %454, %456 : vector<8x128xf32>
    %458 = arith.index_cast %429 : i32 to index
    %c0_111 = arith.constant 0 : index
    %459 = vector.load %arg14[%458, %c0_111] : memref<64x128xf32, #tpu.memory_space<vmem>>, vector<8x128xf32>
    tpu.vector_store %arg14[%458, %c0_111], %457 {strides = array<i32>} : memref<64x128xf32, #tpu.memory_space<vmem>>, vector<8x128xf32>,
    %c6_i32_112 = arith.constant 6 : i32
    %c8_i32_113 = arith.constant 8 : i32
    %460 = arith.muli %c6_i32_112, %c8_i32_113 : i32
    %461 = tpu.assume_multiple %460, 8 : i32
    %462 = arith.index_cast %461 : i32 to index
    %c0_114 = arith.constant 0 : index
    %463 = vector.load %arg15[%462, %c0_114] : memref<64x384xf32, #tpu.memory_space<vmem>>, vector<8x384xf32>
    %cst_115 = arith.constant dense<0.000000e+00> : vector<8x384xf32>
    %464 = tpu.matmul %457, %255, %cst_115 {dimension_numbers = #tpu.dot_dimension_numbers<[1], [0], [0], [1], [0, 0, 1, 1], [], []>} : vector<8x128xf32>, vector<128x384xf32>, vector<8x384xf32> -> vector<8x384xf32>
    %465 = vector.extract_strided_slice %463 {offsets = [0, 0], sizes = [8, 128], strides = [1, 1]} : vector<8x384xf32> to vector<8x128xf32>
    %466 = vector.extract_strided_slice %464 {offsets = [0, 0], sizes = [8, 128], strides = [1, 1]} : vector<8x384xf32> to vector<8x128xf32>
    %467 = arith.addf %465, %466 : vector<8x128xf32>
    %468 = arith.negf %467 : vector<8x128xf32>
    %469 = math.exp %468 : vector<8x128xf32>
    %cst_116 = arith.constant 1.000000e+00 : f32
    %470 = vector.broadcast %cst_116 : f32 to vector<8x128xf32>
    %471 = arith.addf %470, %469 : vector<8x128xf32>
    %472 = arith.divf %470, %471 : vector<8x128xf32>
    %473 = vector.extract_strided_slice %463 {offsets = [0, 128], sizes = [8, 128], strides = [1, 1]} : vector<8x384xf32> to vector<8x128xf32>
    %474 = vector.extract_strided_slice %464 {offsets = [0, 128], sizes = [8, 128], strides = [1, 1]} : vector<8x384xf32> to vector<8x128xf32>
    %475 = arith.addf %473, %474 : vector<8x128xf32>
    %476 = arith.negf %475 : vector<8x128xf32>
    %477 = math.exp %476 : vector<8x128xf32>
    %cst_117 = arith.constant 1.000000e+00 : f32
    %478 = vector.broadcast %cst_117 : f32 to vector<8x128xf32>
    %479 = arith.addf %478, %477 : vector<8x128xf32>
    %480 = arith.divf %478, %479 : vector<8x128xf32>
    %481 = vector.extract_strided_slice %463 {offsets = [0, 256], sizes = [8, 128], strides = [1, 1]} : vector<8x384xf32> to vector<8x128xf32>
    %482 = vector.extract_strided_slice %464 {offsets = [0, 256], sizes = [8, 128], strides = [1, 1]} : vector<8x384xf32> to vector<8x128xf32>
    %483 = arith.addf %482, %258 : vector<8x128xf32>
    %484 = arith.mulf %472, %483 : vector<8x128xf32>
    %485 = arith.addf %481, %484 : vector<8x128xf32>
    %486 = math.tanh %485 : vector<8x128xf32>
    %487 = arith.subf %457, %486 : vector<8x128xf32>
    %488 = arith.mulf %480, %487 : vector<8x128xf32>
    %489 = arith.addf %486, %488 : vector<8x128xf32>
    %490 = arith.index_cast %461 : i32 to index
    %c0_118 = arith.constant 0 : index
    %491 = vector.load %arg14[%490, %c0_118] : memref<64x128xf32, #tpu.memory_space<vmem>>, vector<8x128xf32>
    tpu.vector_store %arg14[%490, %c0_118], %489 {strides = array<i32>} : memref<64x128xf32, #tpu.memory_space<vmem>>, vector<8x128xf32>,
    %c7_i32_119 = arith.constant 7 : i32
    %c8_i32_120 = arith.constant 8 : i32
    %492 = arith.muli %c7_i32_119, %c8_i32_120 : i32
    %493 = tpu.assume_multiple %492, 8 : i32
    %494 = arith.index_cast %493 : i32 to index
    %c0_121 = arith.constant 0 : index
    %495 = vector.load %arg15[%494, %c0_121] : memref<64x384xf32, #tpu.memory_space<vmem>>, vector<8x384xf32>
    %cst_122 = arith.constant dense<0.000000e+00> : vector<8x384xf32>
    %496 = tpu.matmul %489, %255, %cst_122 {dimension_numbers = #tpu.dot_dimension_numbers<[1], [0], [0], [1], [0, 0, 1, 1], [], []>} : vector<8x128xf32>, vector<128x384xf32>, vector<8x384xf32> -> vector<8x384xf32>
    %497 = vector.extract_strided_slice %495 {offsets = [0, 0], sizes = [8, 128], strides = [1, 1]} : vector<8x384xf32> to vector<8x128xf32>
    %498 = vector.extract_strided_slice %496 {offsets = [0, 0], sizes = [8, 128], strides = [1, 1]} : vector<8x384xf32> to vector<8x128xf32>
    %499 = arith.addf %497, %498 : vector<8x128xf32>
    %500 = arith.negf %499 : vector<8x128xf32>
    %501 = math.exp %500 : vector<8x128xf32>
    %cst_123 = arith.constant 1.000000e+00 : f32
    %502 = vector.broadcast %cst_123 : f32 to vector<8x128xf32>
    %503 = arith.addf %502, %501 : vector<8x128xf32>
    %504 = arith.divf %502, %503 : vector<8x128xf32>
    %505 = vector.extract_strided_slice %495 {offsets = [0, 128], sizes = [8, 128], strides = [1, 1]} : vector<8x384xf32> to vector<8x128xf32>
    %506 = vector.extract_strided_slice %496 {offsets = [0, 128], sizes = [8, 128], strides = [1, 1]} : vector<8x384xf32> to vector<8x128xf32>
    %507 = arith.addf %505, %506 : vector<8x128xf32>
    %508 = arith.negf %507 : vector<8x128xf32>
    %509 = math.exp %508 : vector<8x128xf32>
    %cst_124 = arith.constant 1.000000e+00 : f32
    %510 = vector.broadcast %cst_124 : f32 to vector<8x128xf32>
    %511 = arith.addf %510, %509 : vector<8x128xf32>
    %512 = arith.divf %510, %511 : vector<8x128xf32>
    %513 = vector.extract_strided_slice %495 {offsets = [0, 256], sizes = [8, 128], strides = [1, 1]} : vector<8x384xf32> to vector<8x128xf32>
    %514 = vector.extract_strided_slice %496 {offsets = [0, 256], sizes = [8, 128], strides = [1, 1]} : vector<8x384xf32> to vector<8x128xf32>
    %515 = arith.addf %514, %258 : vector<8x128xf32>
    %516 = arith.mulf %504, %515 : vector<8x128xf32>
    %517 = arith.addf %513, %516 : vector<8x128xf32>
    %518 = math.tanh %517 : vector<8x128xf32>
    %519 = arith.subf %489, %518 : vector<8x128xf32>
    %520 = arith.mulf %512, %519 : vector<8x128xf32>
    %521 = arith.addf %518, %520 : vector<8x128xf32>
    %522 = arith.index_cast %493 : i32 to index
    %c0_125 = arith.constant 0 : index
    %523 = vector.load %arg14[%522, %c0_125] : memref<64x128xf32, #tpu.memory_space<vmem>>, vector<8x128xf32>
    tpu.vector_store %arg14[%522, %c0_125], %521 {strides = array<i32>} : memref<64x128xf32, #tpu.memory_space<vmem>>, vector<8x128xf32>,
    %c8_i32_126 = arith.constant 8 : i32
    %c1_127 = arith.constant 1 : index
    %c0_128 = arith.constant 0 : index
    %c0_129 = arith.constant 0 : index
    %524 = vector.load %arg13[%c1_127, %c0_128, %c0_129] : memref<2x8x128xf32, #tpu.memory_space<vmem>>, vector<1x8x128xf32>
    %525 = vector.shape_cast %524 : vector<1x8x128xf32> to vector<8x128xf32>
    %526 = vector.shape_cast %521 : vector<8x128xf32> to vector<1x8x128xf32>
    tpu.vector_store %arg13[%c1_127, %c0_128, %c0_129], %526 {strides = array<i32>} : memref<2x8x128xf32, #tpu.memory_space<vmem>>, vector<1x8x128xf32>,
    %c0_130 = arith.constant 0 : index
    %c0_131 = arith.constant 0 : index
    %527 = vector.load %arg14[%c0_130, %c0_131] : memref<64x128xf32, #tpu.memory_space<vmem>>, vector<64x128xf32>
    %c0_132 = arith.constant 0 : index
    %c0_133 = arith.constant 0 : index
    %528 = vector.load %arg10[%c0_132, %c0_133] : memref<128x128xf32, #tpu.memory_space<vmem>>, vector<128x128xf32>
    %cst_134 = arith.constant dense<0.000000e+00> : vector<64x128xf32>
    %529 = tpu.matmul %527, %528, %cst_134 {dimension_numbers = #tpu.dot_dimension_numbers<[1], [0], [0], [1], [0, 0, 1, 1], [], []>} : vector<64x128xf32>, vector<128x128xf32>, vector<64x128xf32> -> vector<64x128xf32>
    %c0_135 = arith.constant 0 : index
    %c0_136 = arith.constant 0 : index
    %530 = vector.load %arg11[%c0_135, %c0_136] : memref<1x128xf32, #tpu.memory_space<vmem>>, vector<1x128xf32>
    %531 = vector.broadcast %530 : vector<1x128xf32> to vector<64x128xf32>
    %532 = arith.addf %529, %531 : vector<64x128xf32>
    %c0_137 = arith.constant 0 : index
    %c0_138 = arith.constant 0 : index
    %533 = vector.load %arg12[%c0_137, %c0_138] : memref<64x128xf32, #tpu.memory_space<vmem>>, vector<64x128xf32>
    tpu.vector_store %arg12[%c0_137, %c0_138], %532 {strides = array<i32>} : memref<64x128xf32, #tpu.memory_space<vmem>>, vector<64x128xf32>,
    return
  }
}

</mosaic_0001>

<llo_original>
// kernel: rdecoder_forward.1
$region0: #{rdecoder_forward.1}
  #allocation0 [shape = 'u32[]', space=smem, size = 0x4, offset = 0x4, fixed_abs, tag = 'smem constant byte address 0x4 - core index']
  #allocation1 [shape = 'u32[72,128]{1,0:T(1,128)}', space=vmem, size = 0x9000, scoped, tag = 'internal scratch']
  #allocation2 [shape = 'f32[64,128]{1,0:T(8,128)}', space=vmem, size = 0x8000, scoped, tag = 'scratch operand']
  #allocation3 [shape = 'f32[64,384]{1,0:T(8,128)}', space=vmem, size = 0x18000, scoped, tag = 'scratch operand']
  %s0 = inlined_call_operand.vmem [shape: f32[8,128], index: 0, kind: input, shape index: {}]
  %s1 = inlined_call_operand.vmem [shape: f32[2,8,128], index: 1, kind: input, shape index: {}]
  %s2 = inlined_call_operand.hbm [shape: f32[128,384], index: 2, kind: input, shape index: {}]
  %s3 = inlined_call_operand.hbm [shape: f32[128,384], index: 3, kind: input, shape index: {}]
  %s4 = inlined_call_operand.vmem [shape: f32[1,384], index: 4, kind: input, shape index: {}]
  %s5 = inlined_call_operand.vmem [shape: f32[1,128], index: 5, kind: input, shape index: {}]
  %s6 = inlined_call_operand.hbm [shape: f32[128,384], index: 6, kind: input, shape index: {}]
  %s7 = inlined_call_operand.hbm [shape: f32[128,384], index: 7, kind: input, shape index: {}]
  %s8 = inlined_call_operand.vmem [shape: f32[1,384], index: 8, kind: input, shape index: {}]
  %s9 = inlined_call_operand.vmem [shape: f32[1,128], index: 9, kind: input, shape index: {}]
  %s10 = inlined_call_operand.hbm [shape: f32[128,128], index: 10, kind: input, shape index: {}]
  %s11 = inlined_call_operand.vmem [shape: f32[1,128], index: 11, kind: input, shape index: {}]
  %s12 = inlined_call_operand.vmem [shape: f32[64,128], index: 12, kind: output, shape index: {0}]
  %s13 = inlined_call_operand.vmem [shape: f32[2,8,128], index: 13, kind: output, shape index: {1}]
  %14 = xla_tuple %s12, %s13
  %s15 = sld [smem:[#allocation0]]
  $region86: #{rdecoder_forward.1} parent=0
    _
  %s17 = ssub.s32 1, %s15
  %s18 = scalar_select 0, %s17, %s15
  $region1: #{rdecoder_forward.1} parent=0
    #allocation4 [shape = 'u8[196608]{0}', space=vmem, size = 0x30000, scoped, tag = 'input window, operand 2, single buffered']
    #allocation5 [shape = 's32[1]{0}', space=sflag, size = 0x4, scoped, tag = 'scoped memory for rdecoder_forward.1']
    #allocation6 [shape = 'u8[196608]{0}', space=vmem, size = 0x30000, scoped, tag = 'input window, operand 3, single buffered']
    #allocation7 [shape = 's32[1]{0}', space=sflag, size = 0x4, scoped, tag = 'scoped memory for rdecoder_forward.1']
    #allocation8 [shape = 'u8[196608]{0}', space=vmem, size = 0x30000, scoped, tag = 'input window, operand 6, single buffered']
    #allocation9 [shape = 'u8[196608]{0}', space=vmem, size = 0x30000, scoped, tag = 'input window, operand 7, single buffered']
    #allocation10 [shape = 's32[1]{0}', space=sflag, size = 0x4, scoped, tag = 'scoped memory for rdecoder_forward.1']
    #allocation11 [shape = 'u8[65536]{0}', space=vmem, size = 0x10000, scoped, tag = 'input window, operand 10, single buffered']
    %19 = vsyncpa [#allocation5], 0
    %20 = vsyncpa [#allocation7], 0
    %21 = vsyncpa [#allocation10], 0
    // Predicated region
    $region2: #{rdecoder_forward.1} parent=1 // pred_check
      _
    $region3: #{rdecoder_forward.1} parent=1 // pred_check_branch
      %23 = sbr.rel (0) target = $region5
    $region4: #{rdecoder_forward.1} parent=1 // pred_region
      _
    $region5: #{rdecoder_forward.1} parent=1 // pred_fallthru
      _
    // Predicated region
    $region6: #{rdecoder_forward.1} parent=1 // pred_check
      _
    $region7: #{rdecoder_forward.1} parent=1 // pred_check_branch
      %25 = sbr.rel (0) target = $region9
    $region8: #{rdecoder_forward.1} parent=1 // pred_region
      _
    $region9: #{rdecoder_forward.1} parent=1 // pred_fallthru
      _
    // Predicated region
    $region10: #{rdecoder_forward.1} parent=1 // pred_check
      _
    $region11: #{rdecoder_forward.1} parent=1 // pred_check_branch
      %27 = sbr.rel (0) target = $region13
    $region12: #{rdecoder_forward.1} parent=1 // pred_region
      %29 = vsyncadd [#allocation5], 0
      %s30 = sshll.u32 %s2, 4
      %s31 = int_to_ptr.hbm [resolvable:$true] %s30
      %s32 = sshll.u32 [#allocation4], 4
      %s33 = int_to_ptr.vmem [resolvable:$true] %s32
      %38 = dma.hbm_to_vmem [thread:$0]  %s31, 6144, %s33, [#allocation5], 384, 384, 24
    $region13: #{rdecoder_forward.1} parent=1 // pred_fallthru
      _
    // Predicated region
    $region14: #{rdecoder_forward.1} parent=1 // pred_check
      _
    $region15: #{rdecoder_forward.1} parent=1 // pred_check_branch
      %40 = sbr.rel (0) target = $region17
    $region16: #{rdecoder_forward.1} parent=1 // pred_region
      %42 = vsyncadd [#allocation7], 0
      %s43 = sshll.u32 %s3, 4
      %s44 = int_to_ptr.hbm [resolvable:$true] %s43
      %s45 = sshll.u32 [#allocation6], 4
      %s46 = int_to_ptr.vmem [resolvable:$true] %s45
      %51 = dma.hbm_to_vmem [thread:$0]  %s44, 6144, %s46, [#allocation7], 384, 384, 24
    $region17: #{rdecoder_forward.1} parent=1 // pred_fallthru
      _
    // Predicated region
    $region18: #{rdecoder_forward.1} parent=1 // pred_check
      _
    $region19: #{rdecoder_forward.1} parent=1 // pred_check_branch
      %53 = sbr.rel (0) target = $region21
    $region20: #{rdecoder_forward.1} parent=1 // pred_region
      _
    $region21: #{rdecoder_forward.1} parent=1 // pred_fallthru
      _
    // Predicated region
    $region22: #{rdecoder_forward.1} parent=1 // pred_check
      _
    $region23: #{rdecoder_forward.1} parent=1 // pred_check_branch
      %55 = sbr.rel (0) target = $region25
    $region24: #{rdecoder_forward.1} parent=1 // pred_region
      _
    $region25: #{rdecoder_forward.1} parent=1 // pred_fallthru
      _
    // Predicated region
    $region26: #{rdecoder_forward.1} parent=1 // pred_check
      _
    $region27: #{rdecoder_forward.1} parent=1 // pred_check_branch
      %57 = sbr.rel (0) target = $region29
    $region28: #{rdecoder_forward.1} parent=1 // pred_region
      %59 = vsyncadd [#allocation7], 0
      %s60 = sshll.u32 %s6, 4
      %s61 = int_to_ptr.hbm [resolvable:$true] %s60
      %s62 = sshll.u32 [#allocation8], 4
      %s63 = int_to_ptr.vmem [resolvable:$true] %s62
      %68 = dma.hbm_to_vmem [thread:$0]  %s61, 6144, %s63, [#allocation7], 384, 384, 24
    $region29: #{rdecoder_forward.1} parent=1 // pred_fallthru
      _
    // Predicated region
    $region30: #{rdecoder_forward.1} parent=1 // pred_check
      _
    $region31: #{rdecoder_forward.1} parent=1 // pred_check_branch
      %70 = sbr.rel (0) target = $region33
    $region32: #{rdecoder_forward.1} parent=1 // pred_region
      %72 = vsyncadd [#allocation10], 0
      %s73 = sshll.u32 %s7, 4
      %s74 = int_to_ptr.hbm [resolvable:$true] %s73
      %s75 = sshll.u32 [#allocation9], 4
      %s76 = int_to_ptr.vmem [resolvable:$true] %s75
      %81 = dma.hbm_to_vmem [thread:$0]  %s74, 6144, %s76, [#allocation10], 384, 384, 24
    $region33: #{rdecoder_forward.1} parent=1 // pred_fallthru
      _
    // Predicated region
    $region34: #{rdecoder_forward.1} parent=1 // pred_check
      _
    $region35: #{rdecoder_forward.1} parent=1 // pred_check_branch
      %83 = sbr.rel (0) target = $region37
    $region36: #{rdecoder_forward.1} parent=1 // pred_region
      _
    $region37: #{rdecoder_forward.1} parent=1 // pred_fallthru
      _
    // Predicated region
    $region38: #{rdecoder_forward.1} parent=1 // pred_check
      _
    $region39: #{rdecoder_forward.1} parent=1 // pred_check_branch
      %85 = sbr.rel (0) target = $region41
    $region40: #{rdecoder_forward.1} parent=1 // pred_region
      _
    $region41: #{rdecoder_forward.1} parent=1 // pred_fallthru
      _
    // Predicated region
    $region42: #{rdecoder_forward.1} parent=1 // pred_check
      _
    $region43: #{rdecoder_forward.1} parent=1 // pred_check_branch
      %87 = sbr.rel (0) target = $region45
    $region44: #{rdecoder_forward.1} parent=1 // pred_region
      %89 = vsyncadd [#allocation10], 0
      %s90 = sshll.u32 %s10, 4
      %s91 = int_to_ptr.hbm [resolvable:$true] %s90
      %s92 = sshll.u32 [#allocation11], 4
      %s93 = int_to_ptr.vmem [resolvable:$true] %s92
      %98 = dma.hbm_to_vmem [thread:$0]  %s91, 2048, %s93, [#allocation10], 128, 128, 8
    $region45: #{rdecoder_forward.1} parent=1 // pred_fallthru
      _
    // Predicated region
    $region46: #{rdecoder_forward.1} parent=1 // pred_check
      _
    $region47: #{rdecoder_forward.1} parent=1 // pred_check_branch
      %100 = sbr.rel (0) target = $region49
    $region48: #{rdecoder_forward.1} parent=1 // pred_region
      _
    $region49: #{rdecoder_forward.1} parent=1 // pred_fallthru
      _
    // Predicated region
    $region50: #{rdecoder_forward.1} parent=1 // pred_check
      _
    $region51: #{rdecoder_forward.1} parent=1 // pred_check_branch
      %102 = sbr.rel (0) target = $region53
    $region52: #{rdecoder_forward.1} parent=1 // pred_region
      %104 = dma.done [#allocation5], 6144
    $region53: #{rdecoder_forward.1} parent=1 // pred_fallthru
      _
    // Predicated region
    $region54: #{rdecoder_forward.1} parent=1 // pred_check
      _
    $region55: #{rdecoder_forward.1} parent=1 // pred_check_branch
      %106 = sbr.rel (0) target = $region57
    $region56: #{rdecoder_forward.1} parent=1 // pred_region
      %108 = dma.done [#allocation7], 6144
    $region57: #{rdecoder_forward.1} parent=1 // pred_fallthru
      _
    // Predicated region
    $region58: #{rdecoder_forward.1} parent=1 // pred_check
      _
    $region59: #{rdecoder_forward.1} parent=1 // pred_check_branch
      %110 = sbr.rel (0) target = $region61
    $region60: #{rdecoder_forward.1} parent=1 // pred_region
      %112 = dma.done [#allocation7], 6144
    $region61: #{rdecoder_forward.1} parent=1 // pred_fallthru
      _
    // Predicated region
    $region62: #{rdecoder_forward.1} parent=1 // pred_check
      _
    $region63: #{rdecoder_forward.1} parent=1 // pred_check_branch
      %114 = sbr.rel (0) target = $region65
    $region64: #{rdecoder_forward.1} parent=1 // pred_region
      %116 = dma.done [#allocation10], 6144
    $region65: #{rdecoder_forward.1} parent=1 // pred_fallthru
      _
    // Predicated region
    $region66: #{rdecoder_forward.1} parent=1 // pred_check
      _
    $region67: #{rdecoder_forward.1} parent=1 // pred_check_branch
      %118 = sbr.rel (0) target = $region69
    $region68: #{rdecoder_forward.1} parent=1 // pred_region
      %120 = dma.done [#allocation10], 2048
    $region69: #{rdecoder_forward.1} parent=1 // pred_fallthru
      _
    %v121 = vld [vmem:[#allocation6] sm:$0xff]
    %v122 = vld [vmem:[#allocation6 + $0x8] sm:$0xff]
    %v123 = vld [vmem:[#allocation6 + $0x10] sm:$0xff]
    %v124 = vld [vmem:[#allocation6 + $0x18] sm:$0xff]
    %v125 = vld [vmem:[#allocation6 + $0x20] sm:$0xff]
    %v126 = vld [vmem:[#allocation6 + $0x28] sm:$0xff]
    %v127 = vld [vmem:[#allocation6 + $0x30] sm:$0xff]
    %v128 = vld [vmem:[#allocation6 + $0x38] sm:$0xff]
    %v129 = vld [vmem:[#allocation6 + $0x40] sm:$0xff]
    %v130 = vld [vmem:[#allocation6 + $0x48] sm:$0xff]
    %v131 = vld [vmem:[#allocation6 + $0x50] sm:$0xff]
    %v132 = vld [vmem:[#allocation6 + $0x58] sm:$0xff]
    %v133 = vld [vmem:[#allocation6 + $0x60] sm:$0xff]
    %v134 = vld [vmem:[#allocation6 + $0x68] sm:$0xff]
    %v135 = vld [vmem:[#allocation6 + $0x70] sm:$0xff]
    %v136 = vld [vmem:[#allocation6 + $0x78] sm:$0xff]
    %v137 = vld [vmem:[#allocation6 + $0x80] sm:$0xff]
    %v138 = vld [vmem:[#allocation6 + $0x88] sm:$0xff]
    %v139 = vld [vmem:[#allocation6 + $0x90] sm:$0xff]
    %v140 = vld [vmem:[#allocation6 + $0x98] sm:$0xff]
    %v141 = vld [vmem:[#allocation6 + $0xa0] sm:$0xff]
    %v142 = vld [vmem:[#allocation6 + $0xa8] sm:$0xff]
    %v143 = vld [vmem:[#allocation6 + $0xb0] sm:$0xff]
    %v144 = vld [vmem:[#allocation6 + $0xb8] sm:$0xff]
    %v145 = vld [vmem:[#allocation6 + $0xc0] sm:$0xff]
    %v146 = vld [vmem:[#allocation6 + $0xc8] sm:$0xff]
    %v147 = vld [vmem:[#allocation6 + $0xd0] sm:$0xff]
    %v148 = vld [vmem:[#allocation6 + $0xd8] sm:$0xff]
    %v149 = vld [vmem:[#allocation6 + $0xe0] sm:$0xff]
    %v150 = vld [vmem:[#allocation6 + $0xe8] sm:$0xff]
    %v151 = vld [vmem:[#allocation6 + $0xf0] sm:$0xff]
    %v152 = vld [vmem:[#allocation6 + $0xf8] sm:$0xff]
    %v153 = vld [vmem:[#allocation6 + $0x100] sm:$0xff]
    %v154 = vld [vmem:[#allocation6 + $0x108] sm:$0xff]
    %v155 = vld [vmem:[#allocation6 + $0x110] sm:$0xff]
    %v156 = vld [vmem:[#allocation6 + $0x118] sm:$0xff]
    %v157 = vld [vmem:[#allocation6 + $0x120] sm:$0xff]
    %v158 = vld [vmem:[#allocation6 + $0x128] sm:$0xff]
    %v159 = vld [vmem:[#allocation6 + $0x130] sm:$0xff]
    %v160 = vld [vmem:[#allocation6 + $0x138] sm:$0xff]
    %v161 = vld [vmem:[#allocation6 + $0x140] sm:$0xff]
    %v162 = vld [vmem:[#allocation6 + $0x148] sm:$0xff]
    %v163 = vld [vmem:[#allocation6 + $0x150] sm:$0xff]
    %v164 = vld [vmem:[#allocation6 + $0x158] sm:$0xff]
    %v165 = vld [vmem:[#allocation6 + $0x160] sm:$0xff]
    %v166 = vld [vmem:[#allocation6 + $0x168] sm:$0xff]
    %v167 = vld [vmem:[#allocation6 + $0x170] sm:$0xff]
    %v168 = vld [vmem:[#allocation6 + $0x178] sm:$0xff]
    %v169 = vld [vmem:[%s5] sm:$0x1]
    %v171 = vperm.slane %v169, 0
    %v173 = vld [vmem:[%s0] sm:$0xff]
    %v174 = vld [vmem:[#allocation4] sm:$0xff]
    %v175 = vld [vmem:[#allocation4 + $0x8] sm:$0xff]
    %v176 = vld [vmem:[#allocation4 + $0x10] sm:$0xff]
    %v177 = vld [vmem:[#allocation4 + $0x18] sm:$0xff]
    %v178 = vld [vmem:[#allocation4 + $0x20] sm:$0xff]
    %v179 = vld [vmem:[#allocation4 + $0x28] sm:$0xff]
    %v180 = vld [vmem:[#allocation4 + $0x30] sm:$0xff]
    %v181 = vld [vmem:[#allocation4 + $0x38] sm:$0xff]
    %v182 = vld [vmem:[#allocation4 + $0x40] sm:$0xff]
    %v183 = vld [vmem:[#allocation4 + $0x48] sm:$0xff]
    %v184 = vld [vmem:[#allocation4 + $0x50] sm:$0xff]
    %v185 = vld [vmem:[#allocation4 + $0x58] sm:$0xff]
    %v186 = vld [vmem:[#allocation4 + $0x60] sm:$0xff]
    %v187 = vld [vmem:[#allocation4 + $0x68] sm:$0xff]
    %v188 = vld [vmem:[#allocation4 + $0x70] sm:$0xff]
    %v189 = vld [vmem:[#allocation4 + $0x78] sm:$0xff]
    %v190 = vld [vmem:[#allocation4 + $0x80] sm:$0xff]
    %v191 = vld [vmem:[#allocation4 + $0x88] sm:$0xff]
    %v192 = vld [vmem:[#allocation4 + $0x90] sm:$0xff]
    %v193 = vld [vmem:[#allocation4 + $0x98] sm:$0xff]
    %v194 = vld [vmem:[#allocation4 + $0xa0] sm:$0xff]
    %v195 = vld [vmem:[#allocation4 + $0xa8] sm:$0xff]
    %v196 = vld [vmem:[#allocation4 + $0xb0] sm:$0xff]
    %v197 = vld [vmem:[#allocation4 + $0xb8] sm:$0xff]
    %v198 = vld [vmem:[#allocation4 + $0xc0] sm:$0xff]
    %v199 = vld [vmem:[#allocation4 + $0xc8] sm:$0xff]
    %v200 = vld [vmem:[#allocation4 + $0xd0] sm:$0xff]
    %v201 = vld [vmem:[#allocation4 + $0xd8] sm:$0xff]
    %v202 = vld [vmem:[#allocation4 + $0xe0] sm:$0xff]
    %v203 = vld [vmem:[#allocation4 + $0xe8] sm:$0xff]
    %v204 = vld [vmem:[#allocation4 + $0xf0] sm:$0xff]
    %v205 = vld [vmem:[#allocation4 + $0xf8] sm:$0xff]
    %v206 = vld [vmem:[#allocation4 + $0x100] sm:$0xff]
    %v207 = vld [vmem:[#allocation4 + $0x108] sm:$0xff]
    %v208 = vld [vmem:[#allocation4 + $0x110] sm:$0xff]
    %v209 = vld [vmem:[#allocation4 + $0x118] sm:$0xff]
    %v210 = vld [vmem:[#allocation4 + $0x120] sm:$0xff]
    %v211 = vld [vmem:[#allocation4 + $0x128] sm:$0xff]
    %v212 = vld [vmem:[#allocation4 + $0x130] sm:$0xff]
    %v213 = vld [vmem:[#allocation4 + $0x138] sm:$0xff]
    %v214 = vld [vmem:[#allocation4 + $0x140] sm:$0xff]
    %v215 = vld [vmem:[#allocation4 + $0x148] sm:$0xff]
    %v216 = vld [vmem:[#allocation4 + $0x150] sm:$0xff]
    %v217 = vld [vmem:[#allocation4 + $0x158] sm:$0xff]
    %v218 = vld [vmem:[#allocation4 + $0x160] sm:$0xff]
    %v219 = vld [vmem:[#allocation4 + $0x168] sm:$0xff]
    %v220 = vld [vmem:[#allocation4 + $0x170] sm:$0xff]
    %v221 = vld [vmem:[#allocation4 + $0x178] sm:$0xff]
    %v222 = vld [vmem:[%s4] sm:$0x7]
    %v224 = vperm.slane %v222, 0
    %v225 = vperm.slane %v222, 1
    %v226 = vperm.slane %v222, 2
    %230 = vmatpush.msra.mxu0 %v219
    %231 = vmatpush.msra.mxu0 %v216
    %232 = vmatpush.msra.mxu0 %v213
    %233 = vmatpush.msra.mxu0 %v210
    %234 = vmatpush.msra.mxu0 %v207
    %235 = vmatpush.msra.mxu0 %v204
    %236 = vmatpush.msra.mxu0 %v201
    %237 = vmatpush.msra.mxu0 %v198
    %238 = vmatpush.msra.mxu0 %v195
    %239 = vmatpush.msra.mxu0 %v192
    %240 = vmatpush.msra.mxu0 %v189
    %241 = vmatpush.msra.mxu0 %v186
    %242 = vmatpush.msra.mxu0 %v183
    %243 = vmatpush.msra.mxu0 %v180
    %244 = vmatpush.msra.mxu0 %v177
    %245 = vmatpush.msra.mxu0 %v174
    %246 = vmatmul.f32.gmra.mxu0 %v173
    %v247 = vpop.f32.mrf.mxu0
    %v248 = vadd.f32 %v224, %v247
    %249 = vdwg.mxu0
    %250 = vmatpush.msra.mxu0 %v220
    %251 = vmatpush.msra.mxu0 %v217
    %252 = vmatpush.msra.mxu0 %v214
    %253 = vmatpush.msra.mxu0 %v211
    %254 = vmatpush.msra.mxu0 %v208
    %255 = vmatpush.msra.mxu0 %v205
    %256 = vmatpush.msra.mxu0 %v202
    %257 = vmatpush.msra.mxu0 %v199
    %258 = vmatpush.msra.mxu0 %v196
    %259 = vmatpush.msra.mxu0 %v193
    %260 = vmatpush.msra.mxu0 %v190
    %261 = vmatpush.msra.mxu0 %v187
    %262 = vmatpush.msra.mxu0 %v184
    %263 = vmatpush.msra.mxu0 %v181
    %264 = vmatpush.msra.mxu0 %v178
    %265 = vmatpush.msra.mxu0 %v175
    %266 = vmatmul.f32.gmra.mxu0 %v173
    %v267 = vpop.f32.mrf.mxu0
    %v268 = vadd.f32 %v225, %v267
    %269 = vdwg.mxu0
    %270 = vmatpush.msra.mxu0 %v221
    %271 = vmatpush.msra.mxu0 %v218
    %272 = vmatpush.msra.mxu0 %v215
    %273 = vmatpush.msra.mxu0 %v212
    %274 = vmatpush.msra.mxu0 %v209
    %275 = vmatpush.msra.mxu0 %v206
    %276 = vmatpush.msra.mxu0 %v203
    %277 = vmatpush.msra.mxu0 %v200
    %278 = vmatpush.msra.mxu0 %v197
    %279 = vmatpush.msra.mxu0 %v194
    %280 = vmatpush.msra.mxu0 %v191
    %281 = vmatpush.msra.mxu0 %v188
    %282 = vmatpush.msra.mxu0 %v185
    %283 = vmatpush.msra.mxu0 %v182
    %284 = vmatpush.msra.mxu0 %v179
    %285 = vmatpush.msra.mxu0 %v176
    %286 = vmatmul.f32.gmra.mxu0 %v173
    %v287 = vpop.f32.mrf.mxu0
    %v288 = vadd.f32 %v226, %v287
    %289 = vdwg.mxu0
    %v290 = vld [vmem:[%s1] sm:$0xff]
    %291 = vmatpush.msra.mxu0 %v166
    %292 = vmatpush.msra.mxu0 %v163
    %293 = vmatpush.msra.mxu0 %v160
    %294 = vmatpush.msra.mxu0 %v157
    %295 = vmatpush.msra.mxu0 %v154
    %296 = vmatpush.msra.mxu0 %v151
    %297 = vmatpush.msra.mxu0 %v148
    %298 = vmatpush.msra.mxu0 %v145
    %299 = vmatpush.msra.mxu0 %v142
    %300 = vmatpush.msra.mxu0 %v139
    %301 = vmatpush.msra.mxu0 %v136
    %302 = vmatpush.msra.mxu0 %v133
    %303 = vmatpush.msra.mxu0 %v130
    %304 = vmatpush.msra.mxu0 %v127
    %305 = vmatpush.msra.mxu0 %v124
    %306 = vmatpush.msra.mxu0 %v121
    %307 = vmatmul.f32.gmra.mxu0 %v290
    %v308 = vpop.f32.mrf.mxu0
    %v309 = vadd.f32 0.0, %v308
    %310 = vdwg.mxu0
    %311 = vmatpush.msra.mxu0 %v167
    %312 = vmatpush.msra.mxu0 %v164
    %313 = vmatpush.msra.mxu0 %v161
    %314 = vmatpush.msra.mxu0 %v158
    %315 = vmatpush.msra.mxu0 %v155
    %316 = vmatpush.msra.mxu0 %v152
    %317 = vmatpush.msra.mxu0 %v149
    %318 = vmatpush.msra.mxu0 %v146
    %319 = vmatpush.msra.mxu0 %v143
    %320 = vmatpush.msra.mxu0 %v140
    %321 = vmatpush.msra.mxu0 %v137
    %322 = vmatpush.msra.mxu0 %v134
    %323 = vmatpush.msra.mxu0 %v131
    %324 = vmatpush.msra.mxu0 %v128
    %325 = vmatpush.msra.mxu0 %v125
    %326 = vmatpush.msra.mxu0 %v122
    %327 = vmatmul.f32.gmra.mxu0 %v290
    %v328 = vpop.f32.mrf.mxu0
    %v329 = vadd.f32 0.0, %v328
    %330 = vdwg.mxu0
    %331 = vmatpush.msra.mxu0 %v168
    %332 = vmatpush.msra.mxu0 %v165
    %333 = vmatpush.msra.mxu0 %v162
    %334 = vmatpush.msra.mxu0 %v159
    %335 = vmatpush.msra.mxu0 %v156
    %336 = vmatpush.msra.mxu0 %v153
    %337 = vmatpush.msra.mxu0 %v150
    %338 = vmatpush.msra.mxu0 %v147
    %339 = vmatpush.msra.mxu0 %v144
    %340 = vmatpush.msra.mxu0 %v141
    %341 = vmatpush.msra.mxu0 %v138
    %342 = vmatpush.msra.mxu0 %v135
    %343 = vmatpush.msra.mxu0 %v132
    %344 = vmatpush.msra.mxu0 %v129
    %345 = vmatpush.msra.mxu0 %v126
    %346 = vmatpush.msra.mxu0 %v123
    %347 = vmatmul.f32.gmra.mxu0 %v290
    %v348 = vpop.f32.mrf.mxu0
    %v349 = vadd.f32 0.0, %v348
    %350 = vdwg.mxu0
    %v351 = vadd.f32 %v248, %v309
    %v352 = vxor.u32 %v351, 2147483648
    %v353 = vmul.f32 %v352, 1.442695
    %v354 = vpow.pop %v353
    %v355 = vadd.f32 %v354, 1.0
    %v356 = vrcp.pop %v355
    %v357 = vmul.f32 %v355, %v356
    %v358 = vsub.f32 1.0, %v357
    %v359 = vmul.f32 %v356, %v358
    %v360 = vadd.f32 %v356, %v359
    %vm361 = vweird.f32 %v355
    %vm362 = vweird.f32 %v356
    %vm363 = vmor %vm361, %vm362
    %v364 = vsel %vm363, %v356, %v360
    %v365 = vand.u32 2147483647, %v355
    %vm366 = vcmp.eq.f32.partialorder %v365, 8.507059e+37
    %v367 = vand.u32 %v355, 2147483648
    %v368 = vor.u32 1.1754944e-38, %v367
    %v369 = vsel %vm366, %v368, %v364
    %v370 = vmul.f32 1.0, %v369
    %v371 = vadd.f32 %v268, %v329
    %v372 = vxor.u32 %v371, 2147483648
    %v373 = vmul.f32 %v372, 1.442695
    %v374 = vpow.pop %v373
    %v375 = vadd.f32 %v374, 1.0
    %v376 = vrcp.pop %v375
    %v377 = vmul.f32 %v375, %v376
    %v378 = vsub.f32 1.0, %v377
    %v379 = vmul.f32 %v376, %v378
    %v380 = vadd.f32 %v376, %v379
    %vm381 = vweird.f32 %v375
    %vm382 = vweird.f32 %v376
    %vm383 = vmor %vm381, %vm382
    %v384 = vsel %vm383, %v376, %v380
    %v385 = vand.u32 2147483647, %v375
    %vm386 = vcmp.eq.f32.partialorder %v385, 8.507059e+37
    %v387 = vand.u32 %v375, 2147483648
    %v388 = vor.u32 1.1754944e-38, %v387
    %v389 = vsel %vm386, %v388, %v384
    %v390 = vmul.f32 1.0, %v389
    %v391 = vadd.f32 %v349, %v171
    %v392 = vmul.f32 %v370, %v391
    %v393 = vadd.f32 %v288, %v392
    %v394 = vtanh.pop %v393
    %v395 = vsub.f32 %v290, %v394
    %v396 = vmul.f32 %v390, %v395
    %v397 = vadd.f32 %v394, %v396
    %398 = vst [vmem:[#allocation2] sm:$0xff] %v397
    %399 = vmatpush.msra.mxu0 %v166
    %400 = vmatpush.msra.mxu0 %v163
    %401 = vmatpush.msra.mxu0 %v160
    %402 = vmatpush.msra.mxu0 %v157
    %403 = vmatpush.msra.mxu0 %v154
    %404 = vmatpush.msra.mxu0 %v151
    %405 = vmatpush.msra.mxu0 %v148
    %406 = vmatpush.msra.mxu0 %v145
    %407 = vmatpush.msra.mxu0 %v142
    %408 = vmatpush.msra.mxu0 %v139
    %409 = vmatpush.msra.mxu0 %v136
    %410 = vmatpush.msra.mxu0 %v133
    %411 = vmatpush.msra.mxu0 %v130
    %412 = vmatpush.msra.mxu0 %v127
    %413 = vmatpush.msra.mxu0 %v124
    %414 = vmatpush.msra.mxu0 %v121
    %415 = vmatmul.f32.gmra.mxu0 %v397
    %v416 = vpop.f32.mrf.mxu0
    %v417 = vadd.f32 0.0, %v416
    %418 = vdwg.mxu0
    %419 = vmatpush.msra.mxu0 %v167
    %420 = vmatpush.msra.mxu0 %v164
    %421 = vmatpush.msra.mxu0 %v161
    %422 = vmatpush.msra.mxu0 %v158
    %423 = vmatpush.msra.mxu0 %v155
    %424 = vmatpush.msra.mxu0 %v152
    %425 = vmatpush.msra.mxu0 %v149
    %426 = vmatpush.msra.mxu0 %v146
    %427 = vmatpush.msra.mxu0 %v143
    %428 = vmatpush.msra.mxu0 %v140
    %429 = vmatpush.msra.mxu0 %v137
    %430 = vmatpush.msra.mxu0 %v134
    %431 = vmatpush.msra.mxu0 %v131
    %432 = vmatpush.msra.mxu0 %v128
    %433 = vmatpush.msra.mxu0 %v125
    %434 = vmatpush.msra.mxu0 %v122
    %435 = vmatmul.f32.gmra.mxu0 %v397
    %v436 = vpop.f32.mrf.mxu0
    %v437 = vadd.f32 0.0, %v436
    %438 = vdwg.mxu0
    %439 = vmatpush.msra.mxu0 %v168
    %440 = vmatpush.msra.mxu0 %v165
    %441 = vmatpush.msra.mxu0 %v162
    %442 = vmatpush.msra.mxu0 %v159
    %443 = vmatpush.msra.mxu0 %v156
    %444 = vmatpush.msra.mxu0 %v153
    %445 = vmatpush.msra.mxu0 %v150
    %446 = vmatpush.msra.mxu0 %v147
    %447 = vmatpush.msra.mxu0 %v144
    %448 = vmatpush.msra.mxu0 %v141
    %449 = vmatpush.msra.mxu0 %v138
    %450 = vmatpush.msra.mxu0 %v135
    %451 = vmatpush.msra.mxu0 %v132
    %452 = vmatpush.msra.mxu0 %v129
    %453 = vmatpush.msra.mxu0 %v126
    %454 = vmatpush.msra.mxu0 %v123
    %455 = vmatmul.f32.gmra.mxu0 %v397
    %v456 = vpop.f32.mrf.mxu0
    %v457 = vadd.f32 0.0, %v456
    %458 = vdwg.mxu0
    %v459 = vadd.f32 %v248, %v417
    %v460 = vxor.u32 %v459, 2147483648
    %v461 = vmul.f32 %v460, 1.442695
    %v462 = vpow.pop %v461
    %v463 = vadd.f32 %v462, 1.0
    %v464 = vrcp.pop %v463
    %v465 = vmul.f32 %v463, %v464
    %v466 = vsub.f32 1.0, %v465
    %v467 = vmul.f32 %v464, %v466
    %v468 = vadd.f32 %v464, %v467
    %vm469 = vweird.f32 %v463
    %vm470 = vweird.f32 %v464
    %vm471 = vmor %vm469, %vm470
    %v472 = vsel %vm471, %v464, %v468
    %v473 = vand.u32 2147483647, %v463
    %vm474 = vcmp.eq.f32.partialorder %v473, 8.507059e+37
    %v475 = vand.u32 %v463, 2147483648
    %v476 = vor.u32 1.1754944e-38, %v475
    %v477 = vsel %vm474, %v476, %v472
    %v478 = vmul.f32 1.0, %v477
    %v479 = vadd.f32 %v268, %v437
    %v480 = vxor.u32 %v479, 2147483648
    %v481 = vmul.f32 %v480, 1.442695
    %v482 = vpow.pop %v481
    %v483 = vadd.f32 %v482, 1.0
    %v484 = vrcp.pop %v483
    %v485 = vmul.f32 %v483, %v484
    %v486 = vsub.f32 1.0, %v485
    %v487 = vmul.f32 %v484, %v486
    %v488 = vadd.f32 %v484, %v487
    %vm489 = vweird.f32 %v483
    %vm490 = vweird.f32 %v484
    %vm491 = vmor %vm489, %vm490
    %v492 = vsel %vm491, %v484, %v488
    %v493 = vand.u32 2147483647, %v483
    %vm494 = vcmp.eq.f32.partialorder %v493, 8.507059e+37
    %v495 = vand.u32 %v483, 2147483648
    %v496 = vor.u32 1.1754944e-38, %v495
    %v497 = vsel %vm494, %v496, %v492
    %v498 = vmul.f32 1.0, %v497
    %v499 = vadd.f32 %v457, %v171
    %v500 = vmul.f32 %v478, %v499
    %v501 = vadd.f32 %v288, %v500
    %v502 = vtanh.pop %v501
    %v503 = vsub.f32 %v397, %v502
    %v504 = vmul.f32 %v498, %v503
    %v505 = vadd.f32 %v502, %v504
    %s506 = scalar_lea.vmem [#allocation2], 8
    %507 = vst [vmem:[%s506] sm:$0xff] %v505
    %508 = vmatpush.msra.mxu0 %v166
    %509 = vmatpush.msra.mxu0 %v163
    %510 = vmatpush.msra.mxu0 %v160
    %511 = vmatpush.msra.mxu0 %v157
    %512 = vmatpush.msra.mxu0 %v154
    %513 = vmatpush.msra.mxu0 %v151
    %514 = vmatpush.msra.mxu0 %v148
    %515 = vmatpush.msra.mxu0 %v145
    %516 = vmatpush.msra.mxu0 %v142
    %517 = vmatpush.msra.mxu0 %v139
    %518 = vmatpush.msra.mxu0 %v136
    %519 = vmatpush.msra.mxu0 %v133
    %520 = vmatpush.msra.mxu0 %v130
    %521 = vmatpush.msra.mxu0 %v127
    %522 = vmatpush.msra.mxu0 %v124
    %523 = vmatpush.msra.mxu0 %v121
    %524 = vmatmul.f32.gmra.mxu0 %v505
    %v525 = vpop.f32.mrf.mxu0
    %v526 = vadd.f32 0.0, %v525
    %527 = vdwg.mxu0
    %528 = vmatpush.msra.mxu0 %v167
    %529 = vmatpush.msra.mxu0 %v164
    %530 = vmatpush.msra.mxu0 %v161
    %531 = vmatpush.msra.mxu0 %v158
    %532 = vmatpush.msra.mxu0 %v155
    %533 = vmatpush.msra.mxu0 %v152
    %534 = vmatpush.msra.mxu0 %v149
    %535 = vmatpush.msra.mxu0 %v146
    %536 = vmatpush.msra.mxu0 %v143
    %537 = vmatpush.msra.mxu0 %v140
    %538 = vmatpush.msra.mxu0 %v137
    %539 = vmatpush.msra.mxu0 %v134
    %540 = vmatpush.msra.mxu0 %v131
    %541 = vmatpush.msra.mxu0 %v128
    %542 = vmatpush.msra.mxu0 %v125
    %543 = vmatpush.msra.mxu0 %v122
    %544 = vmatmul.f32.gmra.mxu0 %v505
    %v545 = vpop.f32.mrf.mxu0
    %v546 = vadd.f32 0.0, %v545
    %547 = vdwg.mxu0
    %548 = vmatpush.msra.mxu0 %v168
    %549 = vmatpush.msra.mxu0 %v165
    %550 = vmatpush.msra.mxu0 %v162
    %551 = vmatpush.msra.mxu0 %v159
    %552 = vmatpush.msra.mxu0 %v156
    %553 = vmatpush.msra.mxu0 %v153
    %554 = vmatpush.msra.mxu0 %v150
    %555 = vmatpush.msra.mxu0 %v147
    %556 = vmatpush.msra.mxu0 %v144
    %557 = vmatpush.msra.mxu0 %v141
    %558 = vmatpush.msra.mxu0 %v138
    %559 = vmatpush.msra.mxu0 %v135
    %560 = vmatpush.msra.mxu0 %v132
    %561 = vmatpush.msra.mxu0 %v129
    %562 = vmatpush.msra.mxu0 %v126
    %563 = vmatpush.msra.mxu0 %v123
    %564 = vmatmul.f32.gmra.mxu0 %v505
    %v565 = vpop.f32.mrf.mxu0
    %v566 = vadd.f32 0.0, %v565
    %567 = vdwg.mxu0
    %v568 = vadd.f32 %v248, %v526
    %v569 = vxor.u32 %v568, 2147483648
    %v570 = vmul.f32 %v569, 1.442695
    %v571 = vpow.pop %v570
    %v572 = vadd.f32 %v571, 1.0
    %v573 = vrcp.pop %v572
    %v574 = vmul.f32 %v572, %v573
    %v575 = vsub.f32 1.0, %v574
    %v576 = vmul.f32 %v573, %v575
    %v577 = vadd.f32 %v573, %v576
    %vm578 = vweird.f32 %v572
    %vm579 = vweird.f32 %v573
    %vm580 = vmor %vm578, %vm579
    %v581 = vsel %vm580, %v573, %v577
    %v582 = vand.u32 2147483647, %v572
    %vm583 = vcmp.eq.f32.partialorder %v582, 8.507059e+37
    %v584 = vand.u32 %v572, 2147483648
    %v585 = vor.u32 1.1754944e-38, %v584
    %v586 = vsel %vm583, %v585, %v581
    %v587 = vmul.f32 1.0, %v586
    %v588 = vadd.f32 %v268, %v546
    %v589 = vxor.u32 %v588, 2147483648
    %v590 = vmul.f32 %v589, 1.442695
    %v591 = vpow.pop %v590
    %v592 = vadd.f32 %v591, 1.0
    %v593 = vrcp.pop %v592
    %v594 = vmul.f32 %v592, %v593
    %v595 = vsub.f32 1.0, %v594
    %v596 = vmul.f32 %v593, %v595
    %v597 = vadd.f32 %v593, %v596
    %vm598 = vweird.f32 %v592
    %vm599 = vweird.f32 %v593
    %vm600 = vmor %vm598, %vm599
    %v601 = vsel %vm600, %v593, %v597
    %v602 = vand.u32 2147483647, %v592
    %vm603 = vcmp.eq.f32.partialorder %v602, 8.507059e+37
    %v604 = vand.u32 %v592, 2147483648
    %v605 = vor.u32 1.1754944e-38, %v604
    %v606 = vsel %vm603, %v605, %v601
    %v607 = vmul.f32 1.0, %v606
    %v608 = vadd.f32 %v566, %v171
    %v609 = vmul.f32 %v587, %v608
    %v610 = vadd.f32 %v288, %v609
    %v611 = vtanh.pop %v610
    %v612 = vsub.f32 %v505, %v611
    %v613 = vmul.f32 %v607, %v612
    %v614 = vadd.f32 %v611, %v613
    %s615 = scalar_lea.vmem [#allocation2], 16
    %616 = vst [vmem:[%s615] sm:$0xff] %v614
    %617 = vmatpush.msra.mxu0 %v166
    %618 = vmatpush.msra.mxu0 %v163
    %619 = vmatpush.msra.mxu0 %v160
    %620 = vmatpush.msra.mxu0 %v157
    %621 = vmatpush.msra.mxu0 %v154
    %622 = vmatpush.msra.mxu0 %v151
    %623 = vmatpush.msra.mxu0 %v148
    %624 = vmatpush.msra.mxu0 %v145
    %625 = vmatpush.msra.mxu0 %v142
    %626 = vmatpush.msra.mxu0 %v139
    %627 = vmatpush.msra.mxu0 %v136
    %628 = vmatpush.msra.mxu0 %v133
    %629 = vmatpush.msra.mxu0 %v130
    %630 = vmatpush.msra.mxu0 %v127
    %631 = vmatpush.msra.mxu0 %v124
    %632 = vmatpush.msra.mxu0 %v121
    %633 = vmatmul.f32.gmra.mxu0 %v614
    %v634 = vpop.f32.mrf.mxu0
    %v635 = vadd.f32 0.0, %v634
    %636 = vdwg.mxu0
    %637 = vmatpush.msra.mxu0 %v167
    %638 = vmatpush.msra.mxu0 %v164
    %639 = vmatpush.msra.mxu0 %v161
    %640 = vmatpush.msra.mxu0 %v158
    %641 = vmatpush.msra.mxu0 %v155
    %642 = vmatpush.msra.mxu0 %v152
    %643 = vmatpush.msra.mxu0 %v149
    %644 = vmatpush.msra.mxu0 %v146
    %645 = vmatpush.msra.mxu0 %v143
    %646 = vmatpush.msra.mxu0 %v140
    %647 = vmatpush.msra.mxu0 %v137
    %648 = vmatpush.msra.mxu0 %v134
    %649 = vmatpush.msra.mxu0 %v131
    %650 = vmatpush.msra.mxu0 %v128
    %651 = vmatpush.msra.mxu0 %v125
    %652 = vmatpush.msra.mxu0 %v122
    %653 = vmatmul.f32.gmra.mxu0 %v614
    %v654 = vpop.f32.mrf.mxu0
    %v655 = vadd.f32 0.0, %v654
    %656 = vdwg.mxu0
    %657 = vmatpush.msra.mxu0 %v168
    %658 = vmatpush.msra.mxu0 %v165
    %659 = vmatpush.msra.mxu0 %v162
    %660 = vmatpush.msra.mxu0 %v159
    %661 = vmatpush.msra.mxu0 %v156
    %662 = vmatpush.msra.mxu0 %v153
    %663 = vmatpush.msra.mxu0 %v150
    %664 = vmatpush.msra.mxu0 %v147
    %665 = vmatpush.msra.mxu0 %v144
    %666 = vmatpush.msra.mxu0 %v141
    %667 = vmatpush.msra.mxu0 %v138
    %668 = vmatpush.msra.mxu0 %v135
    %669 = vmatpush.msra.mxu0 %v132
    %670 = vmatpush.msra.mxu0 %v129
    %671 = vmatpush.msra.mxu0 %v126
    %672 = vmatpush.msra.mxu0 %v123
    %673 = vmatmul.f32.gmra.mxu0 %v614
    %v674 = vpop.f32.mrf.mxu0
    %v675 = vadd.f32 0.0, %v674
    %676 = vdwg.mxu0
    %v677 = vadd.f32 %v248, %v635
    %v678 = vxor.u32 %v677, 2147483648
    %v679 = vmul.f32 %v678, 1.442695
    %v680 = vpow.pop %v679
    %v681 = vadd.f32 %v680, 1.0
    %v682 = vrcp.pop %v681
    %v683 = vmul.f32 %v681, %v682
    %v684 = vsub.f32 1.0, %v683
    %v685 = vmul.f32 %v682, %v684
    %v686 = vadd.f32 %v682, %v685
    %vm687 = vweird.f32 %v681
    %vm688 = vweird.f32 %v682
    %vm689 = vmor %vm687, %vm688
    %v690 = vsel %vm689, %v682, %v686
    %v691 = vand.u32 2147483647, %v681
    %vm692 = vcmp.eq.f32.partialorder %v691, 8.507059e+37
    %v693 = vand.u32 %v681, 2147483648
    %v694 = vor.u32 1.1754944e-38, %v693
    %v695 = vsel %vm692, %v694, %v690
    %v696 = vmul.f32 1.0, %v695
    %v697 = vadd.f32 %v268, %v655
    %v698 = vxor.u32 %v697, 2147483648
    %v699 = vmul.f32 %v698, 1.442695
    %v700 = vpow.pop %v699
    %v701 = vadd.f32 %v700, 1.0
    %v702 = vrcp.pop %v701
    %v703 = vmul.f32 %v701, %v702
    %v704 = vsub.f32 1.0, %v703
    %v705 = vmul.f32 %v702, %v704
    %v706 = vadd.f32 %v702, %v705
    %vm707 = vweird.f32 %v701
    %vm708 = vweird.f32 %v702
    %vm709 = vmor %vm707, %vm708
    %v710 = vsel %vm709, %v702, %v706
    %v711 = vand.u32 2147483647, %v701
    %vm712 = vcmp.eq.f32.partialorder %v711, 8.507059e+37
    %v713 = vand.u32 %v701, 2147483648
    %v714 = vor.u32 1.1754944e-38, %v713
    %v715 = vsel %vm712, %v714, %v710
    %v716 = vmul.f32 1.0, %v715
    %v717 = vadd.f32 %v675, %v171
    %v718 = vmul.f32 %v696, %v717
    %v719 = vadd.f32 %v288, %v718
    %v720 = vtanh.pop %v719
    %v721 = vsub.f32 %v614, %v720
    %v722 = vmul.f32 %v716, %v721
    %v723 = vadd.f32 %v720, %v722
    %s724 = scalar_lea.vmem [#allocation2], 24
    %725 = vst [vmem:[%s724] sm:$0xff] %v723
    %726 = vmatpush.msra.mxu0 %v166
    %727 = vmatpush.msra.mxu0 %v163
    %728 = vmatpush.msra.mxu0 %v160
    %729 = vmatpush.msra.mxu0 %v157
    %730 = vmatpush.msra.mxu0 %v154
    %731 = vmatpush.msra.mxu0 %v151
    %732 = vmatpush.msra.mxu0 %v148
    %733 = vmatpush.msra.mxu0 %v145
    %734 = vmatpush.msra.mxu0 %v142
    %735 = vmatpush.msra.mxu0 %v139
    %736 = vmatpush.msra.mxu0 %v136
    %737 = vmatpush.msra.mxu0 %v133
    %738 = vmatpush.msra.mxu0 %v130
    %739 = vmatpush.msra.mxu0 %v127
    %740 = vmatpush.msra.mxu0 %v124
    %741 = vmatpush.msra.mxu0 %v121
    %742 = vmatmul.f32.gmra.mxu0 %v723
    %v743 = vpop.f32.mrf.mxu0
    %v744 = vadd.f32 0.0, %v743
    %745 = vdwg.mxu0
    %746 = vmatpush.msra.mxu0 %v167
    %747 = vmatpush.msra.mxu0 %v164
    %748 = vmatpush.msra.mxu0 %v161
    %749 = vmatpush.msra.mxu0 %v158
    %750 = vmatpush.msra.mxu0 %v155
    %751 = vmatpush.msra.mxu0 %v152
    %752 = vmatpush.msra.mxu0 %v149
    %753 = vmatpush.msra.mxu0 %v146
    %754 = vmatpush.msra.mxu0 %v143
    %755 = vmatpush.msra.mxu0 %v140
    %756 = vmatpush.msra.mxu0 %v137
    %757 = vmatpush.msra.mxu0 %v134
    %758 = vmatpush.msra.mxu0 %v131
    %759 = vmatpush.msra.mxu0 %v128
    %760 = vmatpush.msra.mxu0 %v125
    %761 = vmatpush.msra.mxu0 %v122
    %762 = vmatmul.f32.gmra.mxu0 %v723
    %v763 = vpop.f32.mrf.mxu0
    %v764 = vadd.f32 0.0, %v763
    %765 = vdwg.mxu0
    %766 = vmatpush.msra.mxu0 %v168
    %767 = vmatpush.msra.mxu0 %v165
    %768 = vmatpush.msra.mxu0 %v162
    %769 = vmatpush.msra.mxu0 %v159
    %770 = vmatpush.msra.mxu0 %v156
    %771 = vmatpush.msra.mxu0 %v153
    %772 = vmatpush.msra.mxu0 %v150
    %773 = vmatpush.msra.mxu0 %v147
    %774 = vmatpush.msra.mxu0 %v144
    %775 = vmatpush.msra.mxu0 %v141
    %776 = vmatpush.msra.mxu0 %v138
    %777 = vmatpush.msra.mxu0 %v135
    %778 = vmatpush.msra.mxu0 %v132
    %779 = vmatpush.msra.mxu0 %v129
    %780 = vmatpush.msra.mxu0 %v126
    %781 = vmatpush.msra.mxu0 %v123
    %782 = vmatmul.f32.gmra.mxu0 %v723
    %v783 = vpop.f32.mrf.mxu0
    %v784 = vadd.f32 0.0, %v783
    %785 = vdwg.mxu0
    %v786 = vadd.f32 %v248, %v744
    %v787 = vxor.u32 %v786, 2147483648
    %v788 = vmul.f32 %v787, 1.442695
    %v789 = vpow.pop %v788
    %v790 = vadd.f32 %v789, 1.0
    %v791 = vrcp.pop %v790
    %v792 = vmul.f32 %v790, %v791
    %v793 = vsub.f32 1.0, %v792
    %v794 = vmul.f32 %v791, %v793
    %v795 = vadd.f32 %v791, %v794
    %vm796 = vweird.f32 %v790
    %vm797 = vweird.f32 %v791
    %vm798 = vmor %vm796, %vm797
    %v799 = vsel %vm798, %v791, %v795
    %v800 = vand.u32 2147483647, %v790
    %vm801 = vcmp.eq.f32.partialorder %v800, 8.507059e+37
    %v802 = vand.u32 %v790, 2147483648
    %v803 = vor.u32 1.1754944e-38, %v802
    %v804 = vsel %vm801, %v803, %v799
    %v805 = vmul.f32 1.0, %v804
    %v806 = vadd.f32 %v268, %v764
    %v807 = vxor.u32 %v806, 2147483648
    %v808 = vmul.f32 %v807, 1.442695
    %v809 = vpow.pop %v808
    %v810 = vadd.f32 %v809, 1.0
    %v811 = vrcp.pop %v810
    %v812 = vmul.f32 %v810, %v811
    %v813 = vsub.f32 1.0, %v812
    %v814 = vmul.f32 %v811, %v813
    %v815 = vadd.f32 %v811, %v814
    %vm816 = vweird.f32 %v810
    %vm817 = vweird.f32 %v811
    %vm818 = vmor %vm816, %vm817
    %v819 = vsel %vm818, %v811, %v815
    %v820 = vand.u32 2147483647, %v810
    %vm821 = vcmp.eq.f32.partialorder %v820, 8.507059e+37
    %v822 = vand.u32 %v810, 2147483648
    %v823 = vor.u32 1.1754944e-38, %v822
    %v824 = vsel %vm821, %v823, %v819
    %v825 = vmul.f32 1.0, %v824
    %v826 = vadd.f32 %v784, %v171
    %v827 = vmul.f32 %v805, %v826
    %v828 = vadd.f32 %v288, %v827
    %v829 = vtanh.pop %v828
    %v830 = vsub.f32 %v723, %v829
    %v831 = vmul.f32 %v825, %v830
    %v832 = vadd.f32 %v829, %v831
    %s833 = scalar_lea.vmem [#allocation2], 32
    %834 = vst [vmem:[%s833] sm:$0xff] %v832
    %835 = vmatpush.msra.mxu0 %v166
    %836 = vmatpush.msra.mxu0 %v163
    %837 = vmatpush.msra.mxu0 %v160
    %838 = vmatpush.msra.mxu0 %v157
    %839 = vmatpush.msra.mxu0 %v154
    %840 = vmatpush.msra.mxu0 %v151
    %841 = vmatpush.msra.mxu0 %v148
    %842 = vmatpush.msra.mxu0 %v145
    %843 = vmatpush.msra.mxu0 %v142
    %844 = vmatpush.msra.mxu0 %v139
    %845 = vmatpush.msra.mxu0 %v136
    %846 = vmatpush.msra.mxu0 %v133
    %847 = vmatpush.msra.mxu0 %v130
    %848 = vmatpush.msra.mxu0 %v127
    %849 = vmatpush.msra.mxu0 %v124
    %850 = vmatpush.msra.mxu0 %v121
    %851 = vmatmul.f32.gmra.mxu0 %v832
    %v852 = vpop.f32.mrf.mxu0
    %v853 = vadd.f32 0.0, %v852
    %854 = vdwg.mxu0
    %855 = vmatpush.msra.mxu0 %v167
    %856 = vmatpush.msra.mxu0 %v164
    %857 = vmatpush.msra.mxu0 %v161
    %858 = vmatpush.msra.mxu0 %v158
    %859 = vmatpush.msra.mxu0 %v155
    %860 = vmatpush.msra.mxu0 %v152
    %861 = vmatpush.msra.mxu0 %v149
    %862 = vmatpush.msra.mxu0 %v146
    %863 = vmatpush.msra.mxu0 %v143
    %864 = vmatpush.msra.mxu0 %v140
    %865 = vmatpush.msra.mxu0 %v137
    %866 = vmatpush.msra.mxu0 %v134
    %867 = vmatpush.msra.mxu0 %v131
    %868 = vmatpush.msra.mxu0 %v128
    %869 = vmatpush.msra.mxu0 %v125
    %870 = vmatpush.msra.mxu0 %v122
    %871 = vmatmul.f32.gmra.mxu0 %v832
    %v872 = vpop.f32.mrf.mxu0
    %v873 = vadd.f32 0.0, %v872
    %874 = vdwg.mxu0
    %875 = vmatpush.msra.mxu0 %v168
    %876 = vmatpush.msra.mxu0 %v165
    %877 = vmatpush.msra.mxu0 %v162
    %878 = vmatpush.msra.mxu0 %v159
    %879 = vmatpush.msra.mxu0 %v156
    %880 = vmatpush.msra.mxu0 %v153
    %881 = vmatpush.msra.mxu0 %v150
    %882 = vmatpush.msra.mxu0 %v147
    %883 = vmatpush.msra.mxu0 %v144
    %884 = vmatpush.msra.mxu0 %v141
    %885 = vmatpush.msra.mxu0 %v138
    %886 = vmatpush.msra.mxu0 %v135
    %887 = vmatpush.msra.mxu0 %v132
    %888 = vmatpush.msra.mxu0 %v129
    %889 = vmatpush.msra.mxu0 %v126
    %890 = vmatpush.msra.mxu0 %v123
    %891 = vmatmul.f32.gmra.mxu0 %v832
    %v892 = vpop.f32.mrf.mxu0
    %v893 = vadd.f32 0.0, %v892
    %894 = vdwg.mxu0
    %v895 = vadd.f32 %v248, %v853
    %v896 = vxor.u32 %v895, 2147483648
    %v897 = vmul.f32 %v896, 1.442695
    %v898 = vpow.pop %v897
    %v899 = vadd.f32 %v898, 1.0
    %v900 = vrcp.pop %v899
    %v901 = vmul.f32 %v899, %v900
    %v902 = vsub.f32 1.0, %v901
    %v903 = vmul.f32 %v900, %v902
    %v904 = vadd.f32 %v900, %v903
    %vm905 = vweird.f32 %v899
    %vm906 = vweird.f32 %v900
    %vm907 = vmor %vm905, %vm906
    %v908 = vsel %vm907, %v900, %v904
    %v909 = vand.u32 2147483647, %v899
    %vm910 = vcmp.eq.f32.partialorder %v909, 8.507059e+37
    %v911 = vand.u32 %v899, 2147483648
    %v912 = vor.u32 1.1754944e-38, %v911
    %v913 = vsel %vm910, %v912, %v908
    %v914 = vmul.f32 1.0, %v913
    %v915 = vadd.f32 %v268, %v873
    %v916 = vxor.u32 %v915, 2147483648
    %v917 = vmul.f32 %v916, 1.442695
    %v918 = vpow.pop %v917
    %v919 = vadd.f32 %v918, 1.0
    %v920 = vrcp.pop %v919
    %v921 = vmul.f32 %v919, %v920
    %v922 = vsub.f32 1.0, %v921
    %v923 = vmul.f32 %v920, %v922
    %v924 = vadd.f32 %v920, %v923
    %vm925 = vweird.f32 %v919
    %vm926 = vweird.f32 %v920
    %vm927 = vmor %vm925, %vm926
    %v928 = vsel %vm927, %v920, %v924
    %v929 = vand.u32 2147483647, %v919
    %vm930 = vcmp.eq.f32.partialorder %v929, 8.507059e+37
    %v931 = vand.u32 %v919, 2147483648
    %v932 = vor.u32 1.1754944e-38, %v931
    %v933 = vsel %vm930, %v932, %v928
    %v934 = vmul.f32 1.0, %v933
    %v935 = vadd.f32 %v893, %v171
    %v936 = vmul.f32 %v914, %v935
    %v937 = vadd.f32 %v288, %v936
    %v938 = vtanh.pop %v937
    %v939 = vsub.f32 %v832, %v938
    %v940 = vmul.f32 %v934, %v939
    %v941 = vadd.f32 %v938, %v940
    %s942 = scalar_lea.vmem [#allocation2], 40
    %943 = vst [vmem:[%s942] sm:$0xff] %v941
    %944 = vmatpush.msra.mxu0 %v166
    %945 = vmatpush.msra.mxu0 %v163
    %946 = vmatpush.msra.mxu0 %v160
    %947 = vmatpush.msra.mxu0 %v157
    %948 = vmatpush.msra.mxu0 %v154
    %949 = vmatpush.msra.mxu0 %v151
    %950 = vmatpush.msra.mxu0 %v148
    %951 = vmatpush.msra.mxu0 %v145
    %952 = vmatpush.msra.mxu0 %v142
    %953 = vmatpush.msra.mxu0 %v139
    %954 = vmatpush.msra.mxu0 %v136
    %955 = vmatpush.msra.mxu0 %v133
    %956 = vmatpush.msra.mxu0 %v130
    %957 = vmatpush.msra.mxu0 %v127
    %958 = vmatpush.msra.mxu0 %v124
    %959 = vmatpush.msra.mxu0 %v121
    %960 = vmatmul.f32.gmra.mxu0 %v941
    %v961 = vpop.f32.mrf.mxu0
    %v962 = vadd.f32 0.0, %v961
    %963 = vdwg.mxu0
    %964 = vmatpush.msra.mxu0 %v167
    %965 = vmatpush.msra.mxu0 %v164
    %966 = vmatpush.msra.mxu0 %v161
    %967 = vmatpush.msra.mxu0 %v158
    %968 = vmatpush.msra.mxu0 %v155
    %969 = vmatpush.msra.mxu0 %v152
    %970 = vmatpush.msra.mxu0 %v149
    %971 = vmatpush.msra.mxu0 %v146
    %972 = vmatpush.msra.mxu0 %v143
    %973 = vmatpush.msra.mxu0 %v140
    %974 = vmatpush.msra.mxu0 %v137
    %975 = vmatpush.msra.mxu0 %v134
    %976 = vmatpush.msra.mxu0 %v131
    %977 = vmatpush.msra.mxu0 %v128
    %978 = vmatpush.msra.mxu0 %v125
    %979 = vmatpush.msra.mxu0 %v122
    %980 = vmatmul.f32.gmra.mxu0 %v941
    %v981 = vpop.f32.mrf.mxu0
    %v982 = vadd.f32 0.0, %v981
    %983 = vdwg.mxu0
    %984 = vmatpush.msra.mxu0 %v168
    %985 = vmatpush.msra.mxu0 %v165
    %986 = vmatpush.msra.mxu0 %v162
    %987 = vmatpush.msra.mxu0 %v159
    %988 = vmatpush.msra.mxu0 %v156
    %989 = vmatpush.msra.mxu0 %v153
    %990 = vmatpush.msra.mxu0 %v150
    %991 = vmatpush.msra.mxu0 %v147
    %992 = vmatpush.msra.mxu0 %v144
    %993 = vmatpush.msra.mxu0 %v141
    %994 = vmatpush.msra.mxu0 %v138
    %995 = vmatpush.msra.mxu0 %v135
    %996 = vmatpush.msra.mxu0 %v132
    %997 = vmatpush.msra.mxu0 %v129
    %998 = vmatpush.msra.mxu0 %v126
    %999 = vmatpush.msra.mxu0 %v123
    %1000 = vmatmul.f32.gmra.mxu0 %v941
    %v1001 = vpop.f32.mrf.mxu0
    %v1002 = vadd.f32 0.0, %v1001
    %1003 = vdwg.mxu0
    %v1004 = vadd.f32 %v248, %v962
    %v1005 = vxor.u32 %v1004, 2147483648
    %v1006 = vmul.f32 %v1005, 1.442695
    %v1007 = vpow.pop %v1006
    %v1008 = vadd.f32 %v1007, 1.0
    %v1009 = vrcp.pop %v1008
    %v1010 = vmul.f32 %v1008, %v1009
    %v1011 = vsub.f32 1.0, %v1010
    %v1012 = vmul.f32 %v1009, %v1011
    %v1013 = vadd.f32 %v1009, %v1012
    %vm1014 = vweird.f32 %v1008
    %vm1015 = vweird.f32 %v1009
    %vm1016 = vmor %vm1014, %vm1015
    %v1017 = vsel %vm1016, %v1009, %v1013
    %v1018 = vand.u32 2147483647, %v1008
    %vm1019 = vcmp.eq.f32.partialorder %v1018, 8.507059e+37
    %v1020 = vand.u32 %v1008, 2147483648
    %v1021 = vor.u32 1.1754944e-38, %v1020
    %v1022 = vsel %vm1019, %v1021, %v1017
    %v1023 = vmul.f32 1.0, %v1022
    %v1024 = vadd.f32 %v268, %v982
    %v1025 = vxor.u32 %v1024, 2147483648
    %v1026 = vmul.f32 %v1025, 1.442695
    %v1027 = vpow.pop %v1026
    %v1028 = vadd.f32 %v1027, 1.0
    %v1029 = vrcp.pop %v1028
    %v1030 = vmul.f32 %v1028, %v1029
    %v1031 = vsub.f32 1.0, %v1030
    %v1032 = vmul.f32 %v1029, %v1031
    %v1033 = vadd.f32 %v1029, %v1032
    %vm1034 = vweird.f32 %v1028
    %vm1035 = vweird.f32 %v1029
    %vm1036 = vmor %vm1034, %vm1035
    %v1037 = vsel %vm1036, %v1029, %v1033
    %v1038 = vand.u32 2147483647, %v1028
    %vm1039 = vcmp.eq.f32.partialorder %v1038, 8.507059e+37
    %v1040 = vand.u32 %v1028, 2147483648
    %v1041 = vor.u32 1.1754944e-38, %v1040
    %v1042 = vsel %vm1039, %v1041, %v1037
    %v1043 = vmul.f32 1.0, %v1042
    %v1044 = vadd.f32 %v1002, %v171
    %v1045 = vmul.f32 %v1023, %v1044
    %v1046 = vadd.f32 %v288, %v1045
    %v1047 = vtanh.pop %v1046
    %v1048 = vsub.f32 %v941, %v1047
    %v1049 = vmul.f32 %v1043, %v1048
    %v1050 = vadd.f32 %v1047, %v1049
    %s1051 = scalar_lea.vmem [#allocation2], 48
    %1052 = vst [vmem:[%s1051] sm:$0xff] %v1050
    %1053 = vmatpush.msra.mxu0 %v166
    %1054 = vmatpush.msra.mxu0 %v163
    %1055 = vmatpush.msra.mxu0 %v160
    %1056 = vmatpush.msra.mxu0 %v157
    %1057 = vmatpush.msra.mxu0 %v154
    %1058 = vmatpush.msra.mxu0 %v151
    %1059 = vmatpush.msra.mxu0 %v148
    %1060 = vmatpush.msra.mxu0 %v145
    %1061 = vmatpush.msra.mxu0 %v142
    %1062 = vmatpush.msra.mxu0 %v139
    %1063 = vmatpush.msra.mxu0 %v136
    %1064 = vmatpush.msra.mxu0 %v133
    %1065 = vmatpush.msra.mxu0 %v130
    %1066 = vmatpush.msra.mxu0 %v127
    %1067 = vmatpush.msra.mxu0 %v124
    %1068 = vmatpush.msra.mxu0 %v121
    %1069 = vmatmul.f32.gmra.mxu0 %v1050
    %v1070 = vpop.f32.mrf.mxu0
    %v1071 = vadd.f32 0.0, %v1070
    %1072 = vdwg.mxu0
    %1073 = vmatpush.msra.mxu0 %v167
    %1074 = vmatpush.msra.mxu0 %v164
    %1075 = vmatpush.msra.mxu0 %v161
    %1076 = vmatpush.msra.mxu0 %v158
    %1077 = vmatpush.msra.mxu0 %v155
    %1078 = vmatpush.msra.mxu0 %v152
    %1079 = vmatpush.msra.mxu0 %v149
    %1080 = vmatpush.msra.mxu0 %v146
    %1081 = vmatpush.msra.mxu0 %v143
    %1082 = vmatpush.msra.mxu0 %v140
    %1083 = vmatpush.msra.mxu0 %v137
    %1084 = vmatpush.msra.mxu0 %v134
    %1085 = vmatpush.msra.mxu0 %v131
    %1086 = vmatpush.msra.mxu0 %v128
    %1087 = vmatpush.msra.mxu0 %v125
    %1088 = vmatpush.msra.mxu0 %v122
    %1089 = vmatmul.f32.gmra.mxu0 %v1050
    %v1090 = vpop.f32.mrf.mxu0
    %v1091 = vadd.f32 0.0, %v1090
    %1092 = vdwg.mxu0
    %1093 = vmatpush.msra.mxu0 %v168
    %1094 = vmatpush.msra.mxu0 %v165
    %1095 = vmatpush.msra.mxu0 %v162
    %1096 = vmatpush.msra.mxu0 %v159
    %1097 = vmatpush.msra.mxu0 %v156
    %1098 = vmatpush.msra.mxu0 %v153
    %1099 = vmatpush.msra.mxu0 %v150
    %1100 = vmatpush.msra.mxu0 %v147
    %1101 = vmatpush.msra.mxu0 %v144
    %1102 = vmatpush.msra.mxu0 %v141
    %1103 = vmatpush.msra.mxu0 %v138
    %1104 = vmatpush.msra.mxu0 %v135
    %1105 = vmatpush.msra.mxu0 %v132
    %1106 = vmatpush.msra.mxu0 %v129
    %1107 = vmatpush.msra.mxu0 %v126
    %1108 = vmatpush.msra.mxu0 %v123
    %1109 = vmatmul.f32.gmra.mxu0 %v1050
    %v1110 = vpop.f32.mrf.mxu0
    %v1111 = vadd.f32 0.0, %v1110
    %1112 = vdwg.mxu0
    %v1113 = vadd.f32 %v248, %v1071
    %v1114 = vxor.u32 %v1113, 2147483648
    %v1115 = vmul.f32 %v1114, 1.442695
    %v1116 = vpow.pop %v1115
    %v1117 = vadd.f32 %v1116, 1.0
    %v1118 = vrcp.pop %v1117
    %v1119 = vmul.f32 %v1117, %v1118
    %v1120 = vsub.f32 1.0, %v1119
    %v1121 = vmul.f32 %v1118, %v1120
    %v1122 = vadd.f32 %v1118, %v1121
    %vm1123 = vweird.f32 %v1117
    %vm1124 = vweird.f32 %v1118
    %vm1125 = vmor %vm1123, %vm1124
    %v1126 = vsel %vm1125, %v1118, %v1122
    %v1127 = vand.u32 2147483647, %v1117
    %vm1128 = vcmp.eq.f32.partialorder %v1127, 8.507059e+37
    %v1129 = vand.u32 %v1117, 2147483648
    %v1130 = vor.u32 1.1754944e-38, %v1129
    %v1131 = vsel %vm1128, %v1130, %v1126
    %v1132 = vmul.f32 1.0, %v1131
    %v1133 = vadd.f32 %v268, %v1091
    %v1134 = vxor.u32 %v1133, 2147483648
    %v1135 = vmul.f32 %v1134, 1.442695
    %v1136 = vpow.pop %v1135
    %v1137 = vadd.f32 %v1136, 1.0
    %v1138 = vrcp.pop %v1137
    %v1139 = vmul.f32 %v1137, %v1138
    %v1140 = vsub.f32 1.0, %v1139
    %v1141 = vmul.f32 %v1138, %v1140
    %v1142 = vadd.f32 %v1138, %v1141
    %vm1143 = vweird.f32 %v1137
    %vm1144 = vweird.f32 %v1138
    %vm1145 = vmor %vm1143, %vm1144
    %v1146 = vsel %vm1145, %v1138, %v1142
    %v1147 = vand.u32 2147483647, %v1137
    %vm1148 = vcmp.eq.f32.partialorder %v1147, 8.507059e+37
    %v1149 = vand.u32 %v1137, 2147483648
    %v1150 = vor.u32 1.1754944e-38, %v1149
    %v1151 = vsel %vm1148, %v1150, %v1146
    %v1152 = vmul.f32 1.0, %v1151
    %v1153 = vadd.f32 %v1111, %v171
    %v1154 = vmul.f32 %v1132, %v1153
    %v1155 = vadd.f32 %v288, %v1154
    %v1156 = vtanh.pop %v1155
    %v1157 = vsub.f32 %v1050, %v1156
    %v1158 = vmul.f32 %v1152, %v1157
    %v1159 = vadd.f32 %v1156, %v1158
    %s1160 = scalar_lea.vmem [#allocation2], 56
    %1161 = vst [vmem:[%s1160] sm:$0xff] %v1159
    %1162 = vst [vmem:[%s13] sm:$0xff] %v1159
    %v1163 = vld [vmem:[#allocation9] sm:$0xff]
    %v1164 = vld [vmem:[#allocation9 + $0x8] sm:$0xff]
    %v1165 = vld [vmem:[#allocation9 + $0x10] sm:$0xff]
    %v1166 = vld [vmem:[#allocation9 + $0x18] sm:$0xff]
    %v1167 = vld [vmem:[#allocation9 + $0x20] sm:$0xff]
    %v1168 = vld [vmem:[#allocation9 + $0x28] sm:$0xff]
    %v1169 = vld [vmem:[#allocation9 + $0x30] sm:$0xff]
    %v1170 = vld [vmem:[#allocation9 + $0x38] sm:$0xff]
    %v1171 = vld [vmem:[#allocation9 + $0x40] sm:$0xff]
    %v1172 = vld [vmem:[#allocation9 + $0x48] sm:$0xff]
    %v1173 = vld [vmem:[#allocation9 + $0x50] sm:$0xff]
    %v1174 = vld [vmem:[#allocation9 + $0x58] sm:$0xff]
    %v1175 = vld [vmem:[#allocation9 + $0x60] sm:$0xff]
    %v1176 = vld [vmem:[#allocation9 + $0x68] sm:$0xff]
    %v1177 = vld [vmem:[#allocation9 + $0x70] sm:$0xff]
    %v1178 = vld [vmem:[#allocation9 + $0x78] sm:$0xff]
    %v1179 = vld [vmem:[#allocation9 + $0x80] sm:$0xff]
    %v1180 = vld [vmem:[#allocation9 + $0x88] sm:$0xff]
    %v1181 = vld [vmem:[#allocation9 + $0x90] sm:$0xff]
    %v1182 = vld [vmem:[#allocation9 + $0x98] sm:$0xff]
    %v1183 = vld [vmem:[#allocation9 + $0xa0] sm:$0xff]
    %v1184 = vld [vmem:[#allocation9 + $0xa8] sm:$0xff]
    %v1185 = vld [vmem:[#allocation9 + $0xb0] sm:$0xff]
    %v1186 = vld [vmem:[#allocation9 + $0xb8] sm:$0xff]
    %v1187 = vld [vmem:[#allocation9 + $0xc0] sm:$0xff]
    %v1188 = vld [vmem:[#allocation9 + $0xc8] sm:$0xff]
    %v1189 = vld [vmem:[#allocation9 + $0xd0] sm:$0xff]
    %v1190 = vld [vmem:[#allocation9 + $0xd8] sm:$0xff]
    %v1191 = vld [vmem:[#allocation9 + $0xe0] sm:$0xff]
    %v1192 = vld [vmem:[#allocation9 + $0xe8] sm:$0xff]
    %v1193 = vld [vmem:[#allocation9 + $0xf0] sm:$0xff]
    %v1194 = vld [vmem:[#allocation9 + $0xf8] sm:$0xff]
    %v1195 = vld [vmem:[#allocation9 + $0x100] sm:$0xff]
    %v1196 = vld [vmem:[#allocation9 + $0x108] sm:$0xff]
    %v1197 = vld [vmem:[#allocation9 + $0x110] sm:$0xff]
    %v1198 = vld [vmem:[#allocation9 + $0x118] sm:$0xff]
    %v1199 = vld [vmem:[#allocation9 + $0x120] sm:$0xff]
    %v1200 = vld [vmem:[#allocation9 + $0x128] sm:$0xff]
    %v1201 = vld [vmem:[#allocation9 + $0x130] sm:$0xff]
    %v1202 = vld [vmem:[#allocation9 + $0x138] sm:$0xff]
    %v1203 = vld [vmem:[#allocation9 + $0x140] sm:$0xff]
    %v1204 = vld [vmem:[#allocation9 + $0x148] sm:$0xff]
    %v1205 = vld [vmem:[#allocation9 + $0x150] sm:$0xff]
    %v1206 = vld [vmem:[#allocation9 + $0x158] sm:$0xff]
    %v1207 = vld [vmem:[#allocation9 + $0x160] sm:$0xff]
    %v1208 = vld [vmem:[#allocation9 + $0x168] sm:$0xff]
    %v1209 = vld [vmem:[#allocation9 + $0x170] sm:$0xff]
    %v1210 = vld [vmem:[#allocation9 + $0x178] sm:$0xff]
    %v1211 = vld [vmem:[%s9] sm:$0x1]
    %v1213 = vperm.slane %v1211, 0
    %v1215 = vld [vmem:[#allocation2] sm:$0xff]
    %v1216 = vld [vmem:[#allocation2 + $0x8] sm:$0xff]
    %v1217 = vld [vmem:[#allocation2 + $0x10] sm:$0xff]
    %v1218 = vld [vmem:[#allocation2 + $0x18] sm:$0xff]
    %v1219 = vld [vmem:[#allocation2 + $0x20] sm:$0xff]
    %v1220 = vld [vmem:[#allocation2 + $0x28] sm:$0xff]
    %v1221 = vld [vmem:[#allocation2 + $0x30] sm:$0xff]
    %v1222 = vld [vmem:[#allocation2 + $0x38] sm:$0xff]
    %v1223 = vld [vmem:[#allocation8] sm:$0xff]
    %v1224 = vld [vmem:[#allocation8 + $0x8] sm:$0xff]
    %v1225 = vld [vmem:[#allocation8 + $0x10] sm:$0xff]
    %v1226 = vld [vmem:[#allocation8 + $0x18] sm:$0xff]
    %v1227 = vld [vmem:[#allocation8 + $0x20] sm:$0xff]
    %v1228 = vld [vmem:[#allocation8 + $0x28] sm:$0xff]
    %v1229 = vld [vmem:[#allocation8 + $0x30] sm:$0xff]
    %v1230 = vld [vmem:[#allocation8 + $0x38] sm:$0xff]
    %v1231 = vld [vmem:[#allocation8 + $0x40] sm:$0xff]
    %v1232 = vld [vmem:[#allocation8 + $0x48] sm:$0xff]
    %v1233 = vld [vmem:[#allocation8 + $0x50] sm:$0xff]
    %v1234 = vld [vmem:[#allocation8 + $0x58] sm:$0xff]
    %v1235 = vld [vmem:[#allocation8 + $0x60] sm:$0xff]
    %v1236 = vld [vmem:[#allocation8 + $0x68] sm:$0xff]
    %v1237 = vld [vmem:[#allocation8 + $0x70] sm:$0xff]
    %v1238 = vld [vmem:[#allocation8 + $0x78] sm:$0xff]
    %v1239 = vld [vmem:[#allocation8 + $0x80] sm:$0xff]
    %v1240 = vld [vmem:[#allocation8 + $0x88] sm:$0xff]
    %v1241 = vld [vmem:[#allocation8 + $0x90] sm:$0xff]
    %v1242 = vld [vmem:[#allocation8 + $0x98] sm:$0xff]
    %v1243 = vld [vmem:[#allocation8 + $0xa0] sm:$0xff]
    %v1244 = vld [vmem:[#allocation8 + $0xa8] sm:$0xff]
    %v1245 = vld [vmem:[#allocation8 + $0xb0] sm:$0xff]
    %v1246 = vld [vmem:[#allocation8 + $0xb8] sm:$0xff]
    %v1247 = vld [vmem:[#allocation8 + $0xc0] sm:$0xff]
    %v1248 = vld [vmem:[#allocation8 + $0xc8] sm:$0xff]
    %v1249 = vld [vmem:[#allocation8 + $0xd0] sm:$0xff]
    %v1250 = vld [vmem:[#allocation8 + $0xd8] sm:$0xff]
    %v1251 = vld [vmem:[#allocation8 + $0xe0] sm:$0xff]
    %v1252 = vld [vmem:[#allocation8 + $0xe8] sm:$0xff]
    %v1253 = vld [vmem:[#allocation8 + $0xf0] sm:$0xff]
    %v1254 = vld [vmem:[#allocation8 + $0xf8] sm:$0xff]
    %v1255 = vld [vmem:[#allocation8 + $0x100] sm:$0xff]
    %v1256 = vld [vmem:[#allocation8 + $0x108] sm:$0xff]
    %v1257 = vld [vmem:[#allocation8 + $0x110] sm:$0xff]
    %v1258 = vld [vmem:[#allocation8 + $0x118] sm:$0xff]
    %v1259 = vld [vmem:[#allocation8 + $0x120] sm:$0xff]
    %v1260 = vld [vmem:[#allocation8 + $0x128] sm:$0xff]
    %v1261 = vld [vmem:[#allocation8 + $0x130] sm:$0xff]
    %v1262 = vld [vmem:[#allocation8 + $0x138] sm:$0xff]
    %v1263 = vld [vmem:[#allocation8 + $0x140] sm:$0xff]
    %v1264 = vld [vmem:[#allocation8 + $0x148] sm:$0xff]
    %v1265 = vld [vmem:[#allocation8 + $0x150] sm:$0xff]
    %v1266 = vld [vmem:[#allocation8 + $0x158] sm:$0xff]
    %v1267 = vld [vmem:[#allocation8 + $0x160] sm:$0xff]
    %v1268 = vld [vmem:[#allocation8 + $0x168] sm:$0xff]
    %v1269 = vld [vmem:[#allocation8 + $0x170] sm:$0xff]
    %v1270 = vld [vmem:[#allocation8 + $0x178] sm:$0xff]
    %v1271 = vld [vmem:[%s8] sm:$0x7]
    %v1273 = vperm.slane %v1271, 0
    %v1274 = vperm.slane %v1271, 1
    %v1275 = vperm.slane %v1271, 2
    %1279 = vmatpush.msra.mxu0 %v1268
    %1280 = vmatpush.msra.mxu0 %v1265
    %1281 = vmatpush.msra.mxu0 %v1262
    %1282 = vmatpush.msra.mxu0 %v1259
    %1283 = vmatpush.msra.mxu0 %v1256
    %1284 = vmatpush.msra.mxu0 %v1253
    %1285 = vmatpush.msra.mxu0 %v1250
    %1286 = vmatpush.msra.mxu0 %v1247
    %1287 = vmatpush.msra.mxu0 %v1244
    %1288 = vmatpush.msra.mxu0 %v1241
    %1289 = vmatpush.msra.mxu0 %v1238
    %1290 = vmatpush.msra.mxu0 %v1235
    %1291 = vmatpush.msra.mxu0 %v1232
    %1292 = vmatpush.msra.mxu0 %v1229
    %1293 = vmatpush.msra.mxu0 %v1226
    %1294 = vmatpush.msra.mxu0 %v1223
    %1295 = vmatmul.f32.gmra.mxu0 %v1215
    %v1296 = vpop.f32.mrf.mxu0
    %v1297 = vadd.f32 %v1273, %v1296
    %1298 = vmatmul.f32.gmra.mxu0 %v1216
    %v1299 = vpop.f32.mrf.mxu0
    %v1300 = vadd.f32 %v1273, %v1299
    %1301 = vmatmul.f32.gmra.mxu0 %v1217
    %v1302 = vpop.f32.mrf.mxu0
    %v1303 = vadd.f32 %v1273, %v1302
    %1304 = vmatmul.f32.gmra.mxu0 %v1218
    %v1305 = vpop.f32.mrf.mxu0
    %v1306 = vadd.f32 %v1273, %v1305
    %1307 = vmatmul.f32.gmra.mxu0 %v1219
    %v1308 = vpop.f32.mrf.mxu0
    %v1309 = vadd.f32 %v1273, %v1308
    %1310 = vmatmul.f32.gmra.mxu0 %v1220
    %v1311 = vpop.f32.mrf.mxu0
    %v1312 = vadd.f32 %v1273, %v1311
    %1313 = vmatmul.f32.gmra.mxu0 %v1221
    %v1314 = vpop.f32.mrf.mxu0
    %v1315 = vadd.f32 %v1273, %v1314
    %1316 = vmatmul.f32.gmra.mxu0 %v1222
    %v1317 = vpop.f32.mrf.mxu0
    %v1318 = vadd.f32 %v1273, %v1317
    %1319 = vdwg.mxu0
    %1320 = vmatpush.msra.mxu0 %v1269
    %1321 = vmatpush.msra.mxu0 %v1266
    %1322 = vmatpush.msra.mxu0 %v1263
    %1323 = vmatpush.msra.mxu0 %v1260
    %1324 = vmatpush.msra.mxu0 %v1257
    %1325 = vmatpush.msra.mxu0 %v1254
    %1326 = vmatpush.msra.mxu0 %v1251
    %1327 = vmatpush.msra.mxu0 %v1248
    %1328 = vmatpush.msra.mxu0 %v1245
    %1329 = vmatpush.msra.mxu0 %v1242
    %1330 = vmatpush.msra.mxu0 %v1239
    %1331 = vmatpush.msra.mxu0 %v1236
    %1332 = vmatpush.msra.mxu0 %v1233
    %1333 = vmatpush.msra.mxu0 %v1230
    %1334 = vmatpush.msra.mxu0 %v1227
    %1335 = vmatpush.msra.mxu0 %v1224
    %1336 = vmatmul.f32.gmra.mxu0 %v1215
    %v1337 = vpop.f32.mrf.mxu0
    %v1338 = vadd.f32 %v1274, %v1337
    %1339 = vmatmul.f32.gmra.mxu0 %v1216
    %v1340 = vpop.f32.mrf.mxu0
    %v1341 = vadd.f32 %v1274, %v1340
    %1342 = vmatmul.f32.gmra.mxu0 %v1217
    %v1343 = vpop.f32.mrf.mxu0
    %v1344 = vadd.f32 %v1274, %v1343
    %1345 = vmatmul.f32.gmra.mxu0 %v1218
    %v1346 = vpop.f32.mrf.mxu0
    %v1347 = vadd.f32 %v1274, %v1346
    %1348 = vmatmul.f32.gmra.mxu0 %v1219
    %v1349 = vpop.f32.mrf.mxu0
    %v1350 = vadd.f32 %v1274, %v1349
    %1351 = vmatmul.f32.gmra.mxu0 %v1220
    %v1352 = vpop.f32.mrf.mxu0
    %v1353 = vadd.f32 %v1274, %v1352
    %1354 = vmatmul.f32.gmra.mxu0 %v1221
    %v1355 = vpop.f32.mrf.mxu0
    %v1356 = vadd.f32 %v1274, %v1355
    %1357 = vmatmul.f32.gmra.mxu0 %v1222
    %v1358 = vpop.f32.mrf.mxu0
    %v1359 = vadd.f32 %v1274, %v1358
    %1360 = vdwg.mxu0
    %1361 = vmatpush.msra.mxu0 %v1270
    %1362 = vmatpush.msra.mxu0 %v1267
    %1363 = vmatpush.msra.mxu0 %v1264
    %1364 = vmatpush.msra.mxu0 %v1261
    %1365 = vmatpush.msra.mxu0 %v1258
    %1366 = vmatpush.msra.mxu0 %v1255
    %1367 = vmatpush.msra.mxu0 %v1252
    %1368 = vmatpush.msra.mxu0 %v1249
    %1369 = vmatpush.msra.mxu0 %v1246
    %1370 = vmatpush.msra.mxu0 %v1243
    %1371 = vmatpush.msra.mxu0 %v1240
    %1372 = vmatpush.msra.mxu0 %v1237
    %1373 = vmatpush.msra.mxu0 %v1234
    %1374 = vmatpush.msra.mxu0 %v1231
    %1375 = vmatpush.msra.mxu0 %v1228
    %1376 = vmatpush.msra.mxu0 %v1225
    %1377 = vmatmul.f32.gmra.mxu0 %v1215
    %v1378 = vpop.f32.mrf.mxu0
    %v1379 = vadd.f32 %v1275, %v1378
    %1380 = vmatmul.f32.gmra.mxu0 %v1216
    %v1381 = vpop.f32.mrf.mxu0
    %v1382 = vadd.f32 %v1275, %v1381
    %1383 = vmatmul.f32.gmra.mxu0 %v1217
    %v1384 = vpop.f32.mrf.mxu0
    %v1385 = vadd.f32 %v1275, %v1384
    %1386 = vmatmul.f32.gmra.mxu0 %v1218
    %v1387 = vpop.f32.mrf.mxu0
    %v1388 = vadd.f32 %v1275, %v1387
    %1389 = vmatmul.f32.gmra.mxu0 %v1219
    %v1390 = vpop.f32.mrf.mxu0
    %v1391 = vadd.f32 %v1275, %v1390
    %1392 = vmatmul.f32.gmra.mxu0 %v1220
    %v1393 = vpop.f32.mrf.mxu0
    %v1394 = vadd.f32 %v1275, %v1393
    %1395 = vmatmul.f32.gmra.mxu0 %v1221
    %v1396 = vpop.f32.mrf.mxu0
    %v1397 = vadd.f32 %v1275, %v1396
    %1398 = vmatmul.f32.gmra.mxu0 %v1222
    %v1399 = vpop.f32.mrf.mxu0
    %v1400 = vadd.f32 %v1275, %v1399
    %1401 = vdwg.mxu0
    %1402 = vst [vmem:[#allocation3] sm:$0xff] %v1297
    %1403 = vst [vmem:[#allocation3 + $0x8] sm:$0xff] %v1338
    %1404 = vst [vmem:[#allocation3 + $0x10] sm:$0xff] %v1379
    %1405 = vst [vmem:[#allocation3 + $0x18] sm:$0xff] %v1300
    %1406 = vst [vmem:[#allocation3 + $0x20] sm:$0xff] %v1341
    %1407 = vst [vmem:[#allocation3 + $0x28] sm:$0xff] %v1382
    %1408 = vst [vmem:[#allocation3 + $0x30] sm:$0xff] %v1303
    %1409 = vst [vmem:[#allocation3 + $0x38] sm:$0xff] %v1344
    %1410 = vst [vmem:[#allocation3 + $0x40] sm:$0xff] %v1385
    %1411 = vst [vmem:[#allocation3 + $0x48] sm:$0xff] %v1306
    %1412 = vst [vmem:[#allocation3 + $0x50] sm:$0xff] %v1347
    %1413 = vst [vmem:[#allocation3 + $0x58] sm:$0xff] %v1388
    %1414 = vst [vmem:[#allocation3 + $0x60] sm:$0xff] %v1309
    %1415 = vst [vmem:[#allocation3 + $0x68] sm:$0xff] %v1350
    %1416 = vst [vmem:[#allocation3 + $0x70] sm:$0xff] %v1391
    %1417 = vst [vmem:[#allocation3 + $0x78] sm:$0xff] %v1312
    %1418 = vst [vmem:[#allocation3 + $0x80] sm:$0xff] %v1353
    %1419 = vst [vmem:[#allocation3 + $0x88] sm:$0xff] %v1394
    %1420 = vst [vmem:[#allocation3 + $0x90] sm:$0xff] %v1315
    %1421 = vst [vmem:[#allocation3 + $0x98] sm:$0xff] %v1356
    %1422 = vst [vmem:[#allocation3 + $0xa0] sm:$0xff] %v1397
    %1423 = vst [vmem:[#allocation3 + $0xa8] sm:$0xff] %v1318
    %1424 = vst [vmem:[#allocation3 + $0xb0] sm:$0xff] %v1359
    %1425 = vst [vmem:[#allocation3 + $0xb8] sm:$0xff] %v1400
    %s1426 = scalar_lea.vmem %s1, 8
    %v1427 = vld [vmem:[%s1426] sm:$0xff]
    %s1428 = smul.u32 0, 3
    %s1429 = smul.addr %s1428, 8
    %s1430 = scalar_lea.vmem [#allocation3], %s1429
    %v1431 = vld [vmem:[%s1430] sm:$0xff]
    %v1432 = vld [vmem:[%s1430 + $0x8] sm:$0xff]
    %v1433 = vld [vmem:[%s1430 + $0x10] sm:$0xff]
    %1434 = vmatpush.msra.mxu0 %v1208
    %1435 = vmatpush.msra.mxu0 %v1205
    %1436 = vmatpush.msra.mxu0 %v1202
    %1437 = vmatpush.msra.mxu0 %v1199
    %1438 = vmatpush.msra.mxu0 %v1196
    %1439 = vmatpush.msra.mxu0 %v1193
    %1440 = vmatpush.msra.mxu0 %v1190
    %1441 = vmatpush.msra.mxu0 %v1187
    %1442 = vmatpush.msra.mxu0 %v1184
    %1443 = vmatpush.msra.mxu0 %v1181
    %1444 = vmatpush.msra.mxu0 %v1178
    %1445 = vmatpush.msra.mxu0 %v1175
    %1446 = vmatpush.msra.mxu0 %v1172
    %1447 = vmatpush.msra.mxu0 %v1169
    %1448 = vmatpush.msra.mxu0 %v1166
    %1449 = vmatpush.msra.mxu0 %v1163
    %1450 = vmatmul.f32.gmra.mxu0 %v1427
    %v1451 = vpop.f32.mrf.mxu0
    %v1452 = vadd.f32 0.0, %v1451
    %1453 = vdwg.mxu0
    %1454 = vmatpush.msra.mxu0 %v1209
    %1455 = vmatpush.msra.mxu0 %v1206
    %1456 = vmatpush.msra.mxu0 %v1203
    %1457 = vmatpush.msra.mxu0 %v1200
    %1458 = vmatpush.msra.mxu0 %v1197
    %1459 = vmatpush.msra.mxu0 %v1194
    %1460 = vmatpush.msra.mxu0 %v1191
    %1461 = vmatpush.msra.mxu0 %v1188
    %1462 = vmatpush.msra.mxu0 %v1185
    %1463 = vmatpush.msra.mxu0 %v1182
    %1464 = vmatpush.msra.mxu0 %v1179
    %1465 = vmatpush.msra.mxu0 %v1176
    %1466 = vmatpush.msra.mxu0 %v1173
    %1467 = vmatpush.msra.mxu0 %v1170
    %1468 = vmatpush.msra.mxu0 %v1167
    %1469 = vmatpush.msra.mxu0 %v1164
    %1470 = vmatmul.f32.gmra.mxu0 %v1427
    %v1471 = vpop.f32.mrf.mxu0
    %v1472 = vadd.f32 0.0, %v1471
    %1473 = vdwg.mxu0
    %1474 = vmatpush.msra.mxu0 %v1210
    %1475 = vmatpush.msra.mxu0 %v1207
    %1476 = vmatpush.msra.mxu0 %v1204
    %1477 = vmatpush.msra.mxu0 %v1201
    %1478 = vmatpush.msra.mxu0 %v1198
    %1479 = vmatpush.msra.mxu0 %v1195
    %1480 = vmatpush.msra.mxu0 %v1192
    %1481 = vmatpush.msra.mxu0 %v1189
    %1482 = vmatpush.msra.mxu0 %v1186
    %1483 = vmatpush.msra.mxu0 %v1183
    %1484 = vmatpush.msra.mxu0 %v1180
    %1485 = vmatpush.msra.mxu0 %v1177
    %1486 = vmatpush.msra.mxu0 %v1174
    %1487 = vmatpush.msra.mxu0 %v1171
    %1488 = vmatpush.msra.mxu0 %v1168
    %1489 = vmatpush.msra.mxu0 %v1165
    %1490 = vmatmul.f32.gmra.mxu0 %v1427
    %v1491 = vpop.f32.mrf.mxu0
    %v1492 = vadd.f32 0.0, %v1491
    %1493 = vdwg.mxu0
    %v1494 = vadd.f32 %v1431, %v1452
    %v1495 = vxor.u32 %v1494, 2147483648
    %v1496 = vmul.f32 %v1495, 1.442695
    %v1497 = vpow.pop %v1496
    %v1498 = vadd.f32 %v1497, 1.0
    %v1499 = vrcp.pop %v1498
    %v1500 = vmul.f32 %v1498, %v1499
    %v1501 = vsub.f32 1.0, %v1500
    %v1502 = vmul.f32 %v1499, %v1501
    %v1503 = vadd.f32 %v1499, %v1502
    %vm1504 = vweird.f32 %v1498
    %vm1505 = vweird.f32 %v1499
    %vm1506 = vmor %vm1504, %vm1505
    %v1507 = vsel %vm1506, %v1499, %v1503
    %v1508 = vand.u32 2147483647, %v1498
    %vm1509 = vcmp.eq.f32.partialorder %v1508, 8.507059e+37
    %v1510 = vand.u32 %v1498, 2147483648
    %v1511 = vor.u32 1.1754944e-38, %v1510
    %v1512 = vsel %vm1509, %v1511, %v1507
    %v1513 = vmul.f32 1.0, %v1512
    %v1514 = vadd.f32 %v1432, %v1472
    %v1515 = vxor.u32 %v1514, 2147483648
    %v1516 = vmul.f32 %v1515, 1.442695
    %v1517 = vpow.pop %v1516
    %v1518 = vadd.f32 %v1517, 1.0
    %v1519 = vrcp.pop %v1518
    %v1520 = vmul.f32 %v1518, %v1519
    %v1521 = vsub.f32 1.0, %v1520
    %v1522 = vmul.f32 %v1519, %v1521
    %v1523 = vadd.f32 %v1519, %v1522
    %vm1524 = vweird.f32 %v1518
    %vm1525 = vweird.f32 %v1519
    %vm1526 = vmor %vm1524, %vm1525
    %v1527 = vsel %vm1526, %v1519, %v1523
    %v1528 = vand.u32 2147483647, %v1518
    %vm1529 = vcmp.eq.f32.partialorder %v1528, 8.507059e+37
    %v1530 = vand.u32 %v1518, 2147483648
    %v1531 = vor.u32 1.1754944e-38, %v1530
    %v1532 = vsel %vm1529, %v1531, %v1527
    %v1533 = vmul.f32 1.0, %v1532
    %v1534 = vadd.f32 %v1492, %v1213
    %v1535 = vmul.f32 %v1513, %v1534
    %v1536 = vadd.f32 %v1433, %v1535
    %v1537 = vtanh.pop %v1536
    %v1538 = vsub.f32 %v1427, %v1537
    %v1539 = vmul.f32 %v1533, %v1538
    %v1540 = vadd.f32 %v1537, %v1539
    %1541 = vst [vmem:[#allocation2] sm:$0xff] %v1540
    %s1542 = smul.u32 1, 3
    %s1543 = smul.addr %s1542, 8
    %s1544 = scalar_lea.vmem [#allocation3], %s1543
    %v1545 = vld [vmem:[%s1544] sm:$0xff]
    %v1546 = vld [vmem:[%s1544 + $0x8] sm:$0xff]
    %v1547 = vld [vmem:[%s1544 + $0x10] sm:$0xff]
    %1548 = vmatpush.msra.mxu0 %v1208
    %1549 = vmatpush.msra.mxu0 %v1205
    %1550 = vmatpush.msra.mxu0 %v1202
    %1551 = vmatpush.msra.mxu0 %v1199
    %1552 = vmatpush.msra.mxu0 %v1196
    %1553 = vmatpush.msra.mxu0 %v1193
    %1554 = vmatpush.msra.mxu0 %v1190
    %1555 = vmatpush.msra.mxu0 %v1187
    %1556 = vmatpush.msra.mxu0 %v1184
    %1557 = vmatpush.msra.mxu0 %v1181
    %1558 = vmatpush.msra.mxu0 %v1178
    %1559 = vmatpush.msra.mxu0 %v1175
    %1560 = vmatpush.msra.mxu0 %v1172
    %1561 = vmatpush.msra.mxu0 %v1169
    %1562 = vmatpush.msra.mxu0 %v1166
    %1563 = vmatpush.msra.mxu0 %v1163
    %1564 = vmatmul.f32.gmra.mxu0 %v1540
    %v1565 = vpop.f32.mrf.mxu0
    %v1566 = vadd.f32 0.0, %v1565
    %1567 = vdwg.mxu0
    %1568 = vmatpush.msra.mxu0 %v1209
    %1569 = vmatpush.msra.mxu0 %v1206
    %1570 = vmatpush.msra.mxu0 %v1203
    %1571 = vmatpush.msra.mxu0 %v1200
    %1572 = vmatpush.msra.mxu0 %v1197
    %1573 = vmatpush.msra.mxu0 %v1194
    %1574 = vmatpush.msra.mxu0 %v1191
    %1575 = vmatpush.msra.mxu0 %v1188
    %1576 = vmatpush.msra.mxu0 %v1185
    %1577 = vmatpush.msra.mxu0 %v1182
    %1578 = vmatpush.msra.mxu0 %v1179
    %1579 = vmatpush.msra.mxu0 %v1176
    %1580 = vmatpush.msra.mxu0 %v1173
    %1581 = vmatpush.msra.mxu0 %v1170
    %1582 = vmatpush.msra.mxu0 %v1167
    %1583 = vmatpush.msra.mxu0 %v1164
    %1584 = vmatmul.f32.gmra.mxu0 %v1540
    %v1585 = vpop.f32.mrf.mxu0
    %v1586 = vadd.f32 0.0, %v1585
    %1587 = vdwg.mxu0
    %1588 = vmatpush.msra.mxu0 %v1210
    %1589 = vmatpush.msra.mxu0 %v1207
    %1590 = vmatpush.msra.mxu0 %v1204
    %1591 = vmatpush.msra.mxu0 %v1201
    %1592 = vmatpush.msra.mxu0 %v1198
    %1593 = vmatpush.msra.mxu0 %v1195
    %1594 = vmatpush.msra.mxu0 %v1192
    %1595 = vmatpush.msra.mxu0 %v1189
    %1596 = vmatpush.msra.mxu0 %v1186
    %1597 = vmatpush.msra.mxu0 %v1183
    %1598 = vmatpush.msra.mxu0 %v1180
    %1599 = vmatpush.msra.mxu0 %v1177
    %1600 = vmatpush.msra.mxu0 %v1174
    %1601 = vmatpush.msra.mxu0 %v1171
    %1602 = vmatpush.msra.mxu0 %v1168
    %1603 = vmatpush.msra.mxu0 %v1165
    %1604 = vmatmul.f32.gmra.mxu0 %v1540
    %v1605 = vpop.f32.mrf.mxu0
    %v1606 = vadd.f32 0.0, %v1605
    %1607 = vdwg.mxu0
    %v1608 = vadd.f32 %v1545, %v1566
    %v1609 = vxor.u32 %v1608, 2147483648
    %v1610 = vmul.f32 %v1609, 1.442695
    %v1611 = vpow.pop %v1610
    %v1612 = vadd.f32 %v1611, 1.0
    %v1613 = vrcp.pop %v1612
    %v1614 = vmul.f32 %v1612, %v1613
    %v1615 = vsub.f32 1.0, %v1614
    %v1616 = vmul.f32 %v1613, %v1615
    %v1617 = vadd.f32 %v1613, %v1616
    %vm1618 = vweird.f32 %v1612
    %vm1619 = vweird.f32 %v1613
    %vm1620 = vmor %vm1618, %vm1619
    %v1621 = vsel %vm1620, %v1613, %v1617
    %v1622 = vand.u32 2147483647, %v1612
    %vm1623 = vcmp.eq.f32.partialorder %v1622, 8.507059e+37
    %v1624 = vand.u32 %v1612, 2147483648
    %v1625 = vor.u32 1.1754944e-38, %v1624
    %v1626 = vsel %vm1623, %v1625, %v1621
    %v1627 = vmul.f32 1.0, %v1626
    %v1628 = vadd.f32 %v1546, %v1586
    %v1629 = vxor.u32 %v1628, 2147483648
    %v1630 = vmul.f32 %v1629, 1.442695
    %v1631 = vpow.pop %v1630
    %v1632 = vadd.f32 %v1631, 1.0
    %v1633 = vrcp.pop %v1632
    %v1634 = vmul.f32 %v1632, %v1633
    %v1635 = vsub.f32 1.0, %v1634
    %v1636 = vmul.f32 %v1633, %v1635
    %v1637 = vadd.f32 %v1633, %v1636
    %vm1638 = vweird.f32 %v1632
    %vm1639 = vweird.f32 %v1633
    %vm1640 = vmor %vm1638, %vm1639
    %v1641 = vsel %vm1640, %v1633, %v1637
    %v1642 = vand.u32 2147483647, %v1632
    %vm1643 = vcmp.eq.f32.partialorder %v1642, 8.507059e+37
    %v1644 = vand.u32 %v1632, 2147483648
    %v1645 = vor.u32 1.1754944e-38, %v1644
    %v1646 = vsel %vm1643, %v1645, %v1641
    %v1647 = vmul.f32 1.0, %v1646
    %v1648 = vadd.f32 %v1606, %v1213
    %v1649 = vmul.f32 %v1627, %v1648
    %v1650 = vadd.f32 %v1547, %v1649
    %v1651 = vtanh.pop %v1650
    %v1652 = vsub.f32 %v1540, %v1651
    %v1653 = vmul.f32 %v1647, %v1652
    %v1654 = vadd.f32 %v1651, %v1653
    %1655 = vst [vmem:[%s506] sm:$0xff] %v1654
    %s1656 = smul.u32 2, 3
    %s1657 = smul.addr %s1656, 8
    %s1658 = scalar_lea.vmem [#allocation3], %s1657
    %v1659 = vld [vmem:[%s1658] sm:$0xff]
    %v1660 = vld [vmem:[%s1658 + $0x8] sm:$0xff]
    %v1661 = vld [vmem:[%s1658 + $0x10] sm:$0xff]
    %1662 = vmatpush.msra.mxu0 %v1208
    %1663 = vmatpush.msra.mxu0 %v1205
    %1664 = vmatpush.msra.mxu0 %v1202
    %1665 = vmatpush.msra.mxu0 %v1199
    %1666 = vmatpush.msra.mxu0 %v1196
    %1667 = vmatpush.msra.mxu0 %v1193
    %1668 = vmatpush.msra.mxu0 %v1190
    %1669 = vmatpush.msra.mxu0 %v1187
    %1670 = vmatpush.msra.mxu0 %v1184
    %1671 = vmatpush.msra.mxu0 %v1181
    %1672 = vmatpush.msra.mxu0 %v1178
    %1673 = vmatpush.msra.mxu0 %v1175
    %1674 = vmatpush.msra.mxu0 %v1172
    %1675 = vmatpush.msra.mxu0 %v1169
    %1676 = vmatpush.msra.mxu0 %v1166
    %1677 = vmatpush.msra.mxu0 %v1163
    %1678 = vmatmul.f32.gmra.mxu0 %v1654
    %v1679 = vpop.f32.mrf.mxu0
    %v1680 = vadd.f32 0.0, %v1679
    %1681 = vdwg.mxu0
    %1682 = vmatpush.msra.mxu0 %v1209
    %1683 = vmatpush.msra.mxu0 %v1206
    %1684 = vmatpush.msra.mxu0 %v1203
    %1685 = vmatpush.msra.mxu0 %v1200
    %1686 = vmatpush.msra.mxu0 %v1197
    %1687 = vmatpush.msra.mxu0 %v1194
    %1688 = vmatpush.msra.mxu0 %v1191
    %1689 = vmatpush.msra.mxu0 %v1188
    %1690 = vmatpush.msra.mxu0 %v1185
    %1691 = vmatpush.msra.mxu0 %v1182
    %1692 = vmatpush.msra.mxu0 %v1179
    %1693 = vmatpush.msra.mxu0 %v1176
    %1694 = vmatpush.msra.mxu0 %v1173
    %1695 = vmatpush.msra.mxu0 %v1170
    %1696 = vmatpush.msra.mxu0 %v1167
    %1697 = vmatpush.msra.mxu0 %v1164
    %1698 = vmatmul.f32.gmra.mxu0 %v1654
    %v1699 = vpop.f32.mrf.mxu0
    %v1700 = vadd.f32 0.0, %v1699
    %1701 = vdwg.mxu0
    %1702 = vmatpush.msra.mxu0 %v1210
    %1703 = vmatpush.msra.mxu0 %v1207
    %1704 = vmatpush.msra.mxu0 %v1204
    %1705 = vmatpush.msra.mxu0 %v1201
    %1706 = vmatpush.msra.mxu0 %v1198
    %1707 = vmatpush.msra.mxu0 %v1195
    %1708 = vmatpush.msra.mxu0 %v1192
    %1709 = vmatpush.msra.mxu0 %v1189
    %1710 = vmatpush.msra.mxu0 %v1186
    %1711 = vmatpush.msra.mxu0 %v1183
    %1712 = vmatpush.msra.mxu0 %v1180
    %1713 = vmatpush.msra.mxu0 %v1177
    %1714 = vmatpush.msra.mxu0 %v1174
    %1715 = vmatpush.msra.mxu0 %v1171
    %1716 = vmatpush.msra.mxu0 %v1168
    %1717 = vmatpush.msra.mxu0 %v1165
    %1718 = vmatmul.f32.gmra.mxu0 %v1654
    %v1719 = vpop.f32.mrf.mxu0
    %v1720 = vadd.f32 0.0, %v1719
    %1721 = vdwg.mxu0
    %v1722 = vadd.f32 %v1659, %v1680
    %v1723 = vxor.u32 %v1722, 2147483648
    %v1724 = vmul.f32 %v1723, 1.442695
    %v1725 = vpow.pop %v1724
    %v1726 = vadd.f32 %v1725, 1.0
    %v1727 = vrcp.pop %v1726
    %v1728 = vmul.f32 %v1726, %v1727
    %v1729 = vsub.f32 1.0, %v1728
    %v1730 = vmul.f32 %v1727, %v1729
    %v1731 = vadd.f32 %v1727, %v1730
    %vm1732 = vweird.f32 %v1726
    %vm1733 = vweird.f32 %v1727
    %vm1734 = vmor %vm1732, %vm1733
    %v1735 = vsel %vm1734, %v1727, %v1731
    %v1736 = vand.u32 2147483647, %v1726
    %vm1737 = vcmp.eq.f32.partialorder %v1736, 8.507059e+37
    %v1738 = vand.u32 %v1726, 2147483648
    %v1739 = vor.u32 1.1754944e-38, %v1738
    %v1740 = vsel %vm1737, %v1739, %v1735
    %v1741 = vmul.f32 1.0, %v1740
    %v1742 = vadd.f32 %v1660, %v1700
    %v1743 = vxor.u32 %v1742, 2147483648
    %v1744 = vmul.f32 %v1743, 1.442695
    %v1745 = vpow.pop %v1744
    %v1746 = vadd.f32 %v1745, 1.0
    %v1747 = vrcp.pop %v1746
    %v1748 = vmul.f32 %v1746, %v1747
    %v1749 = vsub.f32 1.0, %v1748
    %v1750 = vmul.f32 %v1747, %v1749
    %v1751 = vadd.f32 %v1747, %v1750
    %vm1752 = vweird.f32 %v1746
    %vm1753 = vweird.f32 %v1747
    %vm1754 = vmor %vm1752, %vm1753
    %v1755 = vsel %vm1754, %v1747, %v1751
    %v1756 = vand.u32 2147483647, %v1746
    %vm1757 = vcmp.eq.f32.partialorder %v1756, 8.507059e+37
    %v1758 = vand.u32 %v1746, 2147483648
    %v1759 = vor.u32 1.1754944e-38, %v1758
    %v1760 = vsel %vm1757, %v1759, %v1755
    %v1761 = vmul.f32 1.0, %v1760
    %v1762 = vadd.f32 %v1720, %v1213
    %v1763 = vmul.f32 %v1741, %v1762
    %v1764 = vadd.f32 %v1661, %v1763
    %v1765 = vtanh.pop %v1764
    %v1766 = vsub.f32 %v1654, %v1765
    %v1767 = vmul.f32 %v1761, %v1766
    %v1768 = vadd.f32 %v1765, %v1767
    %1769 = vst [vmem:[%s615] sm:$0xff] %v1768
    %s1770 = smul.u32 3, 3
    %s1771 = smul.addr %s1770, 8
    %s1772 = scalar_lea.vmem [#allocation3], %s1771
    %v1773 = vld [vmem:[%s1772] sm:$0xff]
    %v1774 = vld [vmem:[%s1772 + $0x8] sm:$0xff]
    %v1775 = vld [vmem:[%s1772 + $0x10] sm:$0xff]
    %1776 = vmatpush.msra.mxu0 %v1208
    %1777 = vmatpush.msra.mxu0 %v1205
    %1778 = vmatpush.msra.mxu0 %v1202
    %1779 = vmatpush.msra.mxu0 %v1199
    %1780 = vmatpush.msra.mxu0 %v1196
    %1781 = vmatpush.msra.mxu0 %v1193
    %1782 = vmatpush.msra.mxu0 %v1190
    %1783 = vmatpush.msra.mxu0 %v1187
    %1784 = vmatpush.msra.mxu0 %v1184
    %1785 = vmatpush.msra.mxu0 %v1181
    %1786 = vmatpush.msra.mxu0 %v1178
    %1787 = vmatpush.msra.mxu0 %v1175
    %1788 = vmatpush.msra.mxu0 %v1172
    %1789 = vmatpush.msra.mxu0 %v1169
    %1790 = vmatpush.msra.mxu0 %v1166
    %1791 = vmatpush.msra.mxu0 %v1163
    %1792 = vmatmul.f32.gmra.mxu0 %v1768
    %v1793 = vpop.f32.mrf.mxu0
    %v1794 = vadd.f32 0.0, %v1793
    %1795 = vdwg.mxu0
    %1796 = vmatpush.msra.mxu0 %v1209
    %1797 = vmatpush.msra.mxu0 %v1206
    %1798 = vmatpush.msra.mxu0 %v1203
    %1799 = vmatpush.msra.mxu0 %v1200
    %1800 = vmatpush.msra.mxu0 %v1197
    %1801 = vmatpush.msra.mxu0 %v1194
    %1802 = vmatpush.msra.mxu0 %v1191
    %1803 = vmatpush.msra.mxu0 %v1188
    %1804 = vmatpush.msra.mxu0 %v1185
    %1805 = vmatpush.msra.mxu0 %v1182
    %1806 = vmatpush.msra.mxu0 %v1179
    %1807 = vmatpush.msra.mxu0 %v1176
    %1808 = vmatpush.msra.mxu0 %v1173
    %1809 = vmatpush.msra.mxu0 %v1170
    %1810 = vmatpush.msra.mxu0 %v1167
    %1811 = vmatpush.msra.mxu0 %v1164
    %1812 = vmatmul.f32.gmra.mxu0 %v1768
    %v1813 = vpop.f32.mrf.mxu0
    %v1814 = vadd.f32 0.0, %v1813
    %1815 = vdwg.mxu0
    %1816 = vmatpush.msra.mxu0 %v1210
    %1817 = vmatpush.msra.mxu0 %v1207
    %1818 = vmatpush.msra.mxu0 %v1204
    %1819 = vmatpush.msra.mxu0 %v1201
    %1820 = vmatpush.msra.mxu0 %v1198
    %1821 = vmatpush.msra.mxu0 %v1195
    %1822 = vmatpush.msra.mxu0 %v1192
    %1823 = vmatpush.msra.mxu0 %v1189
    %1824 = vmatpush.msra.mxu0 %v1186
    %1825 = vmatpush.msra.mxu0 %v1183
    %1826 = vmatpush.msra.mxu0 %v1180
    %1827 = vmatpush.msra.mxu0 %v1177
    %1828 = vmatpush.msra.mxu0 %v1174
    %1829 = vmatpush.msra.mxu0 %v1171
    %1830 = vmatpush.msra.mxu0 %v1168
    %1831 = vmatpush.msra.mxu0 %v1165
    %1832 = vmatmul.f32.gmra.mxu0 %v1768
    %v1833 = vpop.f32.mrf.mxu0
    %v1834 = vadd.f32 0.0, %v1833
    %1835 = vdwg.mxu0
    %v1836 = vadd.f32 %v1773, %v1794
    %v1837 = vxor.u32 %v1836, 2147483648
    %v1838 = vmul.f32 %v1837, 1.442695
    %v1839 = vpow.pop %v1838
    %v1840 = vadd.f32 %v1839, 1.0
    %v1841 = vrcp.pop %v1840
    %v1842 = vmul.f32 %v1840, %v1841
    %v1843 = vsub.f32 1.0, %v1842
    %v1844 = vmul.f32 %v1841, %v1843
    %v1845 = vadd.f32 %v1841, %v1844
    %vm1846 = vweird.f32 %v1840
    %vm1847 = vweird.f32 %v1841
    %vm1848 = vmor %vm1846, %vm1847
    %v1849 = vsel %vm1848, %v1841, %v1845
    %v1850 = vand.u32 2147483647, %v1840
    %vm1851 = vcmp.eq.f32.partialorder %v1850, 8.507059e+37
    %v1852 = vand.u32 %v1840, 2147483648
    %v1853 = vor.u32 1.1754944e-38, %v1852
    %v1854 = vsel %vm1851, %v1853, %v1849
    %v1855 = vmul.f32 1.0, %v1854
    %v1856 = vadd.f32 %v1774, %v1814
    %v1857 = vxor.u32 %v1856, 2147483648
    %v1858 = vmul.f32 %v1857, 1.442695
    %v1859 = vpow.pop %v1858
    %v1860 = vadd.f32 %v1859, 1.0
    %v1861 = vrcp.pop %v1860
    %v1862 = vmul.f32 %v1860, %v1861
    %v1863 = vsub.f32 1.0, %v1862
    %v1864 = vmul.f32 %v1861, %v1863
    %v1865 = vadd.f32 %v1861, %v1864
    %vm1866 = vweird.f32 %v1860
    %vm1867 = vweird.f32 %v1861
    %vm1868 = vmor %vm1866, %vm1867
    %v1869 = vsel %vm1868, %v1861, %v1865
    %v1870 = vand.u32 2147483647, %v1860
    %vm1871 = vcmp.eq.f32.partialorder %v1870, 8.507059e+37
    %v1872 = vand.u32 %v1860, 2147483648
    %v1873 = vor.u32 1.1754944e-38, %v1872
    %v1874 = vsel %vm1871, %v1873, %v1869
    %v1875 = vmul.f32 1.0, %v1874
    %v1876 = vadd.f32 %v1834, %v1213
    %v1877 = vmul.f32 %v1855, %v1876
    %v1878 = vadd.f32 %v1775, %v1877
    %v1879 = vtanh.pop %v1878
    %v1880 = vsub.f32 %v1768, %v1879
    %v1881 = vmul.f32 %v1875, %v1880
    %v1882 = vadd.f32 %v1879, %v1881
    %1883 = vst [vmem:[%s724] sm:$0xff] %v1882
    %s1884 = smul.u32 4, 3
    %s1885 = smul.addr %s1884, 8
    %s1886 = scalar_lea.vmem [#allocation3], %s1885
    %v1887 = vld [vmem:[%s1886] sm:$0xff]
    %v1888 = vld [vmem:[%s1886 + $0x8] sm:$0xff]
    %v1889 = vld [vmem:[%s1886 + $0x10] sm:$0xff]
    %1890 = vmatpush.msra.mxu0 %v1208
    %1891 = vmatpush.msra.mxu0 %v1205
    %1892 = vmatpush.msra.mxu0 %v1202
    %1893 = vmatpush.msra.mxu0 %v1199
    %1894 = vmatpush.msra.mxu0 %v1196
    %1895 = vmatpush.msra.mxu0 %v1193
    %1896 = vmatpush.msra.mxu0 %v1190
    %1897 = vmatpush.msra.mxu0 %v1187
    %1898 = vmatpush.msra.mxu0 %v1184
    %1899 = vmatpush.msra.mxu0 %v1181
    %1900 = vmatpush.msra.mxu0 %v1178
    %1901 = vmatpush.msra.mxu0 %v1175
    %1902 = vmatpush.msra.mxu0 %v1172
    %1903 = vmatpush.msra.mxu0 %v1169
    %1904 = vmatpush.msra.mxu0 %v1166
    %1905 = vmatpush.msra.mxu0 %v1163
    %1906 = vmatmul.f32.gmra.mxu0 %v1882
    %v1907 = vpop.f32.mrf.mxu0
    %v1908 = vadd.f32 0.0, %v1907
    %1909 = vdwg.mxu0
    %1910 = vmatpush.msra.mxu0 %v1209
    %1911 = vmatpush.msra.mxu0 %v1206
    %1912 = vmatpush.msra.mxu0 %v1203
    %1913 = vmatpush.msra.mxu0 %v1200
    %1914 = vmatpush.msra.mxu0 %v1197
    %1915 = vmatpush.msra.mxu0 %v1194
    %1916 = vmatpush.msra.mxu0 %v1191
    %1917 = vmatpush.msra.mxu0 %v1188
    %1918 = vmatpush.msra.mxu0 %v1185
    %1919 = vmatpush.msra.mxu0 %v1182
    %1920 = vmatpush.msra.mxu0 %v1179
    %1921 = vmatpush.msra.mxu0 %v1176
    %1922 = vmatpush.msra.mxu0 %v1173
    %1923 = vmatpush.msra.mxu0 %v1170
    %1924 = vmatpush.msra.mxu0 %v1167
    %1925 = vmatpush.msra.mxu0 %v1164
    %1926 = vmatmul.f32.gmra.mxu0 %v1882
    %v1927 = vpop.f32.mrf.mxu0
    %v1928 = vadd.f32 0.0, %v1927
    %1929 = vdwg.mxu0
    %1930 = vmatpush.msra.mxu0 %v1210
    %1931 = vmatpush.msra.mxu0 %v1207
    %1932 = vmatpush.msra.mxu0 %v1204
    %1933 = vmatpush.msra.mxu0 %v1201
    %1934 = vmatpush.msra.mxu0 %v1198
    %1935 = vmatpush.msra.mxu0 %v1195
    %1936 = vmatpush.msra.mxu0 %v1192
    %1937 = vmatpush.msra.mxu0 %v1189
    %1938 = vmatpush.msra.mxu0 %v1186
    %1939 = vmatpush.msra.mxu0 %v1183
    %1940 = vmatpush.msra.mxu0 %v1180
    %1941 = vmatpush.msra.mxu0 %v1177
    %1942 = vmatpush.msra.mxu0 %v1174
    %1943 = vmatpush.msra.mxu0 %v1171
    %1944 = vmatpush.msra.mxu0 %v1168
    %1945 = vmatpush.msra.mxu0 %v1165
    %1946 = vmatmul.f32.gmra.mxu0 %v1882
    %v1947 = vpop.f32.mrf.mxu0
    %v1948 = vadd.f32 0.0, %v1947
    %1949 = vdwg.mxu0
    %v1950 = vadd.f32 %v1887, %v1908
    %v1951 = vxor.u32 %v1950, 2147483648
    %v1952 = vmul.f32 %v1951, 1.442695
    %v1953 = vpow.pop %v1952
    %v1954 = vadd.f32 %v1953, 1.0
    %v1955 = vrcp.pop %v1954
    %v1956 = vmul.f32 %v1954, %v1955
    %v1957 = vsub.f32 1.0, %v1956
    %v1958 = vmul.f32 %v1955, %v1957
    %v1959 = vadd.f32 %v1955, %v1958
    %vm1960 = vweird.f32 %v1954
    %vm1961 = vweird.f32 %v1955
    %vm1962 = vmor %vm1960, %vm1961
    %v1963 = vsel %vm1962, %v1955, %v1959
    %v1964 = vand.u32 2147483647, %v1954
    %vm1965 = vcmp.eq.f32.partialorder %v1964, 8.507059e+37
    %v1966 = vand.u32 %v1954, 2147483648
    %v1967 = vor.u32 1.1754944e-38, %v1966
    %v1968 = vsel %vm1965, %v1967, %v1963
    %v1969 = vmul.f32 1.0, %v1968
    %v1970 = vadd.f32 %v1888, %v1928
    %v1971 = vxor.u32 %v1970, 2147483648
    %v1972 = vmul.f32 %v1971, 1.442695
    %v1973 = vpow.pop %v1972
    %v1974 = vadd.f32 %v1973, 1.0
    %v1975 = vrcp.pop %v1974
    %v1976 = vmul.f32 %v1974, %v1975
    %v1977 = vsub.f32 1.0, %v1976
    %v1978 = vmul.f32 %v1975, %v1977
    %v1979 = vadd.f32 %v1975, %v1978
    %vm1980 = vweird.f32 %v1974
    %vm1981 = vweird.f32 %v1975
    %vm1982 = vmor %vm1980, %vm1981
    %v1983 = vsel %vm1982, %v1975, %v1979
    %v1984 = vand.u32 2147483647, %v1974
    %vm1985 = vcmp.eq.f32.partialorder %v1984, 8.507059e+37
    %v1986 = vand.u32 %v1974, 2147483648
    %v1987 = vor.u32 1.1754944e-38, %v1986
    %v1988 = vsel %vm1985, %v1987, %v1983
    %v1989 = vmul.f32 1.0, %v1988
    %v1990 = vadd.f32 %v1948, %v1213
    %v1991 = vmul.f32 %v1969, %v1990
    %v1992 = vadd.f32 %v1889, %v1991
    %v1993 = vtanh.pop %v1992
    %v1994 = vsub.f32 %v1882, %v1993
    %v1995 = vmul.f32 %v1989, %v1994
    %v1996 = vadd.f32 %v1993, %v1995
    %1997 = vst [vmem:[%s833] sm:$0xff] %v1996
    %s1998 = smul.u32 5, 3
    %s1999 = smul.addr %s1998, 8
    %s2000 = scalar_lea.vmem [#allocation3], %s1999
    %v2001 = vld [vmem:[%s2000] sm:$0xff]
    %v2002 = vld [vmem:[%s2000 + $0x8] sm:$0xff]
    %v2003 = vld [vmem:[%s2000 + $0x10] sm:$0xff]
    %2004 = vmatpush.msra.mxu0 %v1208
    %2005 = vmatpush.msra.mxu0 %v1205
    %2006 = vmatpush.msra.mxu0 %v1202
    %2007 = vmatpush.msra.mxu0 %v1199
    %2008 = vmatpush.msra.mxu0 %v1196
    %2009 = vmatpush.msra.mxu0 %v1193
    %2010 = vmatpush.msra.mxu0 %v1190
    %2011 = vmatpush.msra.mxu0 %v1187
    %2012 = vmatpush.msra.mxu0 %v1184
    %2013 = vmatpush.msra.mxu0 %v1181
    %2014 = vmatpush.msra.mxu0 %v1178
    %2015 = vmatpush.msra.mxu0 %v1175
    %2016 = vmatpush.msra.mxu0 %v1172
    %2017 = vmatpush.msra.mxu0 %v1169
    %2018 = vmatpush.msra.mxu0 %v1166
    %2019 = vmatpush.msra.mxu0 %v1163
    %2020 = vmatmul.f32.gmra.mxu0 %v1996
    %v2021 = vpop.f32.mrf.mxu0
    %v2022 = vadd.f32 0.0, %v2021
    %2023 = vdwg.mxu0
    %2024 = vmatpush.msra.mxu0 %v1209
    %2025 = vmatpush.msra.mxu0 %v1206
    %2026 = vmatpush.msra.mxu0 %v1203
    %2027 = vmatpush.msra.mxu0 %v1200
    %2028 = vmatpush.msra.mxu0 %v1197
    %2029 = vmatpush.msra.mxu0 %v1194
    %2030 = vmatpush.msra.mxu0 %v1191
    %2031 = vmatpush.msra.mxu0 %v1188
    %2032 = vmatpush.msra.mxu0 %v1185
    %2033 = vmatpush.msra.mxu0 %v1182
    %2034 = vmatpush.msra.mxu0 %v1179
    %2035 = vmatpush.msra.mxu0 %v1176
    %2036 = vmatpush.msra.mxu0 %v1173
    %2037 = vmatpush.msra.mxu0 %v1170
    %2038 = vmatpush.msra.mxu0 %v1167
    %2039 = vmatpush.msra.mxu0 %v1164
    %2040 = vmatmul.f32.gmra.mxu0 %v1996
    %v2041 = vpop.f32.mrf.mxu0
    %v2042 = vadd.f32 0.0, %v2041
    %2043 = vdwg.mxu0
    %2044 = vmatpush.msra.mxu0 %v1210
    %2045 = vmatpush.msra.mxu0 %v1207
    %2046 = vmatpush.msra.mxu0 %v1204
    %2047 = vmatpush.msra.mxu0 %v1201
    %2048 = vmatpush.msra.mxu0 %v1198
    %2049 = vmatpush.msra.mxu0 %v1195
    %2050 = vmatpush.msra.mxu0 %v1192
    %2051 = vmatpush.msra.mxu0 %v1189
    %2052 = vmatpush.msra.mxu0 %v1186
    %2053 = vmatpush.msra.mxu0 %v1183
    %2054 = vmatpush.msra.mxu0 %v1180
    %2055 = vmatpush.msra.mxu0 %v1177
    %2056 = vmatpush.msra.mxu0 %v1174
    %2057 = vmatpush.msra.mxu0 %v1171
    %2058 = vmatpush.msra.mxu0 %v1168
    %2059 = vmatpush.msra.mxu0 %v1165
    %2060 = vmatmul.f32.gmra.mxu0 %v1996
    %v2061 = vpop.f32.mrf.mxu0
    %v2062 = vadd.f32 0.0, %v2061
    %2063 = vdwg.mxu0
    %v2064 = vadd.f32 %v2001, %v2022
    %v2065 = vxor.u32 %v2064, 2147483648
    %v2066 = vmul.f32 %v2065, 1.442695
    %v2067 = vpow.pop %v2066
    %v2068 = vadd.f32 %v2067, 1.0
    %v2069 = vrcp.pop %v2068
    %v2070 = vmul.f32 %v2068, %v2069
    %v2071 = vsub.f32 1.0, %v2070
    %v2072 = vmul.f32 %v2069, %v2071
    %v2073 = vadd.f32 %v2069, %v2072
    %vm2074 = vweird.f32 %v2068
    %vm2075 = vweird.f32 %v2069
    %vm2076 = vmor %vm2074, %vm2075
    %v2077 = vsel %vm2076, %v2069, %v2073
    %v2078 = vand.u32 2147483647, %v2068
    %vm2079 = vcmp.eq.f32.partialorder %v2078, 8.507059e+37
    %v2080 = vand.u32 %v2068, 2147483648
    %v2081 = vor.u32 1.1754944e-38, %v2080
    %v2082 = vsel %vm2079, %v2081, %v2077
    %v2083 = vmul.f32 1.0, %v2082
    %v2084 = vadd.f32 %v2002, %v2042
    %v2085 = vxor.u32 %v2084, 2147483648
    %v2086 = vmul.f32 %v2085, 1.442695
    %v2087 = vpow.pop %v2086
    %v2088 = vadd.f32 %v2087, 1.0
    %v2089 = vrcp.pop %v2088
    %v2090 = vmul.f32 %v2088, %v2089
    %v2091 = vsub.f32 1.0, %v2090
    %v2092 = vmul.f32 %v2089, %v2091
    %v2093 = vadd.f32 %v2089, %v2092
    %vm2094 = vweird.f32 %v2088
    %vm2095 = vweird.f32 %v2089
    %vm2096 = vmor %vm2094, %vm2095
    %v2097 = vsel %vm2096, %v2089, %v2093
    %v2098 = vand.u32 2147483647, %v2088
    %vm2099 = vcmp.eq.f32.partialorder %v2098, 8.507059e+37
    %v2100 = vand.u32 %v2088, 2147483648
    %v2101 = vor.u32 1.1754944e-38, %v2100
    %v2102 = vsel %vm2099, %v2101, %v2097
    %v2103 = vmul.f32 1.0, %v2102
    %v2104 = vadd.f32 %v2062, %v1213
    %v2105 = vmul.f32 %v2083, %v2104
    %v2106 = vadd.f32 %v2003, %v2105
    %v2107 = vtanh.pop %v2106
    %v2108 = vsub.f32 %v1996, %v2107
    %v2109 = vmul.f32 %v2103, %v2108
    %v2110 = vadd.f32 %v2107, %v2109
    %2111 = vst [vmem:[%s942] sm:$0xff] %v2110
    %s2112 = smul.u32 6, 3
    %s2113 = smul.addr %s2112, 8
    %s2114 = scalar_lea.vmem [#allocation3], %s2113
    %v2115 = vld [vmem:[%s2114] sm:$0xff]
    %v2116 = vld [vmem:[%s2114 + $0x8] sm:$0xff]
    %v2117 = vld [vmem:[%s2114 + $0x10] sm:$0xff]
    %2118 = vmatpush.msra.mxu0 %v1208
    %2119 = vmatpush.msra.mxu0 %v1205
    %2120 = vmatpush.msra.mxu0 %v1202
    %2121 = vmatpush.msra.mxu0 %v1199
    %2122 = vmatpush.msra.mxu0 %v1196
    %2123 = vmatpush.msra.mxu0 %v1193
    %2124 = vmatpush.msra.mxu0 %v1190
    %2125 = vmatpush.msra.mxu0 %v1187
    %2126 = vmatpush.msra.mxu0 %v1184
    %2127 = vmatpush.msra.mxu0 %v1181
    %2128 = vmatpush.msra.mxu0 %v1178
    %2129 = vmatpush.msra.mxu0 %v1175
    %2130 = vmatpush.msra.mxu0 %v1172
    %2131 = vmatpush.msra.mxu0 %v1169
    %2132 = vmatpush.msra.mxu0 %v1166
    %2133 = vmatpush.msra.mxu0 %v1163
    %2134 = vmatmul.f32.gmra.mxu0 %v2110
    %v2135 = vpop.f32.mrf.mxu0
    %v2136 = vadd.f32 0.0, %v2135
    %2137 = vdwg.mxu0
    %2138 = vmatpush.msra.mxu0 %v1209
    %2139 = vmatpush.msra.mxu0 %v1206
    %2140 = vmatpush.msra.mxu0 %v1203
    %2141 = vmatpush.msra.mxu0 %v1200
    %2142 = vmatpush.msra.mxu0 %v1197
    %2143 = vmatpush.msra.mxu0 %v1194
    %2144 = vmatpush.msra.mxu0 %v1191
    %2145 = vmatpush.msra.mxu0 %v1188
    %2146 = vmatpush.msra.mxu0 %v1185
    %2147 = vmatpush.msra.mxu0 %v1182
    %2148 = vmatpush.msra.mxu0 %v1179
    %2149 = vmatpush.msra.mxu0 %v1176
    %2150 = vmatpush.msra.mxu0 %v1173
    %2151 = vmatpush.msra.mxu0 %v1170
    %2152 = vmatpush.msra.mxu0 %v1167
    %2153 = vmatpush.msra.mxu0 %v1164
    %2154 = vmatmul.f32.gmra.mxu0 %v2110
    %v2155 = vpop.f32.mrf.mxu0
    %v2156 = vadd.f32 0.0, %v2155
    %2157 = vdwg.mxu0
    %2158 = vmatpush.msra.mxu0 %v1210
    %2159 = vmatpush.msra.mxu0 %v1207
    %2160 = vmatpush.msra.mxu0 %v1204
    %2161 = vmatpush.msra.mxu0 %v1201
    %2162 = vmatpush.msra.mxu0 %v1198
    %2163 = vmatpush.msra.mxu0 %v1195
    %2164 = vmatpush.msra.mxu0 %v1192
    %2165 = vmatpush.msra.mxu0 %v1189
    %2166 = vmatpush.msra.mxu0 %v1186
    %2167 = vmatpush.msra.mxu0 %v1183
    %2168 = vmatpush.msra.mxu0 %v1180
    %2169 = vmatpush.msra.mxu0 %v1177
    %2170 = vmatpush.msra.mxu0 %v1174
    %2171 = vmatpush.msra.mxu0 %v1171
    %2172 = vmatpush.msra.mxu0 %v1168
    %2173 = vmatpush.msra.mxu0 %v1165
    %2174 = vmatmul.f32.gmra.mxu0 %v2110
    %v2175 = vpop.f32.mrf.mxu0
    %v2176 = vadd.f32 0.0, %v2175
    %2177 = vdwg.mxu0
    %v2178 = vadd.f32 %v2115, %v2136
    %v2179 = vxor.u32 %v2178, 2147483648
    %v2180 = vmul.f32 %v2179, 1.442695
    %v2181 = vpow.pop %v2180
    %v2182 = vadd.f32 %v2181, 1.0
    %v2183 = vrcp.pop %v2182
    %v2184 = vmul.f32 %v2182, %v2183
    %v2185 = vsub.f32 1.0, %v2184
    %v2186 = vmul.f32 %v2183, %v2185
    %v2187 = vadd.f32 %v2183, %v2186
    %vm2188 = vweird.f32 %v2182
    %vm2189 = vweird.f32 %v2183
    %vm2190 = vmor %vm2188, %vm2189
    %v2191 = vsel %vm2190, %v2183, %v2187
    %v2192 = vand.u32 2147483647, %v2182
    %vm2193 = vcmp.eq.f32.partialorder %v2192, 8.507059e+37
    %v2194 = vand.u32 %v2182, 2147483648
    %v2195 = vor.u32 1.1754944e-38, %v2194
    %v2196 = vsel %vm2193, %v2195, %v2191
    %v2197 = vmul.f32 1.0, %v2196
    %v2198 = vadd.f32 %v2116, %v2156
    %v2199 = vxor.u32 %v2198, 2147483648
    %v2200 = vmul.f32 %v2199, 1.442695
    %v2201 = vpow.pop %v2200
    %v2202 = vadd.f32 %v2201, 1.0
    %v2203 = vrcp.pop %v2202
    %v2204 = vmul.f32 %v2202, %v2203
    %v2205 = vsub.f32 1.0, %v2204
    %v2206 = vmul.f32 %v2203, %v2205
    %v2207 = vadd.f32 %v2203, %v2206
    %vm2208 = vweird.f32 %v2202
    %vm2209 = vweird.f32 %v2203
    %vm2210 = vmor %vm2208, %vm2209
    %v2211 = vsel %vm2210, %v2203, %v2207
    %v2212 = vand.u32 2147483647, %v2202
    %vm2213 = vcmp.eq.f32.partialorder %v2212, 8.507059e+37
    %v2214 = vand.u32 %v2202, 2147483648
    %v2215 = vor.u32 1.1754944e-38, %v2214
    %v2216 = vsel %vm2213, %v2215, %v2211
    %v2217 = vmul.f32 1.0, %v2216
    %v2218 = vadd.f32 %v2176, %v1213
    %v2219 = vmul.f32 %v2197, %v2218
    %v2220 = vadd.f32 %v2117, %v2219
    %v2221 = vtanh.pop %v2220
    %v2222 = vsub.f32 %v2110, %v2221
    %v2223 = vmul.f32 %v2217, %v2222
    %v2224 = vadd.f32 %v2221, %v2223
    %2225 = vst [vmem:[%s1051] sm:$0xff] %v2224
    %s2226 = smul.u32 7, 3
    %s2227 = smul.addr %s2226, 8
    %s2228 = scalar_lea.vmem [#allocation3], %s2227
    %v2229 = vld [vmem:[%s2228] sm:$0xff]
    %v2230 = vld [vmem:[%s2228 + $0x8] sm:$0xff]
    %v2231 = vld [vmem:[%s2228 + $0x10] sm:$0xff]
    %2232 = vmatpush.msra.mxu0 %v1208
    %2233 = vmatpush.msra.mxu0 %v1205
    %2234 = vmatpush.msra.mxu0 %v1202
    %2235 = vmatpush.msra.mxu0 %v1199
    %2236 = vmatpush.msra.mxu0 %v1196
    %2237 = vmatpush.msra.mxu0 %v1193
    %2238 = vmatpush.msra.mxu0 %v1190
    %2239 = vmatpush.msra.mxu0 %v1187
    %2240 = vmatpush.msra.mxu0 %v1184
    %2241 = vmatpush.msra.mxu0 %v1181
    %2242 = vmatpush.msra.mxu0 %v1178
    %2243 = vmatpush.msra.mxu0 %v1175
    %2244 = vmatpush.msra.mxu0 %v1172
    %2245 = vmatpush.msra.mxu0 %v1169
    %2246 = vmatpush.msra.mxu0 %v1166
    %2247 = vmatpush.msra.mxu0 %v1163
    %2248 = vmatmul.f32.gmra.mxu0 %v2224
    %v2249 = vpop.f32.mrf.mxu0
    %v2250 = vadd.f32 0.0, %v2249
    %2251 = vdwg.mxu0
    %2252 = vmatpush.msra.mxu0 %v1209
    %2253 = vmatpush.msra.mxu0 %v1206
    %2254 = vmatpush.msra.mxu0 %v1203
    %2255 = vmatpush.msra.mxu0 %v1200
    %2256 = vmatpush.msra.mxu0 %v1197
    %2257 = vmatpush.msra.mxu0 %v1194
    %2258 = vmatpush.msra.mxu0 %v1191
    %2259 = vmatpush.msra.mxu0 %v1188
    %2260 = vmatpush.msra.mxu0 %v1185
    %2261 = vmatpush.msra.mxu0 %v1182
    %2262 = vmatpush.msra.mxu0 %v1179
    %2263 = vmatpush.msra.mxu0 %v1176
    %2264 = vmatpush.msra.mxu0 %v1173
    %2265 = vmatpush.msra.mxu0 %v1170
    %2266 = vmatpush.msra.mxu0 %v1167
    %2267 = vmatpush.msra.mxu0 %v1164
    %2268 = vmatmul.f32.gmra.mxu0 %v2224
    %v2269 = vpop.f32.mrf.mxu0
    %v2270 = vadd.f32 0.0, %v2269
    %2271 = vdwg.mxu0
    %2272 = vmatpush.msra.mxu0 %v1210
    %2273 = vmatpush.msra.mxu0 %v1207
    %2274 = vmatpush.msra.mxu0 %v1204
    %2275 = vmatpush.msra.mxu0 %v1201
    %2276 = vmatpush.msra.mxu0 %v1198
    %2277 = vmatpush.msra.mxu0 %v1195
    %2278 = vmatpush.msra.mxu0 %v1192
    %2279 = vmatpush.msra.mxu0 %v1189
    %2280 = vmatpush.msra.mxu0 %v1186
    %2281 = vmatpush.msra.mxu0 %v1183
    %2282 = vmatpush.msra.mxu0 %v1180
    %2283 = vmatpush.msra.mxu0 %v1177
    %2284 = vmatpush.msra.mxu0 %v1174
    %2285 = vmatpush.msra.mxu0 %v1171
    %2286 = vmatpush.msra.mxu0 %v1168
    %2287 = vmatpush.msra.mxu0 %v1165
    %2288 = vmatmul.f32.gmra.mxu0 %v2224
    %v2289 = vpop.f32.mrf.mxu0
    %v2290 = vadd.f32 0.0, %v2289
    %2291 = vdwg.mxu0
    %v2292 = vadd.f32 %v2229, %v2250
    %v2293 = vxor.u32 %v2292, 2147483648
    %v2294 = vmul.f32 %v2293, 1.442695
    %v2295 = vpow.pop %v2294
    %v2296 = vadd.f32 %v2295, 1.0
    %v2297 = vrcp.pop %v2296
    %v2298 = vmul.f32 %v2296, %v2297
    %v2299 = vsub.f32 1.0, %v2298
    %v2300 = vmul.f32 %v2297, %v2299
    %v2301 = vadd.f32 %v2297, %v2300
    %vm2302 = vweird.f32 %v2296
    %vm2303 = vweird.f32 %v2297
    %vm2304 = vmor %vm2302, %vm2303
    %v2305 = vsel %vm2304, %v2297, %v2301
    %v2306 = vand.u32 2147483647, %v2296
    %vm2307 = vcmp.eq.f32.partialorder %v2306, 8.507059e+37
    %v2308 = vand.u32 %v2296, 2147483648
    %v2309 = vor.u32 1.1754944e-38, %v2308
    %v2310 = vsel %vm2307, %v2309, %v2305
    %v2311 = vmul.f32 1.0, %v2310
    %v2312 = vadd.f32 %v2230, %v2270
    %v2313 = vxor.u32 %v2312, 2147483648
    %v2314 = vmul.f32 %v2313, 1.442695
    %v2315 = vpow.pop %v2314
    %v2316 = vadd.f32 %v2315, 1.0
    %v2317 = vrcp.pop %v2316
    %v2318 = vmul.f32 %v2316, %v2317
    %v2319 = vsub.f32 1.0, %v2318
    %v2320 = vmul.f32 %v2317, %v2319
    %v2321 = vadd.f32 %v2317, %v2320
    %vm2322 = vweird.f32 %v2316
    %vm2323 = vweird.f32 %v2317
    %vm2324 = vmor %vm2322, %vm2323
    %v2325 = vsel %vm2324, %v2317, %v2321
    %v2326 = vand.u32 2147483647, %v2316
    %vm2327 = vcmp.eq.f32.partialorder %v2326, 8.507059e+37
    %v2328 = vand.u32 %v2316, 2147483648
    %v2329 = vor.u32 1.1754944e-38, %v2328
    %v2330 = vsel %vm2327, %v2329, %v2325
    %v2331 = vmul.f32 1.0, %v2330
    %v2332 = vadd.f32 %v2290, %v1213
    %v2333 = vmul.f32 %v2311, %v2332
    %v2334 = vadd.f32 %v2231, %v2333
    %v2335 = vtanh.pop %v2334
    %v2336 = vsub.f32 %v2224, %v2335
    %v2337 = vmul.f32 %v2331, %v2336
    %v2338 = vadd.f32 %v2335, %v2337
    %2339 = vst [vmem:[%s1160] sm:$0xff] %v2338
    %s2340 = scalar_lea.vmem %s13, 8
    %2341 = vst [vmem:[%s2340] sm:$0xff] %v2338
    %v2342 = vld [vmem:[#allocation2] sm:$0xff]
    %v2343 = vld [vmem:[#allocation2 + $0x8] sm:$0xff]
    %v2344 = vld [vmem:[#allocation2 + $0x10] sm:$0xff]
    %v2345 = vld [vmem:[#allocation2 + $0x18] sm:$0xff]
    %v2346 = vld [vmem:[#allocation2 + $0x20] sm:$0xff]
    %v2347 = vld [vmem:[#allocation2 + $0x28] sm:$0xff]
    %v2348 = vld [vmem:[#allocation2 + $0x30] sm:$0xff]
    %v2349 = vld [vmem:[#allocation2 + $0x38] sm:$0xff]
    %v2350 = vld [vmem:[#allocation11] sm:$0xff]
    %v2351 = vld [vmem:[#allocation11 + $0x8] sm:$0xff]
    %v2352 = vld [vmem:[#allocation11 + $0x10] sm:$0xff]
    %v2353 = vld [vmem:[#allocation11 + $0x18] sm:$0xff]
    %v2354 = vld [vmem:[#allocation11 + $0x20] sm:$0xff]
    %v2355 = vld [vmem:[#allocation11 + $0x28] sm:$0xff]
    %v2356 = vld [vmem:[#allocation11 + $0x30] sm:$0xff]
    %v2357 = vld [vmem:[#allocation11 + $0x38] sm:$0xff]
    %v2358 = vld [vmem:[#allocation11 + $0x40] sm:$0xff]
    %v2359 = vld [vmem:[#allocation11 + $0x48] sm:$0xff]
    %v2360 = vld [vmem:[#allocation11 + $0x50] sm:$0xff]
    %v2361 = vld [vmem:[#allocation11 + $0x58] sm:$0xff]
    %v2362 = vld [vmem:[#allocation11 + $0x60] sm:$0xff]
    %v2363 = vld [vmem:[#allocation11 + $0x68] sm:$0xff]
    %v2364 = vld [vmem:[#allocation11 + $0x70] sm:$0xff]
    %v2365 = vld [vmem:[#allocation11 + $0x78] sm:$0xff]
    %v2366 = vld [vmem:[%s11] sm:$0x1]
    %v2368 = vperm.slane %v2366, 0
    %2370 = vmatpush.msra.mxu0 %v2365
    %2371 = vmatpush.msra.mxu0 %v2364
    %2372 = vmatpush.msra.mxu0 %v2363
    %2373 = vmatpush.msra.mxu0 %v2362
    %2374 = vmatpush.msra.mxu0 %v2361
    %2375 = vmatpush.msra.mxu0 %v2360
    %2376 = vmatpush.msra.mxu0 %v2359
    %2377 = vmatpush.msra.mxu0 %v2358
    %2378 = vmatpush.msra.mxu0 %v2357
    %2379 = vmatpush.msra.mxu0 %v2356
    %2380 = vmatpush.msra.mxu0 %v2355
    %2381 = vmatpush.msra.mxu0 %v2354
    %2382 = vmatpush.msra.mxu0 %v2353
    %2383 = vmatpush.msra.mxu0 %v2352
    %2384 = vmatpush.msra.mxu0 %v2351
    %2385 = vmatpush.msra.mxu0 %v2350
    %2386 = vmatmul.f32.gmra.mxu0 %v2342
    %v2387 = vpop.f32.mrf.mxu0
    %v2388 = vadd.f32 %v2368, %v2387
    %2389 = vmatmul.f32.gmra.mxu0 %v2343
    %v2390 = vpop.f32.mrf.mxu0
    %v2391 = vadd.f32 %v2368, %v2390
    %2392 = vmatmul.f32.gmra.mxu0 %v2344
    %v2393 = vpop.f32.mrf.mxu0
    %v2394 = vadd.f32 %v2368, %v2393
    %2395 = vmatmul.f32.gmra.mxu0 %v2345
    %v2396 = vpop.f32.mrf.mxu0
    %v2397 = vadd.f32 %v2368, %v2396
    %2398 = vmatmul.f32.gmra.mxu0 %v2346
    %v2399 = vpop.f32.mrf.mxu0
    %v2400 = vadd.f32 %v2368, %v2399
    %2401 = vmatmul.f32.gmra.mxu0 %v2347
    %v2402 = vpop.f32.mrf.mxu0
    %v2403 = vadd.f32 %v2368, %v2402
    %2404 = vmatmul.f32.gmra.mxu0 %v2348
    %v2405 = vpop.f32.mrf.mxu0
    %v2406 = vadd.f32 %v2368, %v2405
    %2407 = vmatmul.f32.gmra.mxu0 %v2349
    %v2408 = vpop.f32.mrf.mxu0
    %v2409 = vadd.f32 %v2368, %v2408
    %2410 = vdwg.mxu0
    %2411 = vst [vmem:[%s12] sm:$0xff] %v2388
    %2412 = vst [vmem:[%s12 + $0x8] sm:$0xff] %v2391
    %2413 = vst [vmem:[%s12 + $0x10] sm:$0xff] %v2394
    %2414 = vst [vmem:[%s12 + $0x18] sm:$0xff] %v2397
    %2415 = vst [vmem:[%s12 + $0x20] sm:$0xff] %v2400
    %2416 = vst [vmem:[%s12 + $0x28] sm:$0xff] %v2403
    %2417 = vst [vmem:[%s12 + $0x30] sm:$0xff] %v2406
    %2418 = vst [vmem:[%s12 + $0x38] sm:$0xff] %v2409
    // Predicated region
    $region70: #{rdecoder_forward.1} parent=1 // pred_check
      _
    $region71: #{rdecoder_forward.1} parent=1 // pred_check_branch
      %2420 = sbr.rel (0) target = $region73
    $region72: #{rdecoder_forward.1} parent=1 // pred_region
      _
    $region73: #{rdecoder_forward.1} parent=1 // pred_fallthru
      _
    // Predicated region
    $region74: #{rdecoder_forward.1} parent=1 // pred_check
      _
    $region75: #{rdecoder_forward.1} parent=1 // pred_check_branch
      %2422 = sbr.rel (0) target = $region77
    $region76: #{rdecoder_forward.1} parent=1 // pred_region
      _
    $region77: #{rdecoder_forward.1} parent=1 // pred_fallthru
      _
    // Predicated region
    $region78: #{rdecoder_forward.1} parent=1 // pred_check
      _
    $region79: #{rdecoder_forward.1} parent=1 // pred_check_branch
      %2424 = sbr.rel (0) target = $region81
    $region80: #{rdecoder_forward.1} parent=1 // pred_region
      _
    $region81: #{rdecoder_forward.1} parent=1 // pred_fallthru
      _
    // Predicated region
    $region82: #{rdecoder_forward.1} parent=1 // pred_check
      _
    $region83: #{rdecoder_forward.1} parent=1 // pred_check_branch
      %2426 = sbr.rel (0) target = $region85
    $region84: #{rdecoder_forward.1} parent=1 // pred_region
      _
    $region85: #{rdecoder_forward.1} parent=1 // pred_fallthru
      _
    %2427 = vsyncpa [#allocation5], 1
    %2428 = vsyncpa [#allocation7], 1
    %2429 = vsyncpa [#allocation10], 1

</llo_original>
